<compile_context>
chip_gen: v5e
topology: v5e:2x2
jax: 0.10.0
libtpu: 0.0.40
codegen_flags: <defaults>
</compile_context>

<pallas_src>
import functools

import jax
import jax.numpy as jnp
import numpy as np
from jax.experimental import pallas as pl
from jax.experimental.pallas import tpu as pltpu


def _make_unimp_kernel(num_heads: int, head_dim: int, tile: int):
    H, C = num_heads, head_dim
    HC = H * C

    def kernel(counts_ref,                                    # scalar-prefetch (SMEM)
               x_dst_ref, x_src_ref, adj_ref,
               w_dst_ref, b_dst_ref, w_src_ref, b_src_ref,
               wb_out_ref, wb_skip_ref,
               out_ref,
               q_scr, xr_scr, m_scr, l_scr, acc_scr):
        i = pl.program_id(0)
        k_step = pl.program_id(1)

        # ---- init (once per dst tile): fused Q|skip projection + softmax state ----
        @pl.when(k_step == 0)
        def _init():
            proj = jnp.dot(x_dst_ref[...], w_dst_ref[...],
                           preferred_element_type=jnp.float32) + b_dst_ref[...]
            q_scr[...] = proj[:, :HC]          # 1/sqrt(C) already folded into w_dst/b_dst
            xr_scr[...] = proj[:, HC:]
            m_scr[...] = jnp.full_like(m_scr, -jnp.inf)
            l_scr[...] = jnp.zeros_like(l_scr)
            acc_scr[...] = jnp.zeros_like(acc_scr)

        # ---- per src tile: skip entirely when the adjacency tile has no edges ----
        @pl.when(counts_ref[i, k_step] > 0)
        def _update():
            # fused K|V projection of the src tile
            proj_s = jnp.dot(x_src_ref[...], w_src_ref[...],
                             preferred_element_type=jnp.float32) + b_src_ref[...]  # (T, 2HC)
            adj = adj_ref[...].astype(jnp.float32)                                  # (T, T)
            q = q_scr[...]                                                          # (T, HC)

            contract_last = (((1,), (1,)), ((), ()))   # contract last dims, no transpose
            for h in range(H):                         # static unroll, H small
                qh = q[:, h * C:(h + 1) * C]
                kh = proj_s[:, h * C:(h + 1) * C]
                vh = proj_s[:, HC + h * C:HC + (h + 1) * C]

                s = jax.lax.dot_general(qh, kh, contract_last,
                                        preferred_element_type=jnp.float32)         # (T, T)
                # No -1e30 masking needed: p = exp(s - m) * adj zeroes non-edges and
                # the unmasked running max only shifts the shift-invariant softmax.
                m_prev = m_scr[h]                                                    # (T, 1)
                m_new = jnp.maximum(m_prev, jnp.max(s, axis=1, keepdims=True))
                corr = jnp.exp(m_prev - m_new)
                p = jnp.exp(s - m_new) * adj
                l_scr[h] = corr * l_scr[h] + jnp.sum(p, axis=1, keepdims=True)
                acc_scr[h] = corr * acc_scr[h] + jnp.dot(
                    p, vh, preferred_element_type=jnp.float32)
                m_scr[h] = m_new

        # ---- finalize (last src tile): normalize, beta gate, store ----
        @pl.when(k_step == pl.num_programs(1) - 1)
        def _finalize():
            xr = xr_scr[...]
            msgs = []
            for h in range(H):
                inv_l = pl.reciprocal(jnp.maximum(l_scr[h], jnp.float32(1e-16)),
                                      approx=True)
                msgs.append(acc_scr[h] * inv_l)
            msg = jnp.concatenate(msgs, axis=1)                                      # (T, HC)
            # beta = sigmoid([msg, xr, msg-xr] @ Wbeta) == sigmoid(msg@(W1+W3)+xr@(W2-W3))
            logit = (jnp.dot(msg, wb_out_ref[...], preferred_element_type=jnp.float32)
                     + jnp.dot(xr, wb_skip_ref[...], preferred_element_type=jnp.float32))
            beta = jax.nn.sigmoid(logit)
            out_ref[...] = beta * xr + (1.0 - beta) * msg

    return kernel


def unimp_forward(x, adj, params, *, num_heads: int, head_dim: int, tile: int = 128):
    """UniMP / TransformerConv forward as a tiled Pallas kernel.

    tile: dst/src node tile size (multiple of 8; 128 default, raise to 256/512 on
    v5e/v6e for better HBM-roofline utilization).
    """
    N, Fin = x.shape
    H, C = num_heads, head_dim
    HC = H * C
    T = tile
    n_tiles = (N + T - 1) // T
    Np = n_tiles * T

    # ---- host-side weight fusion (no in-kernel concatenates / rescales) ----
    scale = 1.0 / float(np.sqrt(C))
    w_dst = jnp.concatenate([params["wq"] * scale, params["wskip"]], axis=1)   # (Fin, 2HC)
    b_dst = jnp.concatenate([params["bq"] * scale, params["bskip"]], axis=1)   # (1, 2HC)
    w_src = jnp.concatenate([params["wk"], params["wv"]], axis=1)              # (Fin, 2HC)
    b_src = jnp.concatenate([params["bk"], params["bv"]], axis=1)              # (1, 2HC)
    wb = params["wbeta"]                                                       # (3HC, 1)
    wb_out = wb[:HC] + wb[2 * HC:]                                             # (HC, 1)
    wb_skip = wb[HC:2 * HC] - wb[2 * HC:]                                      # (HC, 1)

    # ---- padding to the tile grid ----
    x_p = jnp.zeros((Np, Fin), jnp.float32).at[:N].set(x.astype(jnp.float32))
    adj_f32 = jnp.zeros((Np, Np), jnp.float32).at[:N, :N].set(adj.astype(jnp.float32))
    # per-(dst tile, src tile) "has any edge" indicator -> SMEM scalar prefetch
    tile_counts = (adj_f32.reshape(n_tiles, T, n_tiles, T).sum(axis=(1, 3)) > 0
                   ).astype(jnp.int32)                                          # (nt, nt)
    adj_p = adj_f32.astype(jnp.bfloat16)   # 0/1 exact; halves dominant O(N^2) HBM traffic

    kernel = _make_unimp_kernel(H, C, T)

    out_p = pl.pallas_call(
        kernel,
        out_shape=jax.ShapeDtypeStruct((Np, HC), jnp.float32),
        grid_spec=pltpu.PrefetchScalarGridSpec(
            num_scalar_prefetch=1,
            grid=(n_tiles, n_tiles),            # (dst tiles, src tiles) — reduction last
            in_specs=[
                pl.BlockSpec((T, Fin), lambda i, k, cnt: (i, 0)),     # x for dst tile (Q, skip)
                pl.BlockSpec((T, Fin), lambda i, k, cnt: (k, 0)),     # x for src tile (K, V)
                pl.BlockSpec((T, T), lambda i, k, cnt: (i, k)),       # adj[dst, src] tile
                pl.BlockSpec((Fin, 2 * HC), lambda i, k, cnt: (0, 0)),  # fused Wq|Wskip
                pl.BlockSpec((1, 2 * HC), lambda i, k, cnt: (0, 0)),    # fused bq|bskip
                pl.BlockSpec((Fin, 2 * HC), lambda i, k, cnt: (0, 0)),  # fused Wk|Wv
                pl.BlockSpec((1, 2 * HC), lambda i, k, cnt: (0, 0)),    # fused bk|bv
                pl.BlockSpec((HC, 1), lambda i, k, cnt: (0, 0)),        # W1+W3 (beta gate)
                pl.BlockSpec((HC, 1), lambda i, k, cnt: (0, 0)),        # W2-W3 (beta gate)
            ],
            out_specs=pl.BlockSpec((T, HC), lambda i, k, cnt: (i, 0)),  # resident across src axis
            scratch_shapes=[
                pltpu.VMEM((T, HC), jnp.float32),     # q (scaled), per dst tile
                pltpu.VMEM((T, HC), jnp.float32),     # x_r (skip), per dst tile
                pltpu.VMEM((H, T, 1), jnp.float32),   # running max m
                pltpu.VMEM((H, T, 1), jnp.float32),   # running denom l
                pltpu.VMEM((H, T, C), jnp.float32),   # running message accumulator
            ],
        ),
        compiler_params=pltpu.CompilerParams(
            dimension_semantics=("parallel", "arbitrary"),
            vmem_limit_bytes=48 * 1024 * 1024,
        ),
    )(tile_counts, x_p, x_p, adj_p, w_dst, b_dst, w_src, b_src, wb_out, wb_skip)

    return out_p[:N]


def unimp_ref(x, adj, params, *, num_heads: int, head_dim: int):
    """Pure-JAX reference (same math, high-precision dots, explicit masking)."""
    H, C = num_heads, head_dim
    hp = jax.lax.Precision.HIGHEST
    q = jnp.dot(x, params["wq"], precision=hp) + params["bq"]
    k = jnp.dot(x, params["wk"], precision=hp) + params["bk"]
    v = jnp.dot(x, params["wv"], precision=hp) + params["bv"]
    scale = 1.0 / float(np.sqrt(C))
    outs = []
    for h in range(H):
        qh, kh, vh = (t[:, h * C:(h + 1) * C] for t in (q, k, v))
        s = jnp.dot(qh, kh.T, precision=hp) * scale
        s = jnp.where(adj > 0, s, -1e30)
        m = jnp.max(s, axis=1, keepdims=True)
        p = jnp.exp(s - m) * adj
        alpha = p / jnp.maximum(jnp.sum(p, axis=1, keepdims=True), 1e-16)
        outs.append(jnp.dot(alpha, vh, precision=hp))
    out = jnp.concatenate(outs, axis=-1)
    x_r = jnp.dot(x, params["wskip"], precision=hp) + params["bskip"]
    cat = jnp.concatenate([out, x_r, out - x_r], axis=-1)
    beta = jax.nn.sigmoid(jnp.dot(cat, params["wbeta"], precision=hp))
    return beta * x_r + (1.0 - beta) * out


if __name__ == "__main__":
    # UniMP(in_dim=32, out_dim=16, num_heads=4, concat=True); N=200 nodes so the
    # kernel runs a real (2, 2) grid with multi-step online softmax, one empty
    # adjacency tile (exercises the block-sparsity skip) and one node with no
    # in-edges (exercises the l=0 guard).
    N, in_dim, out_dim, num_heads = 200, 32, 16, 4
    HC = num_heads * out_dim

    key = jax.random.PRNGKey(0)
    ks = jax.random.split(key, 12)

    # Node features: batch.x  (N, in_dim)
    x = jax.random.normal(ks[0], (N, in_dim), jnp.float32)

    # batch.edge_index: forward chain + partial backward chain + a few extras, arranged
    # so the dst<128 / src>=128 adjacency tile is empty (block-sparse skip path runs).
    fwd_src = np.arange(N - 1)
    fwd_dst = fwd_src + 1
    bwd_src = np.arange(1, 128)
    bwd_dst = bwd_src - 1
    ex_src = np.array([0, 2, 5, 130, 150])
    ex_dst = np.array([4, 6, 1, 190, 140])
    src = np.concatenate([fwd_src, bwd_src, ex_src]).astype(np.int32)
    dst = np.concatenate([fwd_dst, bwd_dst, ex_dst]).astype(np.int32)
    edge_index = jnp.asarray(np.stack([src, dst]), jnp.int32)        # (2, E)

    # Glue (plain JAX): dense adjacency mask adj[dst, src]
    adj = jnp.zeros((N, N), jnp.float32).at[edge_index[1], edge_index[0]].set(1.0)

    # Deterministic synthetic parameters (shapes from TransformerConv.__init__):
    sw = 0.1
    params = {
        "wq": sw * jax.random.normal(ks[1], (in_dim, HC), jnp.float32),
        "bq": sw * jax.random.normal(ks[2], (1, HC), jnp.float32),
        "wk": sw * jax.random.normal(ks[3], (in_dim, HC), jnp.float32),
        "bk": sw * jax.random.normal(ks[4], (1, HC), jnp.float32),
        "wv": sw * jax.random.normal(ks[5], (in_dim, HC), jnp.float32),
        "bv": sw * jax.random.normal(ks[6], (1, HC), jnp.float32),
        "wskip": sw * jax.random.normal(ks[7], (in_dim, HC), jnp.float32),   # lin_skip
        "bskip": sw * jax.random.normal(ks[8], (1, HC), jnp.float32),
        "wbeta": sw * jax.random.normal(ks[9], (3 * HC, 1), jnp.float32),    # lin_beta (no bias)
    }

    fwd = functools.partial(unimp_forward, num_heads=num_heads, head_dim=out_dim, tile=128)
    out = jax.block_until_ready(fwd(x, adj, params))

    ref = jax.block_until_ready(
        unimp_ref(x, adj, params, num_heads=num_heads, head_dim=out_dim))
    np.testing.assert_allclose(np.asarray(out), np.asarray(ref), rtol=1e-2, atol=1e-2)

    assert out.shape == (N, HC)
    print("KERNEL_OK")
</pallas_src>

<mosaic_0001>
module attributes {stable_mosaic.version = 11 : i64} {
  func.func @kernel(%arg0: i32, %arg1: i32, %arg2: memref<2x2xi32, #tpu.memory_space<smem>>, %arg3: memref<128x32xf32, #tpu.memory_space<vmem>>, %arg4: memref<128x32xf32, #tpu.memory_space<vmem>>, %arg5: memref<128x128xbf16, #tpu.memory_space<vmem>>, %arg6: memref<32x128xf32, #tpu.memory_space<vmem>>, %arg7: memref<1x128xf32, #tpu.memory_space<vmem>>, %arg8: memref<32x128xf32, #tpu.memory_space<vmem>>, %arg9: memref<1x128xf32, #tpu.memory_space<vmem>>, %arg10: memref<64x1xf32, #tpu.memory_space<vmem>>, %arg11: memref<64x1xf32, #tpu.memory_space<vmem>>, %arg12: memref<128x64xf32, #tpu.memory_space<vmem>>, %arg13: memref<128x64xf32, #tpu.memory_space<vmem>>, %arg14: memref<128x64xf32, #tpu.memory_space<vmem>>, %arg15: memref<4x128x1xf32, #tpu.memory_space<vmem>>, %arg16: memref<4x128x1xf32, #tpu.memory_space<vmem>>, %arg17: memref<4x128x16xf32, #tpu.memory_space<vmem>>) attributes {dimension_semantics = [#tpu.dimension_semantics<parallel>, #tpu.dimension_semantics<arbitrary>], iteration_bounds = array<i64: 2, 2>, scalar_prefetch = 1 : i64, scratch_operands = 5 : i64, tpu.core_type = #tpu.core_type<tc>, window_params = [{transform_indices = @transform_0, window_bounds = array<i64: 128, 32>}, {transform_indices = @transform_1, window_bounds = array<i64: 128, 32>}, {transform_indices = @transform_2, window_bounds = array<i64: 128, 128>}, {pipeline_mode = #tpu.pipeline_mode<synchronous>, transform_indices = @transform_3, window_bounds = array<i64: 32, 128>}, {pipeline_mode = #tpu.pipeline_mode<synchronous>, transform_indices = @transform_4, window_bounds = array<i64: 1, 128>}, {pipeline_mode = #tpu.pipeline_mode<synchronous>, transform_indices = @transform_5, window_bounds = array<i64: 32, 128>}, {pipeline_mode = #tpu.pipeline_mode<synchronous>, transform_indices = @transform_6, window_bounds = array<i64: 1, 128>}, {pipeline_mode = #tpu.pipeline_mode<synchronous>, transform_indices = @transform_7, window_bounds = array<i64: 64, 1>}, {pipeline_mode = #tpu.pipeline_mode<synchronous>, transform_indices = @transform_8, window_bounds = array<i64: 64, 1>}, {transform_indices = @transform_9, window_bounds = array<i64: 128, 64>}]} {
    %c0_i32 = arith.constant 0 : i32
    %0 = arith.cmpi eq, %arg1, %c0_i32 : i32
    %1 = arith.extui %0 : i1 to i32
    %c0_i32_0 = arith.constant 0 : i32
    %2 = arith.cmpi ne, %1, %c0_i32_0 : i32
    scf.if %2 {
      %c0 = arith.constant 0 : index
      %c0_4 = arith.constant 0 : index
      %12 = vector.load %arg3[%c0, %c0_4] : memref<128x32xf32, #tpu.memory_space<vmem>>, vector<128x32xf32>
      %c0_5 = arith.constant 0 : index
      %c0_6 = arith.constant 0 : index
      %13 = vector.load %arg6[%c0_5, %c0_6] : memref<32x128xf32, #tpu.memory_space<vmem>>, vector<32x128xf32>
      %cst = arith.constant dense<0.000000e+00> : vector<128x128xf32>
      %14 = tpu.matmul %12, %13, %cst {dimension_numbers = #tpu.dot_dimension_numbers<[1], [0], [0], [1], [0, 0, 1, 1], [], []>} : vector<128x32xf32>, vector<32x128xf32>, vector<128x128xf32> -> vector<128x128xf32>
      %c0_7 = arith.constant 0 : index
      %c0_8 = arith.constant 0 : index
      %15 = vector.load %arg7[%c0_7, %c0_8] : memref<1x128xf32, #tpu.memory_space<vmem>>, vector<1x128xf32>
      %16 = vector.broadcast %15 : vector<1x128xf32> to vector<128x128xf32>
      %17 = arith.addf %14, %16 : vector<128x128xf32>
      %18 = vector.extract_strided_slice %17 {offsets = [0, 0], sizes = [128, 64], strides = [1, 1]} : vector<128x128xf32> to vector<128x64xf32>
      %c0_9 = arith.constant 0 : index
      %c0_10 = arith.constant 0 : index
      %19 = vector.load %arg13[%c0_9, %c0_10] : memref<128x64xf32, #tpu.memory_space<vmem>>, vector<128x64xf32>
      tpu.vector_store %arg13[%c0_9, %c0_10], %18 {strides = array<i32>} : memref<128x64xf32, #tpu.memory_space<vmem>>, vector<128x64xf32>,
      %20 = vector.extract_strided_slice %17 {offsets = [0, 64], sizes = [128, 64], strides = [1, 1]} : vector<128x128xf32> to vector<128x64xf32>
      %c0_11 = arith.constant 0 : index
      %c0_12 = arith.constant 0 : index
      %21 = vector.load %arg14[%c0_11, %c0_12] : memref<128x64xf32, #tpu.memory_space<vmem>>, vector<128x64xf32>
      tpu.vector_store %arg14[%c0_11, %c0_12], %20 {strides = array<i32>} : memref<128x64xf32, #tpu.memory_space<vmem>>, vector<128x64xf32>,
      %cst_13 = arith.constant 0xFF800000 : f32
      %22 = vector.broadcast %cst_13 : f32 to vector<4x128x1xf32>
      %c0_14 = arith.constant 0 : index
      %c0_15 = arith.constant 0 : index
      %c0_16 = arith.constant 0 : index
      %23 = vector.load %arg15[%c0_14, %c0_15, %c0_16] : memref<4x128x1xf32, #tpu.memory_space<vmem>>, vector<4x128x1xf32>
      tpu.vector_store %arg15[%c0_14, %c0_15, %c0_16], %22 {strides = array<i32>} : memref<4x128x1xf32, #tpu.memory_space<vmem>>, vector<4x128x1xf32>,
      %cst_17 = arith.constant 0.000000e+00 : f32
      %24 = vector.broadcast %cst_17 : f32 to vector<4x128x1xf32>
      %c0_18 = arith.constant 0 : index
      %c0_19 = arith.constant 0 : index
      %c0_20 = arith.constant 0 : index
      %25 = vector.load %arg16[%c0_18, %c0_19, %c0_20] : memref<4x128x1xf32, #tpu.memory_space<vmem>>, vector<4x128x1xf32>
      tpu.vector_store %arg16[%c0_18, %c0_19, %c0_20], %24 {strides = array<i32>} : memref<4x128x1xf32, #tpu.memory_space<vmem>>, vector<4x128x1xf32>,
      %cst_21 = arith.constant 0.000000e+00 : f32
      %26 = vector.broadcast %cst_21 : f32 to vector<4x128x16xf32>
      %c0_22 = arith.constant 0 : index
      %c0_23 = arith.constant 0 : index
      %c0_24 = arith.constant 0 : index
      %27 = vector.load %arg17[%c0_22, %c0_23, %c0_24] : memref<4x128x16xf32, #tpu.memory_space<vmem>>, vector<4x128x16xf32>
      tpu.vector_store %arg17[%c0_22, %c0_23, %c0_24], %26 {strides = array<i32>} : memref<4x128x16xf32, #tpu.memory_space<vmem>>, vector<4x128x16xf32>,
    } else {
    }
    %3 = arith.index_cast %arg0 : i32 to index
    %4 = arith.index_cast %arg1 : i32 to index
    %5 = memref.load %arg2[%3, %4] : memref<2x2xi32, #tpu.memory_space<smem>>
    %c0_i32_1 = arith.constant 0 : i32
    %6 = arith.cmpi sgt, %5, %c0_i32_1 : i32
    %7 = arith.extui %6 : i1 to i32
    %c0_i32_2 = arith.constant 0 : i32
    %8 = arith.cmpi ne, %7, %c0_i32_2 : i32
    scf.if %8 {
      %c0 = arith.constant 0 : index
      %c0_4 = arith.constant 0 : index
      %12 = vector.load %arg4[%c0, %c0_4] : memref<128x32xf32, #tpu.memory_space<vmem>>, vector<128x32xf32>
      %c0_5 = arith.constant 0 : index
      %c0_6 = arith.constant 0 : index
      %13 = vector.load %arg8[%c0_5, %c0_6] : memref<32x128xf32, #tpu.memory_space<vmem>>, vector<32x128xf32>
      %cst = arith.constant dense<0.000000e+00> : vector<128x128xf32>
      %14 = tpu.matmul %12, %13, %cst {dimension_numbers = #tpu.dot_dimension_numbers<[1], [0], [0], [1], [0, 0, 1, 1], [], []>} : vector<128x32xf32>, vector<32x128xf32>, vector<128x128xf32> -> vector<128x128xf32>
      %c0_7 = arith.constant 0 : index
      %c0_8 = arith.constant 0 : index
      %15 = vector.load %arg9[%c0_7, %c0_8] : memref<1x128xf32, #tpu.memory_space<vmem>>, vector<1x128xf32>
      %16 = vector.broadcast %15 : vector<1x128xf32> to vector<128x128xf32>
      %17 = arith.addf %14, %16 : vector<128x128xf32>
      %c0_9 = arith.constant 0 : index
      %c0_10 = arith.constant 0 : index
      %18 = vector.load %arg5[%c0_9, %c0_10] : memref<128x128xbf16, #tpu.memory_space<vmem>>, vector<128x128xbf16>
      %19 = arith.extf %18 : vector<128x128xbf16> to vector<128x128xf32>
      %c0_11 = arith.constant 0 : index
      %c0_12 = arith.constant 0 : index
      %20 = vector.load %arg13[%c0_11, %c0_12] : memref<128x64xf32, #tpu.memory_space<vmem>>, vector<128x64xf32>
      %21 = vector.extract_strided_slice %20 {offsets = [0, 0], sizes = [128, 16], strides = [1, 1]} : vector<128x64xf32> to vector<128x16xf32>
      %22 = vector.extract_strided_slice %17 {offsets = [0, 0], sizes = [128, 16], strides = [1, 1]} : vector<128x128xf32> to vector<128x16xf32>
      %23 = vector.extract_strided_slice %17 {offsets = [0, 64], sizes = [128, 16], strides = [1, 1]} : vector<128x128xf32> to vector<128x16xf32>
      %cst_13 = arith.constant dense<0.000000e+00> : vector<128x128xf32>
      %24 = tpu.matmul %21, %22, %cst_13 {dimension_numbers = #tpu.dot_dimension_numbers<[1], [1], [0], [0], [0, 0, 1, 0], [], []>} : vector<128x16xf32>, vector<128x16xf32>, vector<128x128xf32> -> vector<128x128xf32>
      %c0_14 = arith.constant 0 : index
      %c0_15 = arith.constant 0 : index
      %c0_16 = arith.constant 0 : index
      %25 = vector.load %arg15[%c0_14, %c0_15, %c0_16] : memref<4x128x1xf32, #tpu.memory_space<vmem>>, vector<1x128x1xf32>
      %26 = vector.shape_cast %25 : vector<1x128x1xf32> to vector<128x1xf32>
      %cst_17 = arith.constant dense<0xFF800000> : vector<128xf32>
      %27 = vector.multi_reduction <maximumf>, %24, %cst_17 [1] : vector<128x128xf32> to vector<128xf32>
      %28 = vector.shape_cast %27 : vector<128xf32> to vector<128x1xf32>
      %29 = arith.maximumf %26, %28 : vector<128x1xf32>
      %30 = arith.subf %26, %29 : vector<128x1xf32>
      %31 = math.exp %30 : vector<128x1xf32>
      %32 = vector.broadcast %29 : vector<128x1xf32> to vector<128x128xf32>
      %33 = arith.subf %24, %32 : vector<128x128xf32>
      %34 = math.exp %33 : vector<128x128xf32>
      %35 = arith.mulf %34, %19 : vector<128x128xf32>
      %c0_18 = arith.constant 0 : index
      %c0_19 = arith.constant 0 : index
      %c0_20 = arith.constant 0 : index
      %36 = vector.load %arg16[%c0_18, %c0_19, %c0_20] : memref<4x128x1xf32, #tpu.memory_space<vmem>>, vector<1x128x1xf32>
      %37 = vector.shape_cast %36 : vector<1x128x1xf32> to vector<128x1xf32>
      %38 = arith.mulf %31, %37 : vector<128x1xf32>
      %cst_21 = arith.constant dense<0.000000e+00> : vector<128xf32>
      %39 = vector.multi_reduction <add>, %35, %cst_21 [1] : vector<128x128xf32> to vector<128xf32>
      %40 = vector.shape_cast %39 : vector<128xf32> to vector<128x1xf32>
      %41 = arith.addf %38, %40 : vector<128x1xf32>
      %c0_22 = arith.constant 0 : index
      %c0_23 = arith.constant 0 : index
      %c0_24 = arith.constant 0 : index
      %42 = vector.load %arg16[%c0_22, %c0_23, %c0_24] : memref<4x128x1xf32, #tpu.memory_space<vmem>>, vector<1x128x1xf32>
      %43 = vector.shape_cast %42 : vector<1x128x1xf32> to vector<128x1xf32>
      %44 = vector.shape_cast %41 : vector<128x1xf32> to vector<1x128x1xf32>
      tpu.vector_store %arg16[%c0_22, %c0_23, %c0_24], %44 {strides = array<i32>} : memref<4x128x1xf32, #tpu.memory_space<vmem>>, vector<1x128x1xf32>,
      %c0_25 = arith.constant 0 : index
      %c0_26 = arith.constant 0 : index
      %c0_27 = arith.constant 0 : index
      %45 = vector.load %arg17[%c0_25, %c0_26, %c0_27] : memref<4x128x16xf32, #tpu.memory_space<vmem>>, vector<1x128x16xf32>
      %46 = vector.shape_cast %45 : vector<1x128x16xf32> to vector<128x16xf32>
      %47 = vector.broadcast %31 : vector<128x1xf32> to vector<128x16xf32>
      %48 = arith.mulf %47, %46 : vector<128x16xf32>
      %cst_28 = arith.constant dense<0.000000e+00> : vector<128x16xf32>
      %49 = tpu.matmul %35, %23, %cst_28 {dimension_numbers = #tpu.dot_dimension_numbers<[1], [0], [0], [1], [0, 0, 1, 1], [], []>} : vector<128x128xf32>, vector<128x16xf32>, vector<128x16xf32> -> vector<128x16xf32>
      %50 = arith.addf %48, %49 : vector<128x16xf32>
      %c0_29 = arith.constant 0 : index
      %c0_30 = arith.constant 0 : index
      %c0_31 = arith.constant 0 : index
      %51 = vector.load %arg17[%c0_29, %c0_30, %c0_31] : memref<4x128x16xf32, #tpu.memory_space<vmem>>, vector<1x128x16xf32>
      %52 = vector.shape_cast %51 : vector<1x128x16xf32> to vector<128x16xf32>
      %53 = vector.shape_cast %50 : vector<128x16xf32> to vector<1x128x16xf32>
      tpu.vector_store %arg17[%c0_29, %c0_30, %c0_31], %53 {strides = array<i32>} : memref<4x128x16xf32, #tpu.memory_space<vmem>>, vector<1x128x16xf32>,
      %c0_32 = arith.constant 0 : index
      %c0_33 = arith.constant 0 : index
      %c0_34 = arith.constant 0 : index
      %54 = vector.load %arg15[%c0_32, %c0_33, %c0_34] : memref<4x128x1xf32, #tpu.memory_space<vmem>>, vector<1x128x1xf32>
      %55 = vector.shape_cast %54 : vector<1x128x1xf32> to vector<128x1xf32>
      %56 = vector.shape_cast %29 : vector<128x1xf32> to vector<1x128x1xf32>
      tpu.vector_store %arg15[%c0_32, %c0_33, %c0_34], %56 {strides = array<i32>} : memref<4x128x1xf32, #tpu.memory_space<vmem>>, vector<1x128x1xf32>,
      %57 = vector.extract_strided_slice %20 {offsets = [0, 16], sizes = [128, 16], strides = [1, 1]} : vector<128x64xf32> to vector<128x16xf32>
      %58 = vector.extract_strided_slice %17 {offsets = [0, 16], sizes = [128, 16], strides = [1, 1]} : vector<128x128xf32> to vector<128x16xf32>
      %59 = vector.extract_strided_slice %17 {offsets = [0, 80], sizes = [128, 16], strides = [1, 1]} : vector<128x128xf32> to vector<128x16xf32>
      %cst_35 = arith.constant dense<0.000000e+00> : vector<128x128xf32>
      %60 = tpu.matmul %57, %58, %cst_35 {dimension_numbers = #tpu.dot_dimension_numbers<[1], [1], [0], [0], [0, 0, 1, 0], [], []>} : vector<128x16xf32>, vector<128x16xf32>, vector<128x128xf32> -> vector<128x128xf32>
      %c1 = arith.constant 1 : index
      %c0_36 = arith.constant 0 : index
      %c0_37 = arith.constant 0 : index
      %61 = vector.load %arg15[%c1, %c0_36, %c0_37] : memref<4x128x1xf32, #tpu.memory_space<vmem>>, vector<1x128x1xf32>
      %62 = vector.shape_cast %61 : vector<1x128x1xf32> to vector<128x1xf32>
      %cst_38 = arith.constant dense<0xFF800000> : vector<128xf32>
      %63 = vector.multi_reduction <maximumf>, %60, %cst_38 [1] : vector<128x128xf32> to vector<128xf32>
      %64 = vector.shape_cast %63 : vector<128xf32> to vector<128x1xf32>
      %65 = arith.maximumf %62, %64 : vector<128x1xf32>
      %66 = arith.subf %62, %65 : vector<128x1xf32>
      %67 = math.exp %66 : vector<128x1xf32>
      %68 = vector.broadcast %65 : vector<128x1xf32> to vector<128x128xf32>
      %69 = arith.subf %60, %68 : vector<128x128xf32>
      %70 = math.exp %69 : vector<128x128xf32>
      %71 = arith.mulf %70, %19 : vector<128x128xf32>
      %c1_39 = arith.constant 1 : index
      %c0_40 = arith.constant 0 : index
      %c0_41 = arith.constant 0 : index
      %72 = vector.load %arg16[%c1_39, %c0_40, %c0_41] : memref<4x128x1xf32, #tpu.memory_space<vmem>>, vector<1x128x1xf32>
      %73 = vector.shape_cast %72 : vector<1x128x1xf32> to vector<128x1xf32>
      %74 = arith.mulf %67, %73 : vector<128x1xf32>
      %cst_42 = arith.constant dense<0.000000e+00> : vector<128xf32>
      %75 = vector.multi_reduction <add>, %71, %cst_42 [1] : vector<128x128xf32> to vector<128xf32>
      %76 = vector.shape_cast %75 : vector<128xf32> to vector<128x1xf32>
      %77 = arith.addf %74, %76 : vector<128x1xf32>
      %c1_43 = arith.constant 1 : index
      %c0_44 = arith.constant 0 : index
      %c0_45 = arith.constant 0 : index
      %78 = vector.load %arg16[%c1_43, %c0_44, %c0_45] : memref<4x128x1xf32, #tpu.memory_space<vmem>>, vector<1x128x1xf32>
      %79 = vector.shape_cast %78 : vector<1x128x1xf32> to vector<128x1xf32>
      %80 = vector.shape_cast %77 : vector<128x1xf32> to vector<1x128x1xf32>
      tpu.vector_store %arg16[%c1_43, %c0_44, %c0_45], %80 {strides = array<i32>} : memref<4x128x1xf32, #tpu.memory_space<vmem>>, vector<1x128x1xf32>,
      %c1_46 = arith.constant 1 : index
      %c0_47 = arith.constant 0 : index
      %c0_48 = arith.constant 0 : index
      %81 = vector.load %arg17[%c1_46, %c0_47, %c0_48] : memref<4x128x16xf32, #tpu.memory_space<vmem>>, vector<1x128x16xf32>
      %82 = vector.shape_cast %81 : vector<1x128x16xf32> to vector<128x16xf32>
      %83 = vector.broadcast %67 : vector<128x1xf32> to vector<128x16xf32>
      %84 = arith.mulf %83, %82 : vector<128x16xf32>
      %cst_49 = arith.constant dense<0.000000e+00> : vector<128x16xf32>
      %85 = tpu.matmul %71, %59, %cst_49 {dimension_numbers = #tpu.dot_dimension_numbers<[1], [0], [0], [1], [0, 0, 1, 1], [], []>} : vector<128x128xf32>, vector<128x16xf32>, vector<128x16xf32> -> vector<128x16xf32>
      %86 = arith.addf %84, %85 : vector<128x16xf32>
      %c1_50 = arith.constant 1 : index
      %c0_51 = arith.constant 0 : index
      %c0_52 = arith.constant 0 : index
      %87 = vector.load %arg17[%c1_50, %c0_51, %c0_52] : memref<4x128x16xf32, #tpu.memory_space<vmem>>, vector<1x128x16xf32>
      %88 = vector.shape_cast %87 : vector<1x128x16xf32> to vector<128x16xf32>
      %89 = vector.shape_cast %86 : vector<128x16xf32> to vector<1x128x16xf32>
      tpu.vector_store %arg17[%c1_50, %c0_51, %c0_52], %89 {strides = array<i32>} : memref<4x128x16xf32, #tpu.memory_space<vmem>>, vector<1x128x16xf32>,
      %c1_53 = arith.constant 1 : index
      %c0_54 = arith.constant 0 : index
      %c0_55 = arith.constant 0 : index
      %90 = vector.load %arg15[%c1_53, %c0_54, %c0_55] : memref<4x128x1xf32, #tpu.memory_space<vmem>>, vector<1x128x1xf32>
      %91 = vector.shape_cast %90 : vector<1x128x1xf32> to vector<128x1xf32>
      %92 = vector.shape_cast %65 : vector<128x1xf32> to vector<1x128x1xf32>
      tpu.vector_store %arg15[%c1_53, %c0_54, %c0_55], %92 {strides = array<i32>} : memref<4x128x1xf32, #tpu.memory_space<vmem>>, vector<1x128x1xf32>,
      %93 = vector.extract_strided_slice %20 {offsets = [0, 32], sizes = [128, 16], strides = [1, 1]} : vector<128x64xf32> to vector<128x16xf32>
      %94 = vector.extract_strided_slice %17 {offsets = [0, 32], sizes = [128, 16], strides = [1, 1]} : vector<128x128xf32> to vector<128x16xf32>
      %95 = vector.extract_strided_slice %17 {offsets = [0, 96], sizes = [128, 16], strides = [1, 1]} : vector<128x128xf32> to vector<128x16xf32>
      %cst_56 = arith.constant dense<0.000000e+00> : vector<128x128xf32>
      %96 = tpu.matmul %93, %94, %cst_56 {dimension_numbers = #tpu.dot_dimension_numbers<[1], [1], [0], [0], [0, 0, 1, 0], [], []>} : vector<128x16xf32>, vector<128x16xf32>, vector<128x128xf32> -> vector<128x128xf32>
      %c2 = arith.constant 2 : index
      %c0_57 = arith.constant 0 : index
      %c0_58 = arith.constant 0 : index
      %97 = vector.load %arg15[%c2, %c0_57, %c0_58] : memref<4x128x1xf32, #tpu.memory_space<vmem>>, vector<1x128x1xf32>
      %98 = vector.shape_cast %97 : vector<1x128x1xf32> to vector<128x1xf32>
      %cst_59 = arith.constant dense<0xFF800000> : vector<128xf32>
      %99 = vector.multi_reduction <maximumf>, %96, %cst_59 [1] : vector<128x128xf32> to vector<128xf32>
      %100 = vector.shape_cast %99 : vector<128xf32> to vector<128x1xf32>
      %101 = arith.maximumf %98, %100 : vector<128x1xf32>
      %102 = arith.subf %98, %101 : vector<128x1xf32>
      %103 = math.exp %102 : vector<128x1xf32>
      %104 = vector.broadcast %101 : vector<128x1xf32> to vector<128x128xf32>
      %105 = arith.subf %96, %104 : vector<128x128xf32>
      %106 = math.exp %105 : vector<128x128xf32>
      %107 = arith.mulf %106, %19 : vector<128x128xf32>
      %c2_60 = arith.constant 2 : index
      %c0_61 = arith.constant 0 : index
      %c0_62 = arith.constant 0 : index
      %108 = vector.load %arg16[%c2_60, %c0_61, %c0_62] : memref<4x128x1xf32, #tpu.memory_space<vmem>>, vector<1x128x1xf32>
      %109 = vector.shape_cast %108 : vector<1x128x1xf32> to vector<128x1xf32>
      %110 = arith.mulf %103, %109 : vector<128x1xf32>
      %cst_63 = arith.constant dense<0.000000e+00> : vector<128xf32>
      %111 = vector.multi_reduction <add>, %107, %cst_63 [1] : vector<128x128xf32> to vector<128xf32>
      %112 = vector.shape_cast %111 : vector<128xf32> to vector<128x1xf32>
      %113 = arith.addf %110, %112 : vector<128x1xf32>
      %c2_64 = arith.constant 2 : index
      %c0_65 = arith.constant 0 : index
      %c0_66 = arith.constant 0 : index
      %114 = vector.load %arg16[%c2_64, %c0_65, %c0_66] : memref<4x128x1xf32, #tpu.memory_space<vmem>>, vector<1x128x1xf32>
      %115 = vector.shape_cast %114 : vector<1x128x1xf32> to vector<128x1xf32>
      %116 = vector.shape_cast %113 : vector<128x1xf32> to vector<1x128x1xf32>
      tpu.vector_store %arg16[%c2_64, %c0_65, %c0_66], %116 {strides = array<i32>} : memref<4x128x1xf32, #tpu.memory_space<vmem>>, vector<1x128x1xf32>,
      %c2_67 = arith.constant 2 : index
      %c0_68 = arith.constant 0 : index
      %c0_69 = arith.constant 0 : index
      %117 = vector.load %arg17[%c2_67, %c0_68, %c0_69] : memref<4x128x16xf32, #tpu.memory_space<vmem>>, vector<1x128x16xf32>
      %118 = vector.shape_cast %117 : vector<1x128x16xf32> to vector<128x16xf32>
      %119 = vector.broadcast %103 : vector<128x1xf32> to vector<128x16xf32>
      %120 = arith.mulf %119, %118 : vector<128x16xf32>
      %cst_70 = arith.constant dense<0.000000e+00> : vector<128x16xf32>
      %121 = tpu.matmul %107, %95, %cst_70 {dimension_numbers = #tpu.dot_dimension_numbers<[1], [0], [0], [1], [0, 0, 1, 1], [], []>} : vector<128x128xf32>, vector<128x16xf32>, vector<128x16xf32> -> vector<128x16xf32>
      %122 = arith.addf %120, %121 : vector<128x16xf32>
      %c2_71 = arith.constant 2 : index
      %c0_72 = arith.constant 0 : index
      %c0_73 = arith.constant 0 : index
      %123 = vector.load %arg17[%c2_71, %c0_72, %c0_73] : memref<4x128x16xf32, #tpu.memory_space<vmem>>, vector<1x128x16xf32>
      %124 = vector.shape_cast %123 : vector<1x128x16xf32> to vector<128x16xf32>
      %125 = vector.shape_cast %122 : vector<128x16xf32> to vector<1x128x16xf32>
      tpu.vector_store %arg17[%c2_71, %c0_72, %c0_73], %125 {strides = array<i32>} : memref<4x128x16xf32, #tpu.memory_space<vmem>>, vector<1x128x16xf32>,
      %c2_74 = arith.constant 2 : index
      %c0_75 = arith.constant 0 : index
      %c0_76 = arith.constant 0 : index
      %126 = vector.load %arg15[%c2_74, %c0_75, %c0_76] : memref<4x128x1xf32, #tpu.memory_space<vmem>>, vector<1x128x1xf32>
      %127 = vector.shape_cast %126 : vector<1x128x1xf32> to vector<128x1xf32>
      %128 = vector.shape_cast %101 : vector<128x1xf32> to vector<1x128x1xf32>
      tpu.vector_store %arg15[%c2_74, %c0_75, %c0_76], %128 {strides = array<i32>} : memref<4x128x1xf32, #tpu.memory_space<vmem>>, vector<1x128x1xf32>,
      %129 = vector.extract_strided_slice %20 {offsets = [0, 48], sizes = [128, 16], strides = [1, 1]} : vector<128x64xf32> to vector<128x16xf32>
      %130 = vector.extract_strided_slice %17 {offsets = [0, 48], sizes = [128, 16], strides = [1, 1]} : vector<128x128xf32> to vector<128x16xf32>
      %131 = vector.extract_strided_slice %17 {offsets = [0, 112], sizes = [128, 16], strides = [1, 1]} : vector<128x128xf32> to vector<128x16xf32>
      %cst_77 = arith.constant dense<0.000000e+00> : vector<128x128xf32>
      %132 = tpu.matmul %129, %130, %cst_77 {dimension_numbers = #tpu.dot_dimension_numbers<[1], [1], [0], [0], [0, 0, 1, 0], [], []>} : vector<128x16xf32>, vector<128x16xf32>, vector<128x128xf32> -> vector<128x128xf32>
      %c3 = arith.constant 3 : index
      %c0_78 = arith.constant 0 : index
      %c0_79 = arith.constant 0 : index
      %133 = vector.load %arg15[%c3, %c0_78, %c0_79] : memref<4x128x1xf32, #tpu.memory_space<vmem>>, vector<1x128x1xf32>
      %134 = vector.shape_cast %133 : vector<1x128x1xf32> to vector<128x1xf32>
      %cst_80 = arith.constant dense<0xFF800000> : vector<128xf32>
      %135 = vector.multi_reduction <maximumf>, %132, %cst_80 [1] : vector<128x128xf32> to vector<128xf32>
      %136 = vector.shape_cast %135 : vector<128xf32> to vector<128x1xf32>
      %137 = arith.maximumf %134, %136 : vector<128x1xf32>
      %138 = arith.subf %134, %137 : vector<128x1xf32>
      %139 = math.exp %138 : vector<128x1xf32>
      %140 = vector.broadcast %137 : vector<128x1xf32> to vector<128x128xf32>
      %141 = arith.subf %132, %140 : vector<128x128xf32>
      %142 = math.exp %141 : vector<128x128xf32>
      %143 = arith.mulf %142, %19 : vector<128x128xf32>
      %c3_81 = arith.constant 3 : index
      %c0_82 = arith.constant 0 : index
      %c0_83 = arith.constant 0 : index
      %144 = vector.load %arg16[%c3_81, %c0_82, %c0_83] : memref<4x128x1xf32, #tpu.memory_space<vmem>>, vector<1x128x1xf32>
      %145 = vector.shape_cast %144 : vector<1x128x1xf32> to vector<128x1xf32>
      %146 = arith.mulf %139, %145 : vector<128x1xf32>
      %cst_84 = arith.constant dense<0.000000e+00> : vector<128xf32>
      %147 = vector.multi_reduction <add>, %143, %cst_84 [1] : vector<128x128xf32> to vector<128xf32>
      %148 = vector.shape_cast %147 : vector<128xf32> to vector<128x1xf32>
      %149 = arith.addf %146, %148 : vector<128x1xf32>
      %c3_85 = arith.constant 3 : index
      %c0_86 = arith.constant 0 : index
      %c0_87 = arith.constant 0 : index
      %150 = vector.load %arg16[%c3_85, %c0_86, %c0_87] : memref<4x128x1xf32, #tpu.memory_space<vmem>>, vector<1x128x1xf32>
      %151 = vector.shape_cast %150 : vector<1x128x1xf32> to vector<128x1xf32>
      %152 = vector.shape_cast %149 : vector<128x1xf32> to vector<1x128x1xf32>
      tpu.vector_store %arg16[%c3_85, %c0_86, %c0_87], %152 {strides = array<i32>} : memref<4x128x1xf32, #tpu.memory_space<vmem>>, vector<1x128x1xf32>,
      %c3_88 = arith.constant 3 : index
      %c0_89 = arith.constant 0 : index
      %c0_90 = arith.constant 0 : index
      %153 = vector.load %arg17[%c3_88, %c0_89, %c0_90] : memref<4x128x16xf32, #tpu.memory_space<vmem>>, vector<1x128x16xf32>
      %154 = vector.shape_cast %153 : vector<1x128x16xf32> to vector<128x16xf32>
      %155 = vector.broadcast %139 : vector<128x1xf32> to vector<128x16xf32>
      %156 = arith.mulf %155, %154 : vector<128x16xf32>
      %cst_91 = arith.constant dense<0.000000e+00> : vector<128x16xf32>
      %157 = tpu.matmul %143, %131, %cst_91 {dimension_numbers = #tpu.dot_dimension_numbers<[1], [0], [0], [1], [0, 0, 1, 1], [], []>} : vector<128x128xf32>, vector<128x16xf32>, vector<128x16xf32> -> vector<128x16xf32>
      %158 = arith.addf %156, %157 : vector<128x16xf32>
      %c3_92 = arith.constant 3 : index
      %c0_93 = arith.constant 0 : index
      %c0_94 = arith.constant 0 : index
      %159 = vector.load %arg17[%c3_92, %c0_93, %c0_94] : memref<4x128x16xf32, #tpu.memory_space<vmem>>, vector<1x128x16xf32>
      %160 = vector.shape_cast %159 : vector<1x128x16xf32> to vector<128x16xf32>
      %161 = vector.shape_cast %158 : vector<128x16xf32> to vector<1x128x16xf32>
      tpu.vector_store %arg17[%c3_92, %c0_93, %c0_94], %161 {strides = array<i32>} : memref<4x128x16xf32, #tpu.memory_space<vmem>>, vector<1x128x16xf32>,
      %c3_95 = arith.constant 3 : index
      %c0_96 = arith.constant 0 : index
      %c0_97 = arith.constant 0 : index
      %162 = vector.load %arg15[%c3_95, %c0_96, %c0_97] : memref<4x128x1xf32, #tpu.memory_space<vmem>>, vector<1x128x1xf32>
      %163 = vector.shape_cast %162 : vector<1x128x1xf32> to vector<128x1xf32>
      %164 = vector.shape_cast %137 : vector<128x1xf32> to vector<1x128x1xf32>
      tpu.vector_store %arg15[%c3_95, %c0_96, %c0_97], %164 {strides = array<i32>} : memref<4x128x1xf32, #tpu.memory_space<vmem>>, vector<1x128x1xf32>,
    } else {
    }
    %c1_i32 = arith.constant 1 : i32
    %9 = arith.cmpi eq, %arg1, %c1_i32 : i32
    %10 = arith.extui %9 : i1 to i32
    %c0_i32_3 = arith.constant 0 : i32
    %11 = arith.cmpi ne, %10, %c0_i32_3 : i32
    scf.if %11 {
      %c0 = arith.constant 0 : index
      %c0_4 = arith.constant 0 : index
      %12 = vector.load %arg14[%c0, %c0_4] : memref<128x64xf32, #tpu.memory_space<vmem>>, vector<128x64xf32>
      %c0_5 = arith.constant 0 : index
      %c0_6 = arith.constant 0 : index
      %c0_7 = arith.constant 0 : index
      %13 = vector.load %arg16[%c0_5, %c0_6, %c0_7] : memref<4x128x1xf32, #tpu.memory_space<vmem>>, vector<1x128x1xf32>
      %14 = vector.shape_cast %13 : vector<1x128x1xf32> to vector<128x1xf32>
      %cst = arith.constant 1.000000e-16 : f32
      %15 = vector.broadcast %cst : f32 to vector<128x1xf32>
      %16 = arith.maximumf %14, %15 : vector<128x1xf32>
      %17 = tpu.reciprocal %16 {approx = true} : vector<128x1xf32> -> vector<128x1xf32>
      %c0_8 = arith.constant 0 : index
      %c0_9 = arith.constant 0 : index
      %c0_10 = arith.constant 0 : index
      %18 = vector.load %arg17[%c0_8, %c0_9, %c0_10] : memref<4x128x16xf32, #tpu.memory_space<vmem>>, vector<1x128x16xf32>
      %19 = vector.shape_cast %18 : vector<1x128x16xf32> to vector<128x16xf32>
      %20 = vector.broadcast %17 : vector<128x1xf32> to vector<128x16xf32>
      %21 = arith.mulf %19, %20 : vector<128x16xf32>
      %c1 = arith.constant 1 : index
      %c0_11 = arith.constant 0 : index
      %c0_12 = arith.constant 0 : index
      %22 = vector.load %arg16[%c1, %c0_11, %c0_12] : memref<4x128x1xf32, #tpu.memory_space<vmem>>, vector<1x128x1xf32>
      %23 = vector.shape_cast %22 : vector<1x128x1xf32> to vector<128x1xf32>
      %cst_13 = arith.constant 1.000000e-16 : f32
      %24 = vector.broadcast %cst_13 : f32 to vector<128x1xf32>
      %25 = arith.maximumf %23, %24 : vector<128x1xf32>
      %26 = tpu.reciprocal %25 {approx = true} : vector<128x1xf32> -> vector<128x1xf32>
      %c1_14 = arith.constant 1 : index
      %c0_15 = arith.constant 0 : index
      %c0_16 = arith.constant 0 : index
      %27 = vector.load %arg17[%c1_14, %c0_15, %c0_16] : memref<4x128x16xf32, #tpu.memory_space<vmem>>, vector<1x128x16xf32>
      %28 = vector.shape_cast %27 : vector<1x128x16xf32> to vector<128x16xf32>
      %29 = vector.broadcast %26 : vector<128x1xf32> to vector<128x16xf32>
      %30 = arith.mulf %28, %29 : vector<128x16xf32>
      %c2 = arith.constant 2 : index
      %c0_17 = arith.constant 0 : index
      %c0_18 = arith.constant 0 : index
      %31 = vector.load %arg16[%c2, %c0_17, %c0_18] : memref<4x128x1xf32, #tpu.memory_space<vmem>>, vector<1x128x1xf32>
      %32 = vector.shape_cast %31 : vector<1x128x1xf32> to vector<128x1xf32>
      %cst_19 = arith.constant 1.000000e-16 : f32
      %33 = vector.broadcast %cst_19 : f32 to vector<128x1xf32>
      %34 = arith.maximumf %32, %33 : vector<128x1xf32>
      %35 = tpu.reciprocal %34 {approx = true} : vector<128x1xf32> -> vector<128x1xf32>
      %c2_20 = arith.constant 2 : index
      %c0_21 = arith.constant 0 : index
      %c0_22 = arith.constant 0 : index
      %36 = vector.load %arg17[%c2_20, %c0_21, %c0_22] : memref<4x128x16xf32, #tpu.memory_space<vmem>>, vector<1x128x16xf32>
      %37 = vector.shape_cast %36 : vector<1x128x16xf32> to vector<128x16xf32>
      %38 = vector.broadcast %35 : vector<128x1xf32> to vector<128x16xf32>
      %39 = arith.mulf %37, %38 : vector<128x16xf32>
      %c3 = arith.constant 3 : index
      %c0_23 = arith.constant 0 : index
      %c0_24 = arith.constant 0 : index
      %40 = vector.load %arg16[%c3, %c0_23, %c0_24] : memref<4x128x1xf32, #tpu.memory_space<vmem>>, vector<1x128x1xf32>
      %41 = vector.shape_cast %40 : vector<1x128x1xf32> to vector<128x1xf32>
      %cst_25 = arith.constant 1.000000e-16 : f32
      %42 = vector.broadcast %cst_25 : f32 to vector<128x1xf32>
      %43 = arith.maximumf %41, %42 : vector<128x1xf32>
      %44 = tpu.reciprocal %43 {approx = true} : vector<128x1xf32> -> vector<128x1xf32>
      %c3_26 = arith.constant 3 : index
      %c0_27 = arith.constant 0 : index
      %c0_28 = arith.constant 0 : index
      %45 = vector.load %arg17[%c3_26, %c0_27, %c0_28] : memref<4x128x16xf32, #tpu.memory_space<vmem>>, vector<1x128x16xf32>
      %46 = vector.shape_cast %45 : vector<1x128x16xf32> to vector<128x16xf32>
      %47 = vector.broadcast %44 : vector<128x1xf32> to vector<128x16xf32>
      %48 = arith.mulf %46, %47 : vector<128x16xf32>
      %49 = tpu.concatenate %21, %30, %39, %48 in 1 : vector<128x16xf32>, vector<128x16xf32>, vector<128x16xf32>, vector<128x16xf32> -> vector<128x64xf32>
      %c0_29 = arith.constant 0 : index
      %c0_30 = arith.constant 0 : index
      %50 = vector.load %arg10[%c0_29, %c0_30] : memref<64x1xf32, #tpu.memory_space<vmem>>, vector<64x1xf32>
      %cst_31 = arith.constant dense<0.000000e+00> : vector<128x1xf32>
      %51 = tpu.matmul %49, %50, %cst_31 {dimension_numbers = #tpu.dot_dimension_numbers<[1], [0], [0], [1], [0, 0, 1, 1], [], []>} : vector<128x64xf32>, vector<64x1xf32>, vector<128x1xf32> -> vector<128x1xf32>
      %c0_32 = arith.constant 0 : index
      %c0_33 = arith.constant 0 : index
      %52 = vector.load %arg11[%c0_32, %c0_33] : memref<64x1xf32, #tpu.memory_space<vmem>>, vector<64x1xf32>
      %cst_34 = arith.constant dense<0.000000e+00> : vector<128x1xf32>
      %53 = tpu.matmul %12, %52, %cst_34 {dimension_numbers = #tpu.dot_dimension_numbers<[1], [0], [0], [1], [0, 0, 1, 1], [], []>} : vector<128x64xf32>, vector<64x1xf32>, vector<128x1xf32> -> vector<128x1xf32>
      %54 = arith.addf %51, %53 : vector<128x1xf32>
      %55 = arith.negf %54 : vector<128x1xf32>
      %56 = math.exp %55 : vector<128x1xf32>
      %cst_35 = arith.constant 1.000000e+00 : f32
      %57 = vector.broadcast %cst_35 : f32 to vector<128x1xf32>
      %58 = arith.addf %57, %56 : vector<128x1xf32>
      %59 = arith.divf %57, %58 : vector<128x1xf32>
      %60 = vector.broadcast %59 : vector<128x1xf32> to vector<128x64xf32>
      %61 = arith.mulf %60, %12 : vector<128x64xf32>
      %cst_36 = arith.constant 1.000000e+00 : f32
      %62 = vector.broadcast %cst_36 : f32 to vector<128x1xf32>
      %63 = arith.subf %62, %59 : vector<128x1xf32>
      %64 = vector.broadcast %63 : vector<128x1xf32> to vector<128x64xf32>
      %65 = arith.mulf %64, %49 : vector<128x64xf32>
      %66 = arith.addf %61, %65 : vector<128x64xf32>
      %c0_37 = arith.constant 0 : index
      %c0_38 = arith.constant 0 : index
      %67 = vector.load %arg12[%c0_37, %c0_38] : memref<128x64xf32, #tpu.memory_space<vmem>>, vector<128x64xf32>
      tpu.vector_store %arg12[%c0_37, %c0_38], %66 {strides = array<i32>} : memref<128x64xf32, #tpu.memory_space<vmem>>, vector<128x64xf32>,
    } else {
    }
    return
  }
  func.func @transform_0(%arg0: i32, %arg1: i32, %arg2: memref<2x2xi32, #tpu.memory_space<smem>>) -> (i32, i32) {
    %c0_i32 = arith.constant 0 : i32
    %c0_i32_0 = arith.constant 0 : i32
    return %arg0, %c0_i32 : i32, i32
  }
  func.func @transform_1(%arg0: i32, %arg1: i32, %arg2: memref<2x2xi32, #tpu.memory_space<smem>>) -> (i32, i32) {
    %c0_i32 = arith.constant 0 : i32
    %c0_i32_0 = arith.constant 0 : i32
    return %arg1, %c0_i32 : i32, i32
  }
  func.func @transform_2(%arg0: i32, %arg1: i32, %arg2: memref<2x2xi32, #tpu.memory_space<smem>>) -> (i32, i32) {
    %c0_i32 = arith.constant 0 : i32
    return %arg0, %arg1 : i32, i32
  }
  func.func @transform_3(%arg0: i32, %arg1: i32, %arg2: memref<2x2xi32, #tpu.memory_space<smem>>) -> (i32, i32) {
    %c0_i32 = arith.constant 0 : i32
    %c0_i32_0 = arith.constant 0 : i32
    %c0_i32_1 = arith.constant 0 : i32
    return %c0_i32, %c0_i32_0 : i32, i32
  }
  func.func @transform_4(%arg0: i32, %arg1: i32, %arg2: memref<2x2xi32, #tpu.memory_space<smem>>) -> (i32, i32) {
    %c0_i32 = arith.constant 0 : i32
    %c0_i32_0 = arith.constant 0 : i32
    %c0_i32_1 = arith.constant 0 : i32
    return %c0_i32, %c0_i32_0 : i32, i32
  }
  func.func @transform_5(%arg0: i32, %arg1: i32, %arg2: memref<2x2xi32, #tpu.memory_space<smem>>) -> (i32, i32) {
    %c0_i32 = arith.constant 0 : i32
    %c0_i32_0 = arith.constant 0 : i32
    %c0_i32_1 = arith.constant 0 : i32
    return %c0_i32, %c0_i32_0 : i32, i32
  }
  func.func @transform_6(%arg0: i32, %arg1: i32, %arg2: memref<2x2xi32, #tpu.memory_space<smem>>) -> (i32, i32) {
    %c0_i32 = arith.constant 0 : i32
    %c0_i32_0 = arith.constant 0 : i32
    %c0_i32_1 = arith.constant 0 : i32
    return %c0_i32, %c0_i32_0 : i32, i32
  }
  func.func @transform_7(%arg0: i32, %arg1: i32, %arg2: memref<2x2xi32, #tpu.memory_space<smem>>) -> (i32, i32) {
    %c0_i32 = arith.constant 0 : i32
    %c0_i32_0 = arith.constant 0 : i32
    %c0_i32_1 = arith.constant 0 : i32
    return %c0_i32, %c0_i32_0 : i32, i32
  }
  func.func @transform_8(%arg0: i32, %arg1: i32, %arg2: memref<2x2xi32, #tpu.memory_space<smem>>) -> (i32, i32) {
    %c0_i32 = arith.constant 0 : i32
    %c0_i32_0 = arith.constant 0 : i32
    %c0_i32_1 = arith.constant 0 : i32
    return %c0_i32, %c0_i32_0 : i32, i32
  }
  func.func @transform_9(%arg0: i32, %arg1: i32, %arg2: memref<2x2xi32, #tpu.memory_space<smem>>) -> (i32, i32) {
    %c0_i32 = arith.constant 0 : i32
    %c0_i32_0 = arith.constant 0 : i32
    return %arg0, %c0_i32 : i32, i32
  }
}

</mosaic_0001>

<llo_original>
// kernel: tpu_custom_call.1
$region0: #{tpu_custom_call.1}
  #allocation0 [shape = 'u32[]', space=smem, size = 0x4, offset = 0x4, fixed_abs, tag = 'smem constant byte address 0x4 - core index']
  #allocation1 [shape = 'u32[72,128]{1,0:T(1,128)}', space=vmem, size = 0x9000, scoped, tag = 'internal scratch']
  #allocation2 [shape = 'f32[128,64]{1,0:T(8,128)}', space=vmem, size = 0x10000, scoped, tag = 'scratch operand']
  #allocation3 [shape = 'f32[128,64]{1,0:T(8,128)}', space=vmem, size = 0x10000, scoped, tag = 'scratch operand']
  #allocation4 [shape = 'f32[4,128,1]{2,1,0:T(8,128)}', space=vmem, size = 0x40000, scoped, tag = 'scratch operand']
  #allocation5 [shape = 'f32[4,128,1]{2,1,0:T(8,128)}', space=vmem, size = 0x40000, scoped, tag = 'scratch operand']
  #allocation6 [shape = 'f32[4,128,16]{2,1,0:T(8,128)}', space=vmem, size = 0x40000, scoped, tag = 'scratch operand']
  #allocation7 [shape = 's32[1]{0}', space=sflag, size = 0x4, scoped, tag = 'scoped memory for tpu_custom_call.1']
  #allocation8 [shape = 'u8[1024]{0}', space=smem, size = 0x400, scoped, tag = 'prefetched SMEM operand 0']
  %s0 = inlined_call_operand.vmem [shape: s32[2,2], index: 0, kind: input, shape index: {}]
  %s1 = inlined_call_operand.vmem [shape: f32[256,32], index: 1, kind: input, shape index: {}]
  %s2 = inlined_call_operand.vmem [shape: f32[256,32], index: 2, kind: input, shape index: {}]
  %s3 = inlined_call_operand.vmem [shape: bf16[256,256], index: 3, kind: input, shape index: {}]
  %s4 = inlined_call_operand.vmem [shape: f32[32,128], index: 4, kind: input, shape index: {}]
  %s5 = inlined_call_operand.vmem [shape: f32[1,128], index: 5, kind: input, shape index: {}]
  %s6 = inlined_call_operand.vmem [shape: f32[32,128], index: 6, kind: input, shape index: {}]
  %s7 = inlined_call_operand.vmem [shape: f32[1,128], index: 7, kind: input, shape index: {}]
  %s8 = inlined_call_operand.vmem [shape: f32[64,1], index: 8, kind: input, shape index: {}]
  %s9 = inlined_call_operand.vmem [shape: f32[64,1], index: 9, kind: input, shape index: {}]
  %s10 = inlined_call_operand.vmem [shape: f32[256,64], index: 10, kind: output, shape index: {}]
  %s11 = sld [smem:[#allocation0]]
  $region122: #{tpu_custom_call.1} parent=0
    _
  %s13 = ssub.s32 1, %s11
  %s14 = scalar_select 0, %s13, %s11
  %s16 = sshll.u32 %s0, 4
  %s17 = int_to_ptr.vmem [resolvable:$true] %s16
  %19 = dma.vmem_to_smem %s17, 32, [#allocation8], [#allocation7]
  %21 = dma.done [#allocation7], 32
  %22 = sfence
  $region1: #{tpu_custom_call.1} parent=0
    #allocation9 [shape = 'u8[65536]{0}', space=vmem, size = 0x10000, scoped, tag = 'input window, operand 3']
    loop: start=0, step=1, limit=6
    $region2: #{tpu_custom_call.1} parent=1 // loop_pre_header
      _
    $region3: #{tpu_custom_call.1} parent=1 // loop_header
      %s24 = sphi 0, %s28
      %p25 = scmp.ge.s32.totalorder %s24, 6
      %s31 = sphi 0, %s43
      %s32 = sphi 0, %s39
      %s33 = sphi 0, %s31
      %s34 = sphi 0, %s32
      %s35 = sphi 0, %s33
      %s36 = sphi 0, %s34
      %s46 = sphi 0, %s48
      %s49 = sphi 0, %s46
      %s50 = sphi 0, %s49
      %s66 = sphi 0, %s50
      %s72 = sphi 0, %s74
      %s75 = sphi 0, %s72
      %s76 = sphi 0, %s75
      %s92 = sphi 0, %s76
      %s100 = sphi 0, %s102
      %s103 = sphi 0, %s100
      %s104 = sphi 0, %s103
      %s120 = sphi 0, %s104
      %s124 = sphi 0, %s124
      %s126 = sphi 0, %s124
      %s127 = sphi 0, %s126
      %s141 = sphi 0, %s127
      %s145 = sphi 0, %s145
      %s147 = sphi 0, %s145
      %s148 = sphi 0, %s147
      %s162 = sphi 0, %s148
      %s166 = sphi 0, %s166
      %s168 = sphi 0, %s166
      %s169 = sphi 0, %s168
      %s183 = sphi 0, %s169
      %s187 = sphi 0, %s187
      %s189 = sphi 0, %s187
      %s190 = sphi 0, %s189
      %s204 = sphi 0, %s190
      %s208 = sphi 0, %s208
      %s210 = sphi 0, %s208
      %s211 = sphi 0, %s210
      %s225 = sphi 0, %s211
      %s229 = sphi 0, %s229
      %s231 = sphi 0, %s229
      %s232 = sphi 0, %s231
      %s246 = sphi 0, %s232
      %s252 = sphi 0, %s254
      %s255 = sphi 0, %s252
      %s256 = sphi 0, %s255
      %s272 = sphi 0, %s256
    $region4: #{tpu_custom_call.1} parent=1 // loop_header_branch
      %27 = sbr.rel (%p25) target = $region8
    $region5: #{tpu_custom_call.1} parent=1 // loop_body
      %s29 = ssub.s32 %s24, 1
      %s30 = ssub.s32 %s24, 2
      %s37 = sadd.s32 1, %s32
      %p38 = scmp.ge.s32.totalorder %s37, 2
      %s39 = scalar_select %p38, 0, %s37
      %s40 = sadd.s32 1, %s31
      %s41 = scalar_select %p38, %s40, %s31
      %p42 = scmp.ge.s32.totalorder %s41, 2
      %s43 = scalar_select %p42, 0, %s41
      %s44 = ssub.s32 %s31, %s43
      %p45 = scmp.eq.s32.totalorder %s44, 0
      %s47 = sadd.s32 %s46, 1
      %s48 = scalar_select %p45, %s46, %s47
      %p51 = pneg %p45
      %p52 = scmp.eq.s32.totalorder %s24, 3
      %p53 = por %p51, %p52
      %p54 = scmp.ne.s32.totalorder %s46, %s49
      %p55 = scmp.eq.s32.totalorder %s24, 0
      %p56 = por %p54, %p55
      %p57 = scmp.ne.s32.totalorder %s46, %s49
      %p58 = scmp.eq.s32.totalorder %s29, 3
      %p59 = por %p57, %p58
      %p60 = scmp.ne.s32.totalorder %s49, %s50
      %p61 = scmp.eq.s32.totalorder %s29, 0
      %p62 = por %p60, %p61
      %p63 = scmp.ne.s32.totalorder %s49, %s50
      %p64 = scmp.eq.s32.totalorder %s30, 3
      %p65 = por %p63, %p64
      %p67 = scmp.ne.s32.totalorder %s50, %s66
      %p68 = scmp.eq.s32.totalorder %s30, 0
      %p69 = por %p67, %p68
      %s70 = ssub.s32 %s32, %s39
      %p71 = scmp.eq.s32.totalorder %s70, 0
      %s73 = sadd.s32 %s72, 1
      %s74 = scalar_select %p71, %s72, %s73
      %p77 = pneg %p71
      %p78 = scmp.eq.s32.totalorder %s24, 3
      %p79 = por %p77, %p78
      %p80 = scmp.ne.s32.totalorder %s72, %s75
      %p81 = scmp.eq.s32.totalorder %s24, 0
      %p82 = por %p80, %p81
      %p83 = scmp.ne.s32.totalorder %s72, %s75
      %p84 = scmp.eq.s32.totalorder %s29, 3
      %p85 = por %p83, %p84
      %p86 = scmp.ne.s32.totalorder %s75, %s76
      %p87 = scmp.eq.s32.totalorder %s29, 0
      %p88 = por %p86, %p87
      %p89 = scmp.ne.s32.totalorder %s75, %s76
      %p90 = scmp.eq.s32.totalorder %s30, 3
      %p91 = por %p89, %p90
      %p93 = scmp.ne.s32.totalorder %s76, %s92
      %p94 = scmp.eq.s32.totalorder %s30, 0
      %p95 = por %p93, %p94
      %s96 = ssub.s32 %s31, %s43
      %s97 = ssub.s32 %s32, %s39
      %s98 = sor.u32 %s96, %s97
      %p99 = scmp.eq.s32.totalorder %s98, 0
      %s101 = sadd.s32 %s100, 1
      %s102 = scalar_select %p99, %s100, %s101
      %p105 = pneg %p99
      %p106 = scmp.eq.s32.totalorder %s24, 3
      %p107 = por %p105, %p106
      %p108 = scmp.ne.s32.totalorder %s100, %s103
      %p109 = scmp.eq.s32.totalorder %s24, 0
      %p110 = por %p108, %p109
      %p111 = scmp.ne.s32.totalorder %s100, %s103
      %p112 = scmp.eq.s32.totalorder %s29, 3
      %p113 = por %p111, %p112
      %p114 = scmp.ne.s32.totalorder %s103, %s104
      %p115 = scmp.eq.s32.totalorder %s29, 0
      %p116 = por %p114, %p115
      %p117 = scmp.ne.s32.totalorder %s103, %s104
      %p118 = scmp.eq.s32.totalorder %s30, 3
      %p119 = por %p117, %p118
      %p121 = scmp.ne.s32.totalorder %s104, %s120
      %p122 = scmp.eq.s32.totalorder %s30, 0
      %p123 = por %p121, %p122
      %s125 = sadd.s32 %s124, 1
      %p128 = scmp.eq.s32.totalorder %s24, 3
      %p129 = scmp.ne.s32.totalorder %s124, %s126
      %p130 = scmp.eq.s32.totalorder %s24, 0
      %p131 = por %p129, %p130
      %p132 = scmp.ne.s32.totalorder %s124, %s126
      %p133 = scmp.eq.s32.totalorder %s29, 3
      %p134 = por %p132, %p133
      %p135 = scmp.ne.s32.totalorder %s126, %s127
      %p136 = scmp.eq.s32.totalorder %s29, 0
      %p137 = por %p135, %p136
      %p138 = scmp.ne.s32.totalorder %s126, %s127
      %p139 = scmp.eq.s32.totalorder %s30, 3
      %p140 = por %p138, %p139
      %p142 = scmp.ne.s32.totalorder %s127, %s141
      %p143 = scmp.eq.s32.totalorder %s30, 0
      %p144 = por %p142, %p143
      %s146 = sadd.s32 %s145, 1
      %p149 = scmp.eq.s32.totalorder %s24, 3
      %p150 = scmp.ne.s32.totalorder %s145, %s147
      %p151 = scmp.eq.s32.totalorder %s24, 0
      %p152 = por %p150, %p151
      %p153 = scmp.ne.s32.totalorder %s145, %s147
      %p154 = scmp.eq.s32.totalorder %s29, 3
      %p155 = por %p153, %p154
      %p156 = scmp.ne.s32.totalorder %s147, %s148
      %p157 = scmp.eq.s32.totalorder %s29, 0
      %p158 = por %p156, %p157
      %p159 = scmp.ne.s32.totalorder %s147, %s148
      %p160 = scmp.eq.s32.totalorder %s30, 3
      %p161 = por %p159, %p160
      %p163 = scmp.ne.s32.totalorder %s148, %s162
      %p164 = scmp.eq.s32.totalorder %s30, 0
      %p165 = por %p163, %p164
      %s167 = sadd.s32 %s166, 1
      %p170 = scmp.eq.s32.totalorder %s24, 3
      %p171 = scmp.ne.s32.totalorder %s166, %s168
      %p172 = scmp.eq.s32.totalorder %s24, 0
      %p173 = por %p171, %p172
      %p174 = scmp.ne.s32.totalorder %s166, %s168
      %p175 = scmp.eq.s32.totalorder %s29, 3
      %p176 = por %p174, %p175
      %p177 = scmp.ne.s32.totalorder %s168, %s169
      %p178 = scmp.eq.s32.totalorder %s29, 0
      %p179 = por %p177, %p178
      %p180 = scmp.ne.s32.totalorder %s168, %s169
      %p181 = scmp.eq.s32.totalorder %s30, 3
      %p182 = por %p180, %p181
      %p184 = scmp.ne.s32.totalorder %s169, %s183
      %p185 = scmp.eq.s32.totalorder %s30, 0
      %p186 = por %p184, %p185
      %s188 = sadd.s32 %s187, 1
      %p191 = scmp.eq.s32.totalorder %s24, 3
      %p192 = scmp.ne.s32.totalorder %s187, %s189
      %p193 = scmp.eq.s32.totalorder %s24, 0
      %p194 = por %p192, %p193
      %p195 = scmp.ne.s32.totalorder %s187, %s189
      %p196 = scmp.eq.s32.totalorder %s29, 3
      %p197 = por %p195, %p196
      %p198 = scmp.ne.s32.totalorder %s189, %s190
      %p199 = scmp.eq.s32.totalorder %s29, 0
      %p200 = por %p198, %p199
      %p201 = scmp.ne.s32.totalorder %s189, %s190
      %p202 = scmp.eq.s32.totalorder %s30, 3
      %p203 = por %p201, %p202
      %p205 = scmp.ne.s32.totalorder %s190, %s204
      %p206 = scmp.eq.s32.totalorder %s30, 0
      %p207 = por %p205, %p206
      %s209 = sadd.s32 %s208, 1
      %p212 = scmp.eq.s32.totalorder %s24, 3
      %p213 = scmp.ne.s32.totalorder %s208, %s210
      %p214 = scmp.eq.s32.totalorder %s24, 0
      %p215 = por %p213, %p214
      %p216 = scmp.ne.s32.totalorder %s208, %s210
      %p217 = scmp.eq.s32.totalorder %s29, 3
      %p218 = por %p216, %p217
      %p219 = scmp.ne.s32.totalorder %s210, %s211
      %p220 = scmp.eq.s32.totalorder %s29, 0
      %p221 = por %p219, %p220
      %p222 = scmp.ne.s32.totalorder %s210, %s211
      %p223 = scmp.eq.s32.totalorder %s30, 3
      %p224 = por %p222, %p223
      %p226 = scmp.ne.s32.totalorder %s211, %s225
      %p227 = scmp.eq.s32.totalorder %s30, 0
      %p228 = por %p226, %p227
      %s230 = sadd.s32 %s229, 1
      %p233 = scmp.eq.s32.totalorder %s24, 3
      %p234 = scmp.ne.s32.totalorder %s229, %s231
      %p235 = scmp.eq.s32.totalorder %s24, 0
      %p236 = por %p234, %p235
      %p237 = scmp.ne.s32.totalorder %s229, %s231
      %p238 = scmp.eq.s32.totalorder %s29, 3
      %p239 = por %p237, %p238
      %p240 = scmp.ne.s32.totalorder %s231, %s232
      %p241 = scmp.eq.s32.totalorder %s29, 0
      %p242 = por %p240, %p241
      %p243 = scmp.ne.s32.totalorder %s231, %s232
      %p244 = scmp.eq.s32.totalorder %s30, 3
      %p245 = por %p243, %p244
      %p247 = scmp.ne.s32.totalorder %s232, %s246
      %p248 = scmp.eq.s32.totalorder %s30, 0
      %p249 = por %p247, %p248
      %s250 = ssub.s32 %s31, %s43
      %p251 = scmp.eq.s32.totalorder %s250, 0
      %s253 = sadd.s32 %s252, 1
      %s254 = scalar_select %p251, %s252, %s253
      %p257 = pneg %p251
      %p258 = scmp.eq.s32.totalorder %s24, 3
      %p259 = por %p257, %p258
      %p260 = scmp.ne.s32.totalorder %s252, %s255
      %p261 = scmp.eq.s32.totalorder %s24, 0
      %p262 = por %p260, %p261
      %p263 = scmp.ne.s32.totalorder %s252, %s255
      %p264 = scmp.eq.s32.totalorder %s29, 3
      %p265 = por %p263, %p264
      %p266 = scmp.ne.s32.totalorder %s255, %s256
      %p267 = scmp.eq.s32.totalorder %s29, 0
      %p268 = por %p266, %p267
      %p269 = scmp.ne.s32.totalorder %s255, %s256
      %p270 = scmp.eq.s32.totalorder %s30, 3
      %p271 = por %p269, %p270
      %p273 = scmp.ne.s32.totalorder %s256, %s272
      %p274 = scmp.eq.s32.totalorder %s30, 0
      %p275 = por %p273, %p274
      %p276 = scmp.le.s32.totalorder 1, %s24
      %p277 = scmp.lt.s32.totalorder %s24, 5
      %p278 = pnand %p276, %p277
      %p279 = pneg %p278
      // Predicated region
      $region9: #{tpu_custom_call.1} parent=5 // pred_check
        _
      $region10: #{tpu_custom_call.1} parent=5 // pred_check_branch
        %281 = sbr.rel (%p278) target = $region12
      $region11: #{tpu_custom_call.1} parent=5 // pred_region
        %s282 = ssub.s32 %s24, 1
        // Predicated region
        $region13: #{tpu_custom_call.1} parent=11 // pred_check
          %p283 = pneg %p137
        $region14: #{tpu_custom_call.1} parent=11 // pred_check_branch
          %285 = sbr.rel (%p283) target = $region16
        $region15: #{tpu_custom_call.1} parent=11 // pred_region
          _
        $region16: #{tpu_custom_call.1} parent=11 // pred_fallthru
          _
        // Predicated region
        $region17: #{tpu_custom_call.1} parent=11 // pred_check
          %p286 = pneg %p158
        $region18: #{tpu_custom_call.1} parent=11 // pred_check_branch
          %288 = sbr.rel (%p286) target = $region20
        $region19: #{tpu_custom_call.1} parent=11 // pred_region
          _
        $region20: #{tpu_custom_call.1} parent=11 // pred_fallthru
          _
        // Predicated region
        $region21: #{tpu_custom_call.1} parent=11 // pred_check
          %p289 = pneg %p179
        $region22: #{tpu_custom_call.1} parent=11 // pred_check_branch
          %291 = sbr.rel (%p289) target = $region24
        $region23: #{tpu_custom_call.1} parent=11 // pred_region
          _
        $region24: #{tpu_custom_call.1} parent=11 // pred_fallthru
          _
        // Predicated region
        $region25: #{tpu_custom_call.1} parent=11 // pred_check
          %p292 = pneg %p200
        $region26: #{tpu_custom_call.1} parent=11 // pred_check_branch
          %294 = sbr.rel (%p292) target = $region28
        $region27: #{tpu_custom_call.1} parent=11 // pred_region
          _
        $region28: #{tpu_custom_call.1} parent=11 // pred_fallthru
          _
        // Predicated region
        $region29: #{tpu_custom_call.1} parent=11 // pred_check
          %p295 = pneg %p221
        $region30: #{tpu_custom_call.1} parent=11 // pred_check_branch
          %297 = sbr.rel (%p295) target = $region32
        $region31: #{tpu_custom_call.1} parent=11 // pred_region
          _
        $region32: #{tpu_custom_call.1} parent=11 // pred_fallthru
          _
        // Predicated region
        $region33: #{tpu_custom_call.1} parent=11 // pred_check
          %p298 = pneg %p242
        $region34: #{tpu_custom_call.1} parent=11 // pred_check_branch
          %300 = sbr.rel (%p298) target = $region36
        $region35: #{tpu_custom_call.1} parent=11 // pred_region
          _
        $region36: #{tpu_custom_call.1} parent=11 // pred_fallthru
          _
      $region12: #{tpu_custom_call.1} parent=5 // pred_fallthru
        _
      %p301 = scmp.lt.s32.totalorder %s24, 4
      // Predicated region
      $region37: #{tpu_custom_call.1} parent=5 // pred_check
        %p302 = pneg %p301
      $region38: #{tpu_custom_call.1} parent=5 // pred_check_branch
        %304 = sbr.rel (%p302) target = $region40
      $region39: #{tpu_custom_call.1} parent=5 // pred_region
        // Predicated region
        $region41: #{tpu_custom_call.1} parent=39 // pred_check
          %p305 = pneg %p56
        $region42: #{tpu_custom_call.1} parent=39 // pred_check_branch
          %307 = sbr.rel (%p305) target = $region44
        $region43: #{tpu_custom_call.1} parent=39 // pred_region
          %s308 = smul.u32 16, %s31
          %p309 = scmp.lt.s32.totalorder %s308, 31
          %s310 = scalar_select %p309, %s308, 31
          %s311 = smul.addr %s310, 8
          %s312 = scalar_lea.vmem %s1, %s311
          %s313 = smul.u32 16, %s31
        $region44: #{tpu_custom_call.1} parent=39 // pred_fallthru
          _
        // Predicated region
        $region45: #{tpu_custom_call.1} parent=39 // pred_check
          %p314 = pneg %p82
        $region46: #{tpu_custom_call.1} parent=39 // pred_check_branch
          %316 = sbr.rel (%p314) target = $region48
        $region47: #{tpu_custom_call.1} parent=39 // pred_region
          %s317 = smul.u32 16, %s32
          %p318 = scmp.lt.s32.totalorder %s317, 31
          %s319 = scalar_select %p318, %s317, 31
          %s320 = smul.addr %s319, 8
          %s321 = scalar_lea.vmem %s2, %s320
          %s322 = smul.u32 16, %s32
        $region48: #{tpu_custom_call.1} parent=39 // pred_fallthru
          _
        // Predicated region
        $region49: #{tpu_custom_call.1} parent=39 // pred_check
          %p323 = pneg %p110
        $region50: #{tpu_custom_call.1} parent=39 // pred_check_branch
          %325 = sbr.rel (%p323) target = $region52
        $region51: #{tpu_custom_call.1} parent=39 // pred_region
          %s326 = sand.u32 %s100, 1
          %s327 = sand.u32 %s100, 1
          %s328 = smul.addr %s327, 64
          %s329 = scalar_lea.vmem [#allocation9], %s328
          %s330 = smul.u32 16, %s31
          %s331 = smul.addr %s330, 2
          %s332 = sadd.s32 %s32, %s331
          %s333 = smul.addr %s332, 4
          %s334 = scalar_lea.vmem %s3, %s333
          // Predicated region
          $region53: #{tpu_custom_call.1} parent=51 // pred_check
            _
          $region54: #{tpu_custom_call.1} parent=51 // pred_check_branch
            %336 = sbr.rel (0) target = $region56
          $region55: #{tpu_custom_call.1} parent=51 // pred_region
            // Predicated region
            $region57: #{tpu_custom_call.1} parent=55 // pred_check
              _
            $region58: #{tpu_custom_call.1} parent=55 // pred_check_branch
              %338 = sbr.rel target = $region60
            $region59: #{tpu_custom_call.1} parent=55 // pred_region
              // Predicated region
              $region72: #{tpu_custom_call.1} parent=59 // pred_check
                _
              $region73: #{tpu_custom_call.1} parent=59 // pred_check_branch
                %384 = sbr.rel (0) target = $region75
              $region74: #{tpu_custom_call.1} parent=59 // pred_region
                loop: start=0, step=1, limit=1
                $region76: #{tpu_custom_call.1} parent=74 // loop_pre_header
                  _
                $region77: #{tpu_custom_call.1} parent=74 // loop_header
                  %s386 = sphi 0, %s390
                  %p387 = scmp.ge.s32.totalorder %s386, 1
                  %s391 = sphi %s334, %s334
                  %s392 = sphi %s329, %s329
                $region78: #{tpu_custom_call.1} parent=74 // loop_header_branch
                  %389 = sbr.rel (%p387) target = $region82
                $region79: #{tpu_custom_call.1} parent=74 // loop_body
                  _
                $region80: #{tpu_custom_call.1} parent=74 // loop_footer
                  %s390 = sadd.s32 1, %s386
                $region81: #{tpu_custom_call.1} parent=74 // loop_footer_branch
                  %385 = sbr.rel target = $region77
                $region82: #{tpu_custom_call.1} parent=74 // loop_exit
                  _
                %s394 = ssub.s32 16, 1
                loop: start=0, step=1, limit=1
                $region83: #{tpu_custom_call.1} parent=74 // loop_pre_header
                  _
                $region84: #{tpu_custom_call.1} parent=74 // loop_header
                  %s396 = sphi 0, %s400
                  %p397 = scmp.ge.s32.totalorder %s396, 1
                  %s401 = sphi %s334, %s334
                  %s402 = sphi %s329, %s329
                $region85: #{tpu_custom_call.1} parent=74 // loop_header_branch
                  %399 = sbr.rel (%p397) target = $region89
                $region86: #{tpu_custom_call.1} parent=74 // loop_body
                  %v403 = vld [vmem:[%s401] sm:%s394]
                  %404 = vst [vmem:[%s402] sm:%s394] %v403
                  %v405 = vld [vmem:[%s401 + $0x8] sm:%s394]
                  %406 = vst [vmem:[%s402 + $0x4] sm:%s394] %v405
                  %v407 = vld [vmem:[%s401 + $0x10] sm:%s394]
                  %408 = vst [vmem:[%s402 + $0x8] sm:%s394] %v407
                  %v409 = vld [vmem:[%s401 + $0x18] sm:%s394]
                  %410 = vst [vmem:[%s402 + $0xc] sm:%s394] %v409
                  %v411 = vld [vmem:[%s401 + $0x20] sm:%s394]
                  %412 = vst [vmem:[%s402 + $0x10] sm:%s394] %v411
                  %v413 = vld [vmem:[%s401 + $0x28] sm:%s394]
                  %414 = vst [vmem:[%s402 + $0x14] sm:%s394] %v413
                  %v415 = vld [vmem:[%s401 + $0x30] sm:%s394]
                  %416 = vst [vmem:[%s402 + $0x18] sm:%s394] %v415
                  %v417 = vld [vmem:[%s401 + $0x38] sm:%s394]
                  %418 = vst [vmem:[%s402 + $0x1c] sm:%s394] %v417
                  %v419 = vld [vmem:[%s401 + $0x40] sm:%s394]
                  %420 = vst [vmem:[%s402 + $0x20] sm:%s394] %v419
                  %v421 = vld [vmem:[%s401 + $0x48] sm:%s394]
                  %422 = vst [vmem:[%s402 + $0x24] sm:%s394] %v421
                  %v423 = vld [vmem:[%s401 + $0x50] sm:%s394]
                  %424 = vst [vmem:[%s402 + $0x28] sm:%s394] %v423
                  %v425 = vld [vmem:[%s401 + $0x58] sm:%s394]
                  %426 = vst [vmem:[%s402 + $0x2c] sm:%s394] %v425
                  %v427 = vld [vmem:[%s401 + $0x60] sm:%s394]
                  %428 = vst [vmem:[%s402 + $0x30] sm:%s394] %v427
                  %v429 = vld [vmem:[%s401 + $0x68] sm:%s394]
                  %430 = vst [vmem:[%s402 + $0x34] sm:%s394] %v429
                  %v431 = vld [vmem:[%s401 + $0x70] sm:%s394]
                  %432 = vst [vmem:[%s402 + $0x38] sm:%s394] %v431
                  %v433 = vld [vmem:[%s401 + $0x78] sm:%s394]
                  %434 = vst [vmem:[%s402 + $0x3c] sm:%s394] %v433
                $region87: #{tpu_custom_call.1} parent=74 // loop_footer
                  %s400 = sadd.s32 1, %s396
                $region88: #{tpu_custom_call.1} parent=74 // loop_footer_branch
                  %395 = sbr.rel target = $region84
                $region89: #{tpu_custom_call.1} parent=74 // loop_exit
                  _
              $region75: #{tpu_custom_call.1} parent=59 // pred_fallthru
                _
            $region60: #{tpu_custom_call.1} parent=55 // pred_fallthru
              _
            // Predicated region
            $region61: #{tpu_custom_call.1} parent=55 // pred_check
              _
            $region62: #{tpu_custom_call.1} parent=55 // pred_check_branch
              %340 = sbr.rel (0) target = $region64
            $region63: #{tpu_custom_call.1} parent=55 // pred_region
              %s342 = ssub.s32 16, 1
              loop: start=0, step=1, limit=1
              $region65: #{tpu_custom_call.1} parent=63 // loop_pre_header
                _
              $region66: #{tpu_custom_call.1} parent=63 // loop_header
                %s344 = sphi 0, %s348
                %p345 = scmp.ge.s32.totalorder %s344, 1
                %s349 = sphi %s334, %s334
                %s350 = sphi %s329, %s329
              $region67: #{tpu_custom_call.1} parent=63 // loop_header_branch
                %347 = sbr.rel (%p345) target = $region71
              $region68: #{tpu_custom_call.1} parent=63 // loop_body
                %v351 = vld [vmem:[%s349] sm:%s342]
                %352 = vst [vmem:[%s350] sm:%s342] %v351
                %v353 = vld [vmem:[%s349 + $0x8] sm:%s342]
                %354 = vst [vmem:[%s350 + $0x4] sm:%s342] %v353
                %v355 = vld [vmem:[%s349 + $0x10] sm:%s342]
                %356 = vst [vmem:[%s350 + $0x8] sm:%s342] %v355
                %v357 = vld [vmem:[%s349 + $0x18] sm:%s342]
                %358 = vst [vmem:[%s350 + $0xc] sm:%s342] %v357
                %v359 = vld [vmem:[%s349 + $0x20] sm:%s342]
                %360 = vst [vmem:[%s350 + $0x10] sm:%s342] %v359
                %v361 = vld [vmem:[%s349 + $0x28] sm:%s342]
                %362 = vst [vmem:[%s350 + $0x14] sm:%s342] %v361
                %v363 = vld [vmem:[%s349 + $0x30] sm:%s342]
                %364 = vst [vmem:[%s350 + $0x18] sm:%s342] %v363
                %v365 = vld [vmem:[%s349 + $0x38] sm:%s342]
                %366 = vst [vmem:[%s350 + $0x1c] sm:%s342] %v365
                %v367 = vld [vmem:[%s349 + $0x40] sm:%s342]
                %368 = vst [vmem:[%s350 + $0x20] sm:%s342] %v367
                %v369 = vld [vmem:[%s349 + $0x48] sm:%s342]
                %370 = vst [vmem:[%s350 + $0x24] sm:%s342] %v369
                %v371 = vld [vmem:[%s349 + $0x50] sm:%s342]
                %372 = vst [vmem:[%s350 + $0x28] sm:%s342] %v371
                %v373 = vld [vmem:[%s349 + $0x58] sm:%s342]
                %374 = vst [vmem:[%s350 + $0x2c] sm:%s342] %v373
                %v375 = vld [vmem:[%s349 + $0x60] sm:%s342]
                %376 = vst [vmem:[%s350 + $0x30] sm:%s342] %v375
                %v377 = vld [vmem:[%s349 + $0x68] sm:%s342]
                %378 = vst [vmem:[%s350 + $0x34] sm:%s342] %v377
                %v379 = vld [vmem:[%s349 + $0x70] sm:%s342]
                %380 = vst [vmem:[%s350 + $0x38] sm:%s342] %v379
                %v381 = vld [vmem:[%s349 + $0x78] sm:%s342]
                %382 = vst [vmem:[%s350 + $0x3c] sm:%s342] %v381
              $region69: #{tpu_custom_call.1} parent=63 // loop_footer
                %s348 = sadd.s32 1, %s344
              $region70: #{tpu_custom_call.1} parent=63 // loop_footer_branch
                %343 = sbr.rel target = $region66
              $region71: #{tpu_custom_call.1} parent=63 // loop_exit
                _
            $region64: #{tpu_custom_call.1} parent=55 // pred_fallthru
              _
          $region56: #{tpu_custom_call.1} parent=51 // pred_fallthru
            _
          %435 = vnop
        $region52: #{tpu_custom_call.1} parent=39 // pred_fallthru
          _
      $region40: #{tpu_custom_call.1} parent=5 // pred_fallthru
        _
      %p436 = scmp.le.s32.totalorder 1, %s24
      %p437 = scmp.lt.s32.totalorder %s24, 5
      %p438 = pnand %p436, %p437
      %p439 = pneg %p438
      // Predicated region
      $region90: #{tpu_custom_call.1} parent=5 // pred_check
        _
      $region91: #{tpu_custom_call.1} parent=5 // pred_check_branch
        %441 = sbr.rel (%p438) target = $region93
      $region92: #{tpu_custom_call.1} parent=5 // pred_region
        %s442 = ssub.s32 %s24, 1
        %s443 = sand.u32 %s103, 1
        %s444 = sand.u32 %s103, 1
        %s445 = smul.addr %s444, 64
        %s446 = scalar_lea.vmem [#allocation9], %s445
        // Predicated region
        $region94: #{tpu_custom_call.1} parent=92 // pred_check
          %p447 = pneg %p116
        $region95: #{tpu_custom_call.1} parent=92 // pred_check_branch
          %449 = sbr.rel (%p447) target = $region97
        $region96: #{tpu_custom_call.1} parent=92 // pred_region
          _
        $region97: #{tpu_custom_call.1} parent=92 // pred_fallthru
          _
        %s450 = smul.u32 16, %s33
        %p451 = scmp.lt.s32.totalorder %s450, 31
        %s452 = scalar_select %p451, %s450, 31
        %s453 = smul.addr %s452, 8
        %s454 = scalar_lea.vmem %s1, %s453
        %p455 = pneg %p62
        %p456 = pneg %p59
        %s457 = smul.u32 16, %s34
        %p458 = scmp.lt.s32.totalorder %s457, 31
        %s459 = scalar_select %p458, %s457, 31
        %s460 = smul.addr %s459, 8
        %s461 = scalar_lea.vmem %s2, %s460
        %p462 = pneg %p88
        %p463 = pneg %p85
        %s464 = sand.u32 %s103, 1
        %s465 = sand.u32 %s103, 1
        %s466 = smul.addr %s465, 64
        %s467 = scalar_lea.vmem [#allocation9], %s466
        %p468 = pneg %p116
        %p469 = pneg %p113
        %p470 = pneg %p137
        %p471 = pneg %p134
        %p472 = pneg %p158
        %p473 = pneg %p155
        %p474 = pneg %p179
        %p475 = pneg %p176
        %p476 = pneg %p200
        %p477 = pneg %p197
        %p478 = pneg %p221
        %p479 = pneg %p218
        %p480 = pneg %p242
        %p481 = pneg %p239
        %p482 = pneg %p268
        %p483 = pneg %p265
        %s484 = smul.u32 16, %s33
        %p485 = scmp.lt.s32.totalorder %s484, 31
        %s486 = scalar_select %p485, %s484, 31
        %s487 = smul.addr %s486, 8
        %s488 = scalar_lea.vmem %s10, %s487
        %s489 = smul.u32 16, %s33
        %p490 = scmp.lt.s32.totalorder %s489, 31
        %s491 = scalar_select %p490, %s489, 31
        %s492 = smul.addr %s491, 8
        %s493 = scalar_lea.vmem %s1, %s492
        %s494 = smul.u32 16, %s33
        %s495 = smul.u32 16, %s34
        %p496 = scmp.lt.s32.totalorder %s495, 31
        %s497 = scalar_select %p496, %s495, 31
        %s498 = smul.addr %s497, 8
        %s499 = scalar_lea.vmem %s2, %s498
        %s500 = smul.u32 16, %s34
        %s501 = smul.u32 16, %s33
        %s502 = smul.u32 16, %s33
        %p503 = scmp.lt.s32.totalorder %s502, 31
        %s504 = scalar_select %p503, %s502, 31
        %s505 = smul.addr %s504, 8
        %s506 = scalar_lea.vmem %s10, %s505
        %s507 = smul.u32 16, %s33
        %p508 = scmp.eq.s32.totalorder %s34, 0
        // Predicated region
        $region98: #{tpu_custom_call.1} parent=92 // pred_check
          %p509 = pneg %p508
        $region99: #{tpu_custom_call.1} parent=92 // pred_check_branch
          %511 = sbr.rel (%p509) target = $region101
        $region100: #{tpu_custom_call.1} parent=92 // pred_region
          %v512 = vld [vmem:[%s493] sm:$0xff]
          %v513 = vld [vmem:[%s493 + $0x8] sm:$0xff]
          %v514 = vld [vmem:[%s493 + $0x10] sm:$0xff]
          %v515 = vld [vmem:[%s493 + $0x18] sm:$0xff]
          %v516 = vld [vmem:[%s493 + $0x20] sm:$0xff]
          %v517 = vld [vmem:[%s493 + $0x28] sm:$0xff]
          %v518 = vld [vmem:[%s493 + $0x30] sm:$0xff]
          %v519 = vld [vmem:[%s493 + $0x38] sm:$0xff]
          %v520 = vld [vmem:[%s493 + $0x40] sm:$0xff]
          %v521 = vld [vmem:[%s493 + $0x48] sm:$0xff]
          %v522 = vld [vmem:[%s493 + $0x50] sm:$0xff]
          %v523 = vld [vmem:[%s493 + $0x58] sm:$0xff]
          %v524 = vld [vmem:[%s493 + $0x60] sm:$0xff]
          %v525 = vld [vmem:[%s493 + $0x68] sm:$0xff]
          %v526 = vld [vmem:[%s493 + $0x70] sm:$0xff]
          %v527 = vld [vmem:[%s493 + $0x78] sm:$0xff]
          %v528 = vld [vmem:[%s4] sm:$0xff]
          %v529 = vld [vmem:[%s4 + $0x8] sm:$0xff]
          %v530 = vld [vmem:[%s4 + $0x10] sm:$0xff]
          %v531 = vld [vmem:[%s4 + $0x18] sm:$0xff]
          %v532 = vld [vmem:[%s5] sm:$0x1]
          %v534 = vperm.slane %v532, 0
          %vm536 = vcmask 261120
          %v538 = vsel %vm536, %v512, 0
          %v541 = vsel %vm536, %v513, 0
          %v544 = vsel %vm536, %v514, 0
          %v547 = vsel %vm536, %v515, 0
          %v550 = vsel %vm536, %v516, 0
          %v553 = vsel %vm536, %v517, 0
          %v556 = vsel %vm536, %v518, 0
          %v559 = vsel %vm536, %v519, 0
          %v562 = vsel %vm536, %v520, 0
          %v565 = vsel %vm536, %v521, 0
          %v568 = vsel %vm536, %v522, 0
          %v571 = vsel %vm536, %v523, 0
          %v574 = vsel %vm536, %v524, 0
          %v577 = vsel %vm536, %v525, 0
          %v580 = vsel %vm536, %v526, 0
          %v583 = vsel %vm536, %v527, 0
          %585 = vmatpush.msra.mxu0 0.0
          %586 = vmatpush.msra.mxu0 0.0
          %587 = vmatpush.msra.mxu0 0.0
          %588 = vmatpush.msra.mxu0 0.0
          %589 = vmatpush.msra.mxu0 0.0
          %590 = vmatpush.msra.mxu0 0.0
          %591 = vmatpush.msra.mxu0 0.0
          %592 = vmatpush.msra.mxu0 0.0
          %593 = vmatpush.msra.mxu0 0.0
          %594 = vmatpush.msra.mxu0 0.0
          %595 = vmatpush.msra.mxu0 0.0
          %596 = vmatpush.msra.mxu0 0.0
          %597 = vmatpush.msra.mxu0 %v531
          %598 = vmatpush.msra.mxu0 %v530
          %599 = vmatpush.msra.mxu0 %v529
          %600 = vmatpush.msra.mxu0 %v528
          %601 = vmatmul.f32.gmra.mxu0 %v538
          %v602 = vpop.f32.mrf.mxu0
          %v603 = vadd.f32 %v534, %v602
          %604 = vmatmul.f32.gmra.mxu0 %v541
          %v605 = vpop.f32.mrf.mxu0
          %v606 = vadd.f32 %v534, %v605
          %607 = vmatmul.f32.gmra.mxu0 %v544
          %v608 = vpop.f32.mrf.mxu0
          %v609 = vadd.f32 %v534, %v608
          %610 = vmatmul.f32.gmra.mxu0 %v547
          %v611 = vpop.f32.mrf.mxu0
          %v612 = vadd.f32 %v534, %v611
          %613 = vmatmul.f32.gmra.mxu0 %v550
          %v614 = vpop.f32.mrf.mxu0
          %v615 = vadd.f32 %v534, %v614
          %616 = vmatmul.f32.gmra.mxu0 %v553
          %v617 = vpop.f32.mrf.mxu0
          %v618 = vadd.f32 %v534, %v617
          %619 = vmatmul.f32.gmra.mxu0 %v556
          %v620 = vpop.f32.mrf.mxu0
          %v621 = vadd.f32 %v534, %v620
          %622 = vmatmul.f32.gmra.mxu0 %v559
          %v623 = vpop.f32.mrf.mxu0
          %v624 = vadd.f32 %v534, %v623
          %625 = vmatmul.f32.gmra.mxu0 %v562
          %v626 = vpop.f32.mrf.mxu0
          %v627 = vadd.f32 %v534, %v626
          %628 = vmatmul.f32.gmra.mxu0 %v565
          %v629 = vpop.f32.mrf.mxu0
          %v630 = vadd.f32 %v534, %v629
          %631 = vmatmul.f32.gmra.mxu0 %v568
          %v632 = vpop.f32.mrf.mxu0
          %v633 = vadd.f32 %v534, %v632
          %634 = vmatmul.f32.gmra.mxu0 %v571
          %v635 = vpop.f32.mrf.mxu0
          %v636 = vadd.f32 %v534, %v635
          %637 = vmatmul.f32.gmra.mxu0 %v574
          %v638 = vpop.f32.mrf.mxu0
          %v639 = vadd.f32 %v534, %v638
          %640 = vmatmul.f32.gmra.mxu0 %v577
          %v641 = vpop.f32.mrf.mxu0
          %v642 = vadd.f32 %v534, %v641
          %643 = vmatmul.f32.gmra.mxu0 %v580
          %v644 = vpop.f32.mrf.mxu0
          %v645 = vadd.f32 %v534, %v644
          %646 = vmatmul.f32.gmra.mxu0 %v583
          %v647 = vpop.f32.mrf.mxu0
          %v648 = vadd.f32 %v534, %v647
          %649 = vdwg.mxu0
          %vm650 = vcmask 523264
          %651 = vst.msk [vmem:[#allocation2] sm:$0xff] %vm650, %v603
          %652 = vst.msk [vmem:[#allocation2 + $0x8] sm:$0xff] %vm650, %v606
          %653 = vst.msk [vmem:[#allocation2 + $0x10] sm:$0xff] %vm650, %v609
          %654 = vst.msk [vmem:[#allocation2 + $0x18] sm:$0xff] %vm650, %v612
          %655 = vst.msk [vmem:[#allocation2 + $0x20] sm:$0xff] %vm650, %v615
          %656 = vst.msk [vmem:[#allocation2 + $0x28] sm:$0xff] %vm650, %v618
          %657 = vst.msk [vmem:[#allocation2 + $0x30] sm:$0xff] %vm650, %v621
          %658 = vst.msk [vmem:[#allocation2 + $0x38] sm:$0xff] %vm650, %v624
          %659 = vst.msk [vmem:[#allocation2 + $0x40] sm:$0xff] %vm650, %v627
          %660 = vst.msk [vmem:[#allocation2 + $0x48] sm:$0xff] %vm650, %v630
          %661 = vst.msk [vmem:[#allocation2 + $0x50] sm:$0xff] %vm650, %v633
          %662 = vst.msk [vmem:[#allocation2 + $0x58] sm:$0xff] %vm650, %v636
          %663 = vst.msk [vmem:[#allocation2 + $0x60] sm:$0xff] %vm650, %v639
          %664 = vst.msk [vmem:[#allocation2 + $0x68] sm:$0xff] %vm650, %v642
          %665 = vst.msk [vmem:[#allocation2 + $0x70] sm:$0xff] %vm650, %v645
          %666 = vst.msk [vmem:[#allocation2 + $0x78] sm:$0xff] %vm650, %v648
          %683 = vrot.lane.b32.xlu0 %v603, 64
          %v684 = vpop.permute.xlu0 %683
          %685 = vrot.lane.b32.xlu0 %v606, 64
          %v686 = vpop.permute.xlu0 %685
          %687 = vrot.lane.b32.xlu0 %v609, 64
          %v688 = vpop.permute.xlu0 %687
          %689 = vrot.lane.b32.xlu0 %v612, 64
          %v690 = vpop.permute.xlu0 %689
          %691 = vrot.lane.b32.xlu0 %v615, 64
          %v692 = vpop.permute.xlu0 %691
          %693 = vrot.lane.b32.xlu0 %v618, 64
          %v694 = vpop.permute.xlu0 %693
          %695 = vrot.lane.b32.xlu0 %v621, 64
          %v696 = vpop.permute.xlu0 %695
          %697 = vrot.lane.b32.xlu0 %v624, 64
          %v698 = vpop.permute.xlu0 %697
          %699 = vrot.lane.b32.xlu0 %v627, 64
          %v700 = vpop.permute.xlu0 %699
          %701 = vrot.lane.b32.xlu0 %v630, 64
          %v702 = vpop.permute.xlu0 %701
          %703 = vrot.lane.b32.xlu0 %v633, 64
          %v704 = vpop.permute.xlu0 %703
          %705 = vrot.lane.b32.xlu0 %v636, 64
          %v706 = vpop.permute.xlu0 %705
          %707 = vrot.lane.b32.xlu0 %v639, 64
          %v708 = vpop.permute.xlu0 %707
          %709 = vrot.lane.b32.xlu0 %v642, 64
          %v710 = vpop.permute.xlu0 %709
          %711 = vrot.lane.b32.xlu0 %v645, 64
          %v712 = vpop.permute.xlu0 %711
          %713 = vrot.lane.b32.xlu0 %v648, 64
          %v714 = vpop.permute.xlu0 %713
          %731 = vst.msk [vmem:[#allocation3] sm:$0xff] %vm650, %v684
          %732 = vst.msk [vmem:[#allocation3 + $0x8] sm:$0xff] %vm650, %v686
          %733 = vst.msk [vmem:[#allocation3 + $0x10] sm:$0xff] %vm650, %v688
          %734 = vst.msk [vmem:[#allocation3 + $0x18] sm:$0xff] %vm650, %v690
          %735 = vst.msk [vmem:[#allocation3 + $0x20] sm:$0xff] %vm650, %v692
          %736 = vst.msk [vmem:[#allocation3 + $0x28] sm:$0xff] %vm650, %v694
          %737 = vst.msk [vmem:[#allocation3 + $0x30] sm:$0xff] %vm650, %v696
          %738 = vst.msk [vmem:[#allocation3 + $0x38] sm:$0xff] %vm650, %v698
          %739 = vst.msk [vmem:[#allocation3 + $0x40] sm:$0xff] %vm650, %v700
          %740 = vst.msk [vmem:[#allocation3 + $0x48] sm:$0xff] %vm650, %v702
          %741 = vst.msk [vmem:[#allocation3 + $0x50] sm:$0xff] %vm650, %v704
          %742 = vst.msk [vmem:[#allocation3 + $0x58] sm:$0xff] %vm650, %v706
          %743 = vst.msk [vmem:[#allocation3 + $0x60] sm:$0xff] %vm650, %v708
          %744 = vst.msk [vmem:[#allocation3 + $0x68] sm:$0xff] %vm650, %v710
          %745 = vst.msk [vmem:[#allocation3 + $0x70] sm:$0xff] %vm650, %v712
          %746 = vst.msk [vmem:[#allocation3 + $0x78] sm:$0xff] %vm650, %v714
          %vm747 = vcmask 7168
          %748 = vst.msk [vmem:[#allocation4] sm:$0xff] %vm747, -inf
          %749 = vst.msk [vmem:[#allocation4 + $0x8] sm:$0xff] %vm747, -inf
          %750 = vst.msk [vmem:[#allocation4 + $0x10] sm:$0xff] %vm747, -inf
          %751 = vst.msk [vmem:[#allocation4 + $0x18] sm:$0xff] %vm747, -inf
          %752 = vst.msk [vmem:[#allocation4 + $0x20] sm:$0xff] %vm747, -inf
          %753 = vst.msk [vmem:[#allocation4 + $0x28] sm:$0xff] %vm747, -inf
          %754 = vst.msk [vmem:[#allocation4 + $0x30] sm:$0xff] %vm747, -inf
          %755 = vst.msk [vmem:[#allocation4 + $0x38] sm:$0xff] %vm747, -inf
          %756 = vst.msk [vmem:[#allocation4 + $0x40] sm:$0xff] %vm747, -inf
          %757 = vst.msk [vmem:[#allocation4 + $0x48] sm:$0xff] %vm747, -inf
          %758 = vst.msk [vmem:[#allocation4 + $0x50] sm:$0xff] %vm747, -inf
          %759 = vst.msk [vmem:[#allocation4 + $0x58] sm:$0xff] %vm747, -inf
          %760 = vst.msk [vmem:[#allocation4 + $0x60] sm:$0xff] %vm747, -inf
          %761 = vst.msk [vmem:[#allocation4 + $0x68] sm:$0xff] %vm747, -inf
          %762 = vst.msk [vmem:[#allocation4 + $0x70] sm:$0xff] %vm747, -inf
          %763 = vst.msk [vmem:[#allocation4 + $0x78] sm:$0xff] %vm747, -inf
          %764 = vst.msk [vmem:[#allocation4 + $0x80] sm:$0xff] %vm747, -inf
          %765 = vst.msk [vmem:[#allocation4 + $0x88] sm:$0xff] %vm747, -inf
          %766 = vst.msk [vmem:[#allocation4 + $0x90] sm:$0xff] %vm747, -inf
          %767 = vst.msk [vmem:[#allocation4 + $0x98] sm:$0xff] %vm747, -inf
          %768 = vst.msk [vmem:[#allocation4 + $0xa0] sm:$0xff] %vm747, -inf
          %769 = vst.msk [vmem:[#allocation4 + $0xa8] sm:$0xff] %vm747, -inf
          %770 = vst.msk [vmem:[#allocation4 + $0xb0] sm:$0xff] %vm747, -inf
          %771 = vst.msk [vmem:[#allocation4 + $0xb8] sm:$0xff] %vm747, -inf
          %772 = vst.msk [vmem:[#allocation4 + $0xc0] sm:$0xff] %vm747, -inf
          %773 = vst.msk [vmem:[#allocation4 + $0xc8] sm:$0xff] %vm747, -inf
          %774 = vst.msk [vmem:[#allocation4 + $0xd0] sm:$0xff] %vm747, -inf
          %775 = vst.msk [vmem:[#allocation4 + $0xd8] sm:$0xff] %vm747, -inf
          %776 = vst.msk [vmem:[#allocation4 + $0xe0] sm:$0xff] %vm747, -inf
          %777 = vst.msk [vmem:[#allocation4 + $0xe8] sm:$0xff] %vm747, -inf
          %778 = vst.msk [vmem:[#allocation4 + $0xf0] sm:$0xff] %vm747, -inf
          %779 = vst.msk [vmem:[#allocation4 + $0xf8] sm:$0xff] %vm747, -inf
          %780 = vst.msk [vmem:[#allocation4 + $0x100] sm:$0xff] %vm747, -inf
          %781 = vst.msk [vmem:[#allocation4 + $0x108] sm:$0xff] %vm747, -inf
          %782 = vst.msk [vmem:[#allocation4 + $0x110] sm:$0xff] %vm747, -inf
          %783 = vst.msk [vmem:[#allocation4 + $0x118] sm:$0xff] %vm747, -inf
          %784 = vst.msk [vmem:[#allocation4 + $0x120] sm:$0xff] %vm747, -inf
          %785 = vst.msk [vmem:[#allocation4 + $0x128] sm:$0xff] %vm747, -inf
          %786 = vst.msk [vmem:[#allocation4 + $0x130] sm:$0xff] %vm747, -inf
          %787 = vst.msk [vmem:[#allocation4 + $0x138] sm:$0xff] %vm747, -inf
          %788 = vst.msk [vmem:[#allocation4 + $0x140] sm:$0xff] %vm747, -inf
          %789 = vst.msk [vmem:[#allocation4 + $0x148] sm:$0xff] %vm747, -inf
          %790 = vst.msk [vmem:[#allocation4 + $0x150] sm:$0xff] %vm747, -inf
          %791 = vst.msk [vmem:[#allocation4 + $0x158] sm:$0xff] %vm747, -inf
          %792 = vst.msk [vmem:[#allocation4 + $0x160] sm:$0xff] %vm747, -inf
          %793 = vst.msk [vmem:[#allocation4 + $0x168] sm:$0xff] %vm747, -inf
          %794 = vst.msk [vmem:[#allocation4 + $0x170] sm:$0xff] %vm747, -inf
          %795 = vst.msk [vmem:[#allocation4 + $0x178] sm:$0xff] %vm747, -inf
          %796 = vst.msk [vmem:[#allocation4 + $0x180] sm:$0xff] %vm747, -inf
          %797 = vst.msk [vmem:[#allocation4 + $0x188] sm:$0xff] %vm747, -inf
          %798 = vst.msk [vmem:[#allocation4 + $0x190] sm:$0xff] %vm747, -inf
          %799 = vst.msk [vmem:[#allocation4 + $0x198] sm:$0xff] %vm747, -inf
          %800 = vst.msk [vmem:[#allocation4 + $0x1a0] sm:$0xff] %vm747, -inf
          %801 = vst.msk [vmem:[#allocation4 + $0x1a8] sm:$0xff] %vm747, -inf
          %802 = vst.msk [vmem:[#allocation4 + $0x1b0] sm:$0xff] %vm747, -inf
          %803 = vst.msk [vmem:[#allocation4 + $0x1b8] sm:$0xff] %vm747, -inf
          %804 = vst.msk [vmem:[#allocation4 + $0x1c0] sm:$0xff] %vm747, -inf
          %805 = vst.msk [vmem:[#allocation4 + $0x1c8] sm:$0xff] %vm747, -inf
          %806 = vst.msk [vmem:[#allocation4 + $0x1d0] sm:$0xff] %vm747, -inf
          %807 = vst.msk [vmem:[#allocation4 + $0x1d8] sm:$0xff] %vm747, -inf
          %808 = vst.msk [vmem:[#allocation4 + $0x1e0] sm:$0xff] %vm747, -inf
          %809 = vst.msk [vmem:[#allocation4 + $0x1e8] sm:$0xff] %vm747, -inf
          %810 = vst.msk [vmem:[#allocation4 + $0x1f0] sm:$0xff] %vm747, -inf
          %811 = vst.msk [vmem:[#allocation4 + $0x1f8] sm:$0xff] %vm747, -inf
          %812 = vst.msk [vmem:[#allocation5] sm:$0xff] %vm747, 0.0
          %813 = vst.msk [vmem:[#allocation5 + $0x8] sm:$0xff] %vm747, 0.0
          %814 = vst.msk [vmem:[#allocation5 + $0x10] sm:$0xff] %vm747, 0.0
          %815 = vst.msk [vmem:[#allocation5 + $0x18] sm:$0xff] %vm747, 0.0
          %816 = vst.msk [vmem:[#allocation5 + $0x20] sm:$0xff] %vm747, 0.0
          %817 = vst.msk [vmem:[#allocation5 + $0x28] sm:$0xff] %vm747, 0.0
          %818 = vst.msk [vmem:[#allocation5 + $0x30] sm:$0xff] %vm747, 0.0
          %819 = vst.msk [vmem:[#allocation5 + $0x38] sm:$0xff] %vm747, 0.0
          %820 = vst.msk [vmem:[#allocation5 + $0x40] sm:$0xff] %vm747, 0.0
          %821 = vst.msk [vmem:[#allocation5 + $0x48] sm:$0xff] %vm747, 0.0
          %822 = vst.msk [vmem:[#allocation5 + $0x50] sm:$0xff] %vm747, 0.0
          %823 = vst.msk [vmem:[#allocation5 + $0x58] sm:$0xff] %vm747, 0.0
          %824 = vst.msk [vmem:[#allocation5 + $0x60] sm:$0xff] %vm747, 0.0
          %825 = vst.msk [vmem:[#allocation5 + $0x68] sm:$0xff] %vm747, 0.0
          %826 = vst.msk [vmem:[#allocation5 + $0x70] sm:$0xff] %vm747, 0.0
          %827 = vst.msk [vmem:[#allocation5 + $0x78] sm:$0xff] %vm747, 0.0
          %828 = vst.msk [vmem:[#allocation5 + $0x80] sm:$0xff] %vm747, 0.0
          %829 = vst.msk [vmem:[#allocation5 + $0x88] sm:$0xff] %vm747, 0.0
          %830 = vst.msk [vmem:[#allocation5 + $0x90] sm:$0xff] %vm747, 0.0
          %831 = vst.msk [vmem:[#allocation5 + $0x98] sm:$0xff] %vm747, 0.0
          %832 = vst.msk [vmem:[#allocation5 + $0xa0] sm:$0xff] %vm747, 0.0
          %833 = vst.msk [vmem:[#allocation5 + $0xa8] sm:$0xff] %vm747, 0.0
          %834 = vst.msk [vmem:[#allocation5 + $0xb0] sm:$0xff] %vm747, 0.0
          %835 = vst.msk [vmem:[#allocation5 + $0xb8] sm:$0xff] %vm747, 0.0
          %836 = vst.msk [vmem:[#allocation5 + $0xc0] sm:$0xff] %vm747, 0.0
          %837 = vst.msk [vmem:[#allocation5 + $0xc8] sm:$0xff] %vm747, 0.0
          %838 = vst.msk [vmem:[#allocation5 + $0xd0] sm:$0xff] %vm747, 0.0
          %839 = vst.msk [vmem:[#allocation5 + $0xd8] sm:$0xff] %vm747, 0.0
          %840 = vst.msk [vmem:[#allocation5 + $0xe0] sm:$0xff] %vm747, 0.0
          %841 = vst.msk [vmem:[#allocation5 + $0xe8] sm:$0xff] %vm747, 0.0
          %842 = vst.msk [vmem:[#allocation5 + $0xf0] sm:$0xff] %vm747, 0.0
          %843 = vst.msk [vmem:[#allocation5 + $0xf8] sm:$0xff] %vm747, 0.0
          %844 = vst.msk [vmem:[#allocation5 + $0x100] sm:$0xff] %vm747, 0.0
          %845 = vst.msk [vmem:[#allocation5 + $0x108] sm:$0xff] %vm747, 0.0
          %846 = vst.msk [vmem:[#allocation5 + $0x110] sm:$0xff] %vm747, 0.0
          %847 = vst.msk [vmem:[#allocation5 + $0x118] sm:$0xff] %vm747, 0.0
          %848 = vst.msk [vmem:[#allocation5 + $0x120] sm:$0xff] %vm747, 0.0
          %849 = vst.msk [vmem:[#allocation5 + $0x128] sm:$0xff] %vm747, 0.0
          %850 = vst.msk [vmem:[#allocation5 + $0x130] sm:$0xff] %vm747, 0.0
          %851 = vst.msk [vmem:[#allocation5 + $0x138] sm:$0xff] %vm747, 0.0
          %852 = vst.msk [vmem:[#allocation5 + $0x140] sm:$0xff] %vm747, 0.0
          %853 = vst.msk [vmem:[#allocation5 + $0x148] sm:$0xff] %vm747, 0.0
          %854 = vst.msk [vmem:[#allocation5 + $0x150] sm:$0xff] %vm747, 0.0
          %855 = vst.msk [vmem:[#allocation5 + $0x158] sm:$0xff] %vm747, 0.0
          %856 = vst.msk [vmem:[#allocation5 + $0x160] sm:$0xff] %vm747, 0.0
          %857 = vst.msk [vmem:[#allocation5 + $0x168] sm:$0xff] %vm747, 0.0
          %858 = vst.msk [vmem:[#allocation5 + $0x170] sm:$0xff] %vm747, 0.0
          %859 = vst.msk [vmem:[#allocation5 + $0x178] sm:$0xff] %vm747, 0.0
          %860 = vst.msk [vmem:[#allocation5 + $0x180] sm:$0xff] %vm747, 0.0
          %861 = vst.msk [vmem:[#allocation5 + $0x188] sm:$0xff] %vm747, 0.0
          %862 = vst.msk [vmem:[#allocation5 + $0x190] sm:$0xff] %vm747, 0.0
          %863 = vst.msk [vmem:[#allocation5 + $0x198] sm:$0xff] %vm747, 0.0
          %864 = vst.msk [vmem:[#allocation5 + $0x1a0] sm:$0xff] %vm747, 0.0
          %865 = vst.msk [vmem:[#allocation5 + $0x1a8] sm:$0xff] %vm747, 0.0
          %866 = vst.msk [vmem:[#allocation5 + $0x1b0] sm:$0xff] %vm747, 0.0
          %867 = vst.msk [vmem:[#allocation5 + $0x1b8] sm:$0xff] %vm747, 0.0
          %868 = vst.msk [vmem:[#allocation5 + $0x1c0] sm:$0xff] %vm747, 0.0
          %869 = vst.msk [vmem:[#allocation5 + $0x1c8] sm:$0xff] %vm747, 0.0
          %870 = vst.msk [vmem:[#allocation5 + $0x1d0] sm:$0xff] %vm747, 0.0
          %871 = vst.msk [vmem:[#allocation5 + $0x1d8] sm:$0xff] %vm747, 0.0
          %872 = vst.msk [vmem:[#allocation5 + $0x1e0] sm:$0xff] %vm747, 0.0
          %873 = vst.msk [vmem:[#allocation5 + $0x1e8] sm:$0xff] %vm747, 0.0
          %874 = vst.msk [vmem:[#allocation5 + $0x1f0] sm:$0xff] %vm747, 0.0
          %875 = vst.msk [vmem:[#allocation5 + $0x1f8] sm:$0xff] %vm747, 0.0
          %vm876 = vcmask 130048
          %877 = vst.msk [vmem:[#allocation6] sm:$0xff] %vm876, 0.0
          %878 = vst.msk [vmem:[#allocation6 + $0x8] sm:$0xff] %vm876, 0.0
          %879 = vst.msk [vmem:[#allocation6 + $0x10] sm:$0xff] %vm876, 0.0
          %880 = vst.msk [vmem:[#allocation6 + $0x18] sm:$0xff] %vm876, 0.0
          %881 = vst.msk [vmem:[#allocation6 + $0x20] sm:$0xff] %vm876, 0.0
          %882 = vst.msk [vmem:[#allocation6 + $0x28] sm:$0xff] %vm876, 0.0
          %883 = vst.msk [vmem:[#allocation6 + $0x30] sm:$0xff] %vm876, 0.0
          %884 = vst.msk [vmem:[#allocation6 + $0x38] sm:$0xff] %vm876, 0.0
          %885 = vst.msk [vmem:[#allocation6 + $0x40] sm:$0xff] %vm876, 0.0
          %886 = vst.msk [vmem:[#allocation6 + $0x48] sm:$0xff] %vm876, 0.0
          %887 = vst.msk [vmem:[#allocation6 + $0x50] sm:$0xff] %vm876, 0.0
          %888 = vst.msk [vmem:[#allocation6 + $0x58] sm:$0xff] %vm876, 0.0
          %889 = vst.msk [vmem:[#allocation6 + $0x60] sm:$0xff] %vm876, 0.0
          %890 = vst.msk [vmem:[#allocation6 + $0x68] sm:$0xff] %vm876, 0.0
          %891 = vst.msk [vmem:[#allocation6 + $0x70] sm:$0xff] %vm876, 0.0
          %892 = vst.msk [vmem:[#allocation6 + $0x78] sm:$0xff] %vm876, 0.0
          %893 = vst.msk [vmem:[#allocation6 + $0x80] sm:$0xff] %vm876, 0.0
          %894 = vst.msk [vmem:[#allocation6 + $0x88] sm:$0xff] %vm876, 0.0
          %895 = vst.msk [vmem:[#allocation6 + $0x90] sm:$0xff] %vm876, 0.0
          %896 = vst.msk [vmem:[#allocation6 + $0x98] sm:$0xff] %vm876, 0.0
          %897 = vst.msk [vmem:[#allocation6 + $0xa0] sm:$0xff] %vm876, 0.0
          %898 = vst.msk [vmem:[#allocation6 + $0xa8] sm:$0xff] %vm876, 0.0
          %899 = vst.msk [vmem:[#allocation6 + $0xb0] sm:$0xff] %vm876, 0.0
          %900 = vst.msk [vmem:[#allocation6 + $0xb8] sm:$0xff] %vm876, 0.0
          %901 = vst.msk [vmem:[#allocation6 + $0xc0] sm:$0xff] %vm876, 0.0
          %902 = vst.msk [vmem:[#allocation6 + $0xc8] sm:$0xff] %vm876, 0.0
          %903 = vst.msk [vmem:[#allocation6 + $0xd0] sm:$0xff] %vm876, 0.0
          %904 = vst.msk [vmem:[#allocation6 + $0xd8] sm:$0xff] %vm876, 0.0
          %905 = vst.msk [vmem:[#allocation6 + $0xe0] sm:$0xff] %vm876, 0.0
          %906 = vst.msk [vmem:[#allocation6 + $0xe8] sm:$0xff] %vm876, 0.0
          %907 = vst.msk [vmem:[#allocation6 + $0xf0] sm:$0xff] %vm876, 0.0
          %908 = vst.msk [vmem:[#allocation6 + $0xf8] sm:$0xff] %vm876, 0.0
          %909 = vst.msk [vmem:[#allocation6 + $0x100] sm:$0xff] %vm876, 0.0
          %910 = vst.msk [vmem:[#allocation6 + $0x108] sm:$0xff] %vm876, 0.0
          %911 = vst.msk [vmem:[#allocation6 + $0x110] sm:$0xff] %vm876, 0.0
          %912 = vst.msk [vmem:[#allocation6 + $0x118] sm:$0xff] %vm876, 0.0
          %913 = vst.msk [vmem:[#allocation6 + $0x120] sm:$0xff] %vm876, 0.0
          %914 = vst.msk [vmem:[#allocation6 + $0x128] sm:$0xff] %vm876, 0.0
          %915 = vst.msk [vmem:[#allocation6 + $0x130] sm:$0xff] %vm876, 0.0
          %916 = vst.msk [vmem:[#allocation6 + $0x138] sm:$0xff] %vm876, 0.0
          %917 = vst.msk [vmem:[#allocation6 + $0x140] sm:$0xff] %vm876, 0.0
          %918 = vst.msk [vmem:[#allocation6 + $0x148] sm:$0xff] %vm876, 0.0
          %919 = vst.msk [vmem:[#allocation6 + $0x150] sm:$0xff] %vm876, 0.0
          %920 = vst.msk [vmem:[#allocation6 + $0x158] sm:$0xff] %vm876, 0.0
          %921 = vst.msk [vmem:[#allocation6 + $0x160] sm:$0xff] %vm876, 0.0
          %922 = vst.msk [vmem:[#allocation6 + $0x168] sm:$0xff] %vm876, 0.0
          %923 = vst.msk [vmem:[#allocation6 + $0x170] sm:$0xff] %vm876, 0.0
          %924 = vst.msk [vmem:[#allocation6 + $0x178] sm:$0xff] %vm876, 0.0
          %925 = vst.msk [vmem:[#allocation6 + $0x180] sm:$0xff] %vm876, 0.0
          %926 = vst.msk [vmem:[#allocation6 + $0x188] sm:$0xff] %vm876, 0.0
          %927 = vst.msk [vmem:[#allocation6 + $0x190] sm:$0xff] %vm876, 0.0
          %928 = vst.msk [vmem:[#allocation6 + $0x198] sm:$0xff] %vm876, 0.0
          %929 = vst.msk [vmem:[#allocation6 + $0x1a0] sm:$0xff] %vm876, 0.0
          %930 = vst.msk [vmem:[#allocation6 + $0x1a8] sm:$0xff] %vm876, 0.0
          %931 = vst.msk [vmem:[#allocation6 + $0x1b0] sm:$0xff] %vm876, 0.0
          %932 = vst.msk [vmem:[#allocation6 + $0x1b8] sm:$0xff] %vm876, 0.0
          %933 = vst.msk [vmem:[#allocation6 + $0x1c0] sm:$0xff] %vm876, 0.0
          %934 = vst.msk [vmem:[#allocation6 + $0x1c8] sm:$0xff] %vm876, 0.0
          %935 = vst.msk [vmem:[#allocation6 + $0x1d0] sm:$0xff] %vm876, 0.0
          %936 = vst.msk [vmem:[#allocation6 + $0x1d8] sm:$0xff] %vm876, 0.0
          %937 = vst.msk [vmem:[#allocation6 + $0x1e0] sm:$0xff] %vm876, 0.0
          %938 = vst.msk [vmem:[#allocation6 + $0x1e8] sm:$0xff] %vm876, 0.0
          %939 = vst.msk [vmem:[#allocation6 + $0x1f0] sm:$0xff] %vm876, 0.0
          %940 = vst.msk [vmem:[#allocation6 + $0x1f8] sm:$0xff] %vm876, 0.0
        $region101: #{tpu_custom_call.1} parent=92 // pred_fallthru
          _
        %s941 = sshra.s32 %s34, 7
        %s942 = sand.u32 %s34, 127
        %s943 = sadd.s32 %s941, %s33
        %s944 = smul.u32 %s943, 128
        %s945 = sshra.s32 %s34, 7
        %s946 = sand.u32 %s34, 127
        %s947 = sadd.s32 %s944, %s946
        %s948 = sld [smem:[#allocation8 + %s947]]
        %p949 = scmp.gt.s32.totalorder %s948, 0
        // Predicated region
        $region102: #{tpu_custom_call.1} parent=92 // pred_check
          %p950 = pneg %p949
        $region103: #{tpu_custom_call.1} parent=92 // pred_check_branch
          %952 = sbr.rel (%p950) target = $region105
        $region104: #{tpu_custom_call.1} parent=92 // pred_region
          %v953 = vld [vmem:[%s499] sm:$0xff]
          %v954 = vld [vmem:[%s499 + $0x8] sm:$0xff]
          %v955 = vld [vmem:[%s499 + $0x10] sm:$0xff]
          %v956 = vld [vmem:[%s499 + $0x18] sm:$0xff]
          %v957 = vld [vmem:[%s499 + $0x20] sm:$0xff]
          %v958 = vld [vmem:[%s499 + $0x28] sm:$0xff]
          %v959 = vld [vmem:[%s499 + $0x30] sm:$0xff]
          %v960 = vld [vmem:[%s499 + $0x38] sm:$0xff]
          %v961 = vld [vmem:[%s499 + $0x40] sm:$0xff]
          %v962 = vld [vmem:[%s499 + $0x48] sm:$0xff]
          %v963 = vld [vmem:[%s499 + $0x50] sm:$0xff]
          %v964 = vld [vmem:[%s499 + $0x58] sm:$0xff]
          %v965 = vld [vmem:[%s499 + $0x60] sm:$0xff]
          %v966 = vld [vmem:[%s499 + $0x68] sm:$0xff]
          %v967 = vld [vmem:[%s499 + $0x70] sm:$0xff]
          %v968 = vld [vmem:[%s499 + $0x78] sm:$0xff]
          %v969 = vld [vmem:[%s6] sm:$0xff]
          %v970 = vld [vmem:[%s6 + $0x8] sm:$0xff]
          %v971 = vld [vmem:[%s6 + $0x10] sm:$0xff]
          %v972 = vld [vmem:[%s6 + $0x18] sm:$0xff]
          %v973 = vld [vmem:[%s7] sm:$0x1]
          %v975 = vperm.slane %v973, 0
          %vm977 = vcmask 261120
          %v979 = vsel %vm977, %v953, 0
          %v982 = vsel %vm977, %v954, 0
          %v985 = vsel %vm977, %v955, 0
          %v988 = vsel %vm977, %v956, 0
          %v991 = vsel %vm977, %v957, 0
          %v994 = vsel %vm977, %v958, 0
          %v997 = vsel %vm977, %v959, 0
          %v1000 = vsel %vm977, %v960, 0
          %v1003 = vsel %vm977, %v961, 0
          %v1006 = vsel %vm977, %v962, 0
          %v1009 = vsel %vm977, %v963, 0
          %v1012 = vsel %vm977, %v964, 0
          %v1015 = vsel %vm977, %v965, 0
          %v1018 = vsel %vm977, %v966, 0
          %v1021 = vsel %vm977, %v967, 0
          %v1024 = vsel %vm977, %v968, 0
          %1026 = vmatpush.msra.mxu0 0.0
          %1027 = vmatpush.msra.mxu0 0.0
          %1028 = vmatpush.msra.mxu0 0.0
          %1029 = vmatpush.msra.mxu0 0.0
          %1030 = vmatpush.msra.mxu0 0.0
          %1031 = vmatpush.msra.mxu0 0.0
          %1032 = vmatpush.msra.mxu0 0.0
          %1033 = vmatpush.msra.mxu0 0.0
          %1034 = vmatpush.msra.mxu0 0.0
          %1035 = vmatpush.msra.mxu0 0.0
          %1036 = vmatpush.msra.mxu0 0.0
          %1037 = vmatpush.msra.mxu0 0.0
          %1038 = vmatpush.msra.mxu0 %v972
          %1039 = vmatpush.msra.mxu0 %v971
          %1040 = vmatpush.msra.mxu0 %v970
          %1041 = vmatpush.msra.mxu0 %v969
          %1042 = vmatmul.f32.gmra.mxu0 %v979
          %v1043 = vpop.f32.mrf.mxu0
          %v1044 = vadd.f32 %v975, %v1043
          %1045 = vmatmul.f32.gmra.mxu0 %v982
          %v1046 = vpop.f32.mrf.mxu0
          %v1047 = vadd.f32 %v975, %v1046
          %1048 = vmatmul.f32.gmra.mxu0 %v985
          %v1049 = vpop.f32.mrf.mxu0
          %v1050 = vadd.f32 %v975, %v1049
          %1051 = vmatmul.f32.gmra.mxu0 %v988
          %v1052 = vpop.f32.mrf.mxu0
          %v1053 = vadd.f32 %v975, %v1052
          %1054 = vmatmul.f32.gmra.mxu0 %v991
          %v1055 = vpop.f32.mrf.mxu0
          %v1056 = vadd.f32 %v975, %v1055
          %1057 = vmatmul.f32.gmra.mxu0 %v994
          %v1058 = vpop.f32.mrf.mxu0
          %v1059 = vadd.f32 %v975, %v1058
          %1060 = vmatmul.f32.gmra.mxu0 %v997
          %v1061 = vpop.f32.mrf.mxu0
          %v1062 = vadd.f32 %v975, %v1061
          %1063 = vmatmul.f32.gmra.mxu0 %v1000
          %v1064 = vpop.f32.mrf.mxu0
          %v1065 = vadd.f32 %v975, %v1064
          %1066 = vmatmul.f32.gmra.mxu0 %v1003
          %v1067 = vpop.f32.mrf.mxu0
          %v1068 = vadd.f32 %v975, %v1067
          %1069 = vmatmul.f32.gmra.mxu0 %v1006
          %v1070 = vpop.f32.mrf.mxu0
          %v1071 = vadd.f32 %v975, %v1070
          %1072 = vmatmul.f32.gmra.mxu0 %v1009
          %v1073 = vpop.f32.mrf.mxu0
          %v1074 = vadd.f32 %v975, %v1073
          %1075 = vmatmul.f32.gmra.mxu0 %v1012
          %v1076 = vpop.f32.mrf.mxu0
          %v1077 = vadd.f32 %v975, %v1076
          %1078 = vmatmul.f32.gmra.mxu0 %v1015
          %v1079 = vpop.f32.mrf.mxu0
          %v1080 = vadd.f32 %v975, %v1079
          %1081 = vmatmul.f32.gmra.mxu0 %v1018
          %v1082 = vpop.f32.mrf.mxu0
          %v1083 = vadd.f32 %v975, %v1082
          %1084 = vmatmul.f32.gmra.mxu0 %v1021
          %v1085 = vpop.f32.mrf.mxu0
          %v1086 = vadd.f32 %v975, %v1085
          %1087 = vmatmul.f32.gmra.mxu0 %v1024
          %v1088 = vpop.f32.mrf.mxu0
          %v1089 = vadd.f32 %v975, %v1088
          %1090 = vdwg.mxu0
          %v1091 = vld [vmem:[%s446] sm:$0xf]
          %v1092 = vld [vmem:[%s446 + $0x4] sm:$0xf]
          %v1093 = vld [vmem:[%s446 + $0x8] sm:$0xf]
          %v1094 = vld [vmem:[%s446 + $0xc] sm:$0xf]
          %v1095 = vld [vmem:[%s446 + $0x10] sm:$0xf]
          %v1096 = vld [vmem:[%s446 + $0x14] sm:$0xf]
          %v1097 = vld [vmem:[%s446 + $0x18] sm:$0xf]
          %v1098 = vld [vmem:[%s446 + $0x1c] sm:$0xf]
          %v1099 = vld [vmem:[%s446 + $0x20] sm:$0xf]
          %v1100 = vld [vmem:[%s446 + $0x24] sm:$0xf]
          %v1101 = vld [vmem:[%s446 + $0x28] sm:$0xf]
          %v1102 = vld [vmem:[%s446 + $0x2c] sm:$0xf]
          %v1103 = vld [vmem:[%s446 + $0x30] sm:$0xf]
          %v1104 = vld [vmem:[%s446 + $0x34] sm:$0xf]
          %v1105 = vld [vmem:[%s446 + $0x38] sm:$0xf]
          %v1106 = vld [vmem:[%s446 + $0x3c] sm:$0xf]
          %v1107 = vunpack.c.l.bf16 %v1091
          %v1108 = vunpack.c.l.bf16 %v1092
          %v1109 = vunpack.c.l.bf16 %v1093
          %v1110 = vunpack.c.l.bf16 %v1094
          %v1111 = vunpack.c.l.bf16 %v1095
          %v1112 = vunpack.c.l.bf16 %v1096
          %v1113 = vunpack.c.l.bf16 %v1097
          %v1114 = vunpack.c.l.bf16 %v1098
          %v1115 = vunpack.c.l.bf16 %v1099
          %v1116 = vunpack.c.l.bf16 %v1100
          %v1117 = vunpack.c.l.bf16 %v1101
          %v1118 = vunpack.c.l.bf16 %v1102
          %v1119 = vunpack.c.l.bf16 %v1103
          %v1120 = vunpack.c.l.bf16 %v1104
          %v1121 = vunpack.c.l.bf16 %v1105
          %v1122 = vunpack.c.l.bf16 %v1106
          %v1123 = vld [vmem:[#allocation2] sm:$0xff]
          %v1124 = vld [vmem:[#allocation2 + $0x8] sm:$0xff]
          %v1125 = vld [vmem:[#allocation2 + $0x10] sm:$0xff]
          %v1126 = vld [vmem:[#allocation2 + $0x18] sm:$0xff]
          %v1127 = vld [vmem:[#allocation2 + $0x20] sm:$0xff]
          %v1128 = vld [vmem:[#allocation2 + $0x28] sm:$0xff]
          %v1129 = vld [vmem:[#allocation2 + $0x30] sm:$0xff]
          %v1130 = vld [vmem:[#allocation2 + $0x38] sm:$0xff]
          %v1131 = vld [vmem:[#allocation2 + $0x40] sm:$0xff]
          %v1132 = vld [vmem:[#allocation2 + $0x48] sm:$0xff]
          %v1133 = vld [vmem:[#allocation2 + $0x50] sm:$0xff]
          %v1134 = vld [vmem:[#allocation2 + $0x58] sm:$0xff]
          %v1135 = vld [vmem:[#allocation2 + $0x60] sm:$0xff]
          %v1136 = vld [vmem:[#allocation2 + $0x68] sm:$0xff]
          %v1137 = vld [vmem:[#allocation2 + $0x70] sm:$0xff]
          %v1138 = vld [vmem:[#allocation2 + $0x78] sm:$0xff]
          %vm1139 = vcmask 130048
          %v1141 = vsel %vm1139, %v1123, 0
          %v1144 = vsel %vm1139, %v1124, 0
          %v1147 = vsel %vm1139, %v1125, 0
          %v1150 = vsel %vm1139, %v1126, 0
          %v1153 = vsel %vm1139, %v1127, 0
          %v1156 = vsel %vm1139, %v1128, 0
          %v1159 = vsel %vm1139, %v1129, 0
          %v1162 = vsel %vm1139, %v1130, 0
          %v1165 = vsel %vm1139, %v1131, 0
          %v1168 = vsel %vm1139, %v1132, 0
          %v1171 = vsel %vm1139, %v1133, 0
          %v1174 = vsel %vm1139, %v1134, 0
          %v1177 = vsel %vm1139, %v1135, 0
          %v1180 = vsel %vm1139, %v1136, 0
          %v1183 = vsel %vm1139, %v1137, 0
          %v1186 = vsel %vm1139, %v1138, 0
          %v1189 = vsel %vm1139, %v1044, 0
          %v1192 = vsel %vm1139, %v1047, 0
          %v1195 = vsel %vm1139, %v1050, 0
          %v1198 = vsel %vm1139, %v1053, 0
          %v1201 = vsel %vm1139, %v1056, 0
          %v1204 = vsel %vm1139, %v1059, 0
          %v1207 = vsel %vm1139, %v1062, 0
          %v1210 = vsel %vm1139, %v1065, 0
          %v1213 = vsel %vm1139, %v1068, 0
          %v1216 = vsel %vm1139, %v1071, 0
          %v1219 = vsel %vm1139, %v1074, 0
          %v1222 = vsel %vm1139, %v1077, 0
          %v1225 = vsel %vm1139, %v1080, 0
          %v1228 = vsel %vm1139, %v1083, 0
          %v1231 = vsel %vm1139, %v1086, 0
          %v1234 = vsel %vm1139, %v1089, 0
          %1236 = vmatpush.xpose.msra.mxu0 %v1234
          %1237 = vmatpush.xpose.msra.mxu0 %v1231
          %1238 = vmatpush.xpose.msra.mxu0 %v1228
          %1239 = vmatpush.xpose.msra.mxu0 %v1225
          %1240 = vmatpush.xpose.msra.mxu0 %v1222
          %1241 = vmatpush.xpose.msra.mxu0 %v1219
          %1242 = vmatpush.xpose.msra.mxu0 %v1216
          %1243 = vmatpush.xpose.msra.mxu0 %v1213
          %1244 = vmatpush.xpose.msra.mxu0 %v1210
          %1245 = vmatpush.xpose.msra.mxu0 %v1207
          %1246 = vmatpush.xpose.msra.mxu0 %v1204
          %1247 = vmatpush.xpose.msra.mxu0 %v1201
          %1248 = vmatpush.xpose.msra.mxu0 %v1198
          %1249 = vmatpush.xpose.msra.mxu0 %v1195
          %1250 = vmatpush.xpose.msra.mxu0 %v1192
          %1251 = vmatpush.xpose.msra.mxu0 %v1189
          %1252 = vmatmul.f32.gmra.mxu0 %v1141
          %v1253 = vpop.f32.mrf.mxu0
          %v1254 = vadd.f32 0.0, %v1253
          %1255 = vmatmul.f32.gmra.mxu0 %v1144
          %v1256 = vpop.f32.mrf.mxu0
          %v1257 = vadd.f32 0.0, %v1256
          %1258 = vmatmul.f32.gmra.mxu0 %v1147
          %v1259 = vpop.f32.mrf.mxu0
          %v1260 = vadd.f32 0.0, %v1259
          %1261 = vmatmul.f32.gmra.mxu0 %v1150
          %v1262 = vpop.f32.mrf.mxu0
          %v1263 = vadd.f32 0.0, %v1262
          %1264 = vmatmul.f32.gmra.mxu0 %v1153
          %v1265 = vpop.f32.mrf.mxu0
          %v1266 = vadd.f32 0.0, %v1265
          %1267 = vmatmul.f32.gmra.mxu0 %v1156
          %v1268 = vpop.f32.mrf.mxu0
          %v1269 = vadd.f32 0.0, %v1268
          %1270 = vmatmul.f32.gmra.mxu0 %v1159
          %v1271 = vpop.f32.mrf.mxu0
          %v1272 = vadd.f32 0.0, %v1271
          %1273 = vmatmul.f32.gmra.mxu0 %v1162
          %v1274 = vpop.f32.mrf.mxu0
          %v1275 = vadd.f32 0.0, %v1274
          %1276 = vmatmul.f32.gmra.mxu0 %v1165
          %v1277 = vpop.f32.mrf.mxu0
          %v1278 = vadd.f32 0.0, %v1277
          %1279 = vmatmul.f32.gmra.mxu0 %v1168
          %v1280 = vpop.f32.mrf.mxu0
          %v1281 = vadd.f32 0.0, %v1280
          %1282 = vmatmul.f32.gmra.mxu0 %v1171
          %v1283 = vpop.f32.mrf.mxu0
          %v1284 = vadd.f32 0.0, %v1283
          %1285 = vmatmul.f32.gmra.mxu0 %v1174
          %v1286 = vpop.f32.mrf.mxu0
          %v1287 = vadd.f32 0.0, %v1286
          %1288 = vmatmul.f32.gmra.mxu0 %v1177
          %v1289 = vpop.f32.mrf.mxu0
          %v1290 = vadd.f32 0.0, %v1289
          %1291 = vmatmul.f32.gmra.mxu0 %v1180
          %v1292 = vpop.f32.mrf.mxu0
          %v1293 = vadd.f32 0.0, %v1292
          %1294 = vmatmul.f32.gmra.mxu0 %v1183
          %v1295 = vpop.f32.mrf.mxu0
          %v1296 = vadd.f32 0.0, %v1295
          %1297 = vmatmul.f32.gmra.mxu0 %v1186
          %v1298 = vpop.f32.mrf.mxu0
          %v1299 = vadd.f32 0.0, %v1298
          %1300 = vdwg.mxu0
          %v1301 = vld [vmem:[#allocation4] sm:$0xff]
          %v1302 = vld [vmem:[#allocation4 + $0x8] sm:$0xff]
          %v1303 = vld [vmem:[#allocation4 + $0x10] sm:$0xff]
          %v1304 = vld [vmem:[#allocation4 + $0x18] sm:$0xff]
          %v1305 = vld [vmem:[#allocation4 + $0x20] sm:$0xff]
          %v1306 = vld [vmem:[#allocation4 + $0x28] sm:$0xff]
          %v1307 = vld [vmem:[#allocation4 + $0x30] sm:$0xff]
          %v1308 = vld [vmem:[#allocation4 + $0x38] sm:$0xff]
          %v1309 = vld [vmem:[#allocation4 + $0x40] sm:$0xff]
          %v1310 = vld [vmem:[#allocation4 + $0x48] sm:$0xff]
          %v1311 = vld [vmem:[#allocation4 + $0x50] sm:$0xff]
          %v1312 = vld [vmem:[#allocation4 + $0x58] sm:$0xff]
          %v1313 = vld [vmem:[#allocation4 + $0x60] sm:$0xff]
          %v1314 = vld [vmem:[#allocation4 + $0x68] sm:$0xff]
          %v1315 = vld [vmem:[#allocation4 + $0x70] sm:$0xff]
          %v1316 = vld [vmem:[#allocation4 + $0x78] sm:$0xff]
          %1317 = vmax.xlane.f32.xlu0 %v1254
          %v1318 = vpop.xlane.xlu0 %1317
          %1319 = vmax.xlane.f32.xlu0 %v1257
          %v1320 = vpop.xlane.xlu0 %1319
          %1321 = vmax.xlane.f32.xlu0 %v1260
          %v1322 = vpop.xlane.xlu0 %1321
          %1323 = vmax.xlane.f32.xlu0 %v1263
          %v1324 = vpop.xlane.xlu0 %1323
          %1325 = vmax.xlane.f32.xlu0 %v1266
          %v1326 = vpop.xlane.xlu0 %1325
          %1327 = vmax.xlane.f32.xlu0 %v1269
          %v1328 = vpop.xlane.xlu0 %1327
          %1329 = vmax.xlane.f32.xlu0 %v1272
          %v1330 = vpop.xlane.xlu0 %1329
          %1331 = vmax.xlane.f32.xlu0 %v1275
          %v1332 = vpop.xlane.xlu0 %1331
          %1333 = vmax.xlane.f32.xlu0 %v1278
          %v1334 = vpop.xlane.xlu0 %1333
          %1335 = vmax.xlane.f32.xlu0 %v1281
          %v1336 = vpop.xlane.xlu0 %1335
          %1337 = vmax.xlane.f32.xlu0 %v1284
          %v1338 = vpop.xlane.xlu0 %1337
          %1339 = vmax.xlane.f32.xlu0 %v1287
          %v1340 = vpop.xlane.xlu0 %1339
          %1341 = vmax.xlane.f32.xlu0 %v1290
          %v1342 = vpop.xlane.xlu0 %1341
          %1343 = vmax.xlane.f32.xlu0 %v1293
          %v1344 = vpop.xlane.xlu0 %1343
          %1345 = vmax.xlane.f32.xlu0 %v1296
          %v1346 = vpop.xlane.xlu0 %1345
          %1347 = vmax.xlane.f32.xlu0 %v1299
          %v1348 = vpop.xlane.xlu0 %1347
          %v1349 = vmax.f32 %v1301, %v1318
          %v1350 = vmax.f32 %v1302, %v1320
          %v1351 = vmax.f32 %v1303, %v1322
          %v1352 = vmax.f32 %v1304, %v1324
          %v1353 = vmax.f32 %v1305, %v1326
          %v1354 = vmax.f32 %v1306, %v1328
          %v1355 = vmax.f32 %v1307, %v1330
          %v1356 = vmax.f32 %v1308, %v1332
          %v1357 = vmax.f32 %v1309, %v1334
          %v1358 = vmax.f32 %v1310, %v1336
          %v1359 = vmax.f32 %v1311, %v1338
          %v1360 = vmax.f32 %v1312, %v1340
          %v1361 = vmax.f32 %v1313, %v1342
          %v1362 = vmax.f32 %v1314, %v1344
          %v1363 = vmax.f32 %v1315, %v1346
          %v1364 = vmax.f32 %v1316, %v1348
          %v1365 = vsub.f32 %v1301, %v1349
          %v1366 = vsub.f32 %v1302, %v1350
          %v1367 = vsub.f32 %v1303, %v1351
          %v1368 = vsub.f32 %v1304, %v1352
          %v1369 = vsub.f32 %v1305, %v1353
          %v1370 = vsub.f32 %v1306, %v1354
          %v1371 = vsub.f32 %v1307, %v1355
          %v1372 = vsub.f32 %v1308, %v1356
          %v1373 = vsub.f32 %v1309, %v1357
          %v1374 = vsub.f32 %v1310, %v1358
          %v1375 = vsub.f32 %v1311, %v1359
          %v1376 = vsub.f32 %v1312, %v1360
          %v1377 = vsub.f32 %v1313, %v1361
          %v1378 = vsub.f32 %v1314, %v1362
          %v1379 = vsub.f32 %v1315, %v1363
          %v1380 = vsub.f32 %v1316, %v1364
          %v1381 = vmul.f32 %v1365, 1.442695
          %v1382 = vpow.pop %v1381
          %v1383 = vmul.f32 %v1366, 1.442695
          %v1384 = vpow.pop %v1383
          %v1385 = vmul.f32 %v1367, 1.442695
          %v1386 = vpow.pop %v1385
          %v1387 = vmul.f32 %v1368, 1.442695
          %v1388 = vpow.pop %v1387
          %v1389 = vmul.f32 %v1369, 1.442695
          %v1390 = vpow.pop %v1389
          %v1391 = vmul.f32 %v1370, 1.442695
          %v1392 = vpow.pop %v1391
          %v1393 = vmul.f32 %v1371, 1.442695
          %v1394 = vpow.pop %v1393
          %v1395 = vmul.f32 %v1372, 1.442695
          %v1396 = vpow.pop %v1395
          %v1397 = vmul.f32 %v1373, 1.442695
          %v1398 = vpow.pop %v1397
          %v1399 = vmul.f32 %v1374, 1.442695
          %v1400 = vpow.pop %v1399
          %v1401 = vmul.f32 %v1375, 1.442695
          %v1402 = vpow.pop %v1401
          %v1403 = vmul.f32 %v1376, 1.442695
          %v1404 = vpow.pop %v1403
          %v1405 = vmul.f32 %v1377, 1.442695
          %v1406 = vpow.pop %v1405
          %v1407 = vmul.f32 %v1378, 1.442695
          %v1408 = vpow.pop %v1407
          %v1409 = vmul.f32 %v1379, 1.442695
          %v1410 = vpow.pop %v1409
          %v1411 = vmul.f32 %v1380, 1.442695
          %v1412 = vpow.pop %v1411
          %1414 = vset.pattern.permute.xlu0 0
          %1415 = vperm.xlu0 %1414, %v1349
          %v1416 = vpop.permute.xlu0 %1415
          %1419 = vset.pattern.permute.xlu0 0
          %1420 = vperm.xlu0 %1419, %v1350
          %v1421 = vpop.permute.xlu0 %1420
          %1424 = vset.pattern.permute.xlu0 0
          %1425 = vperm.xlu0 %1424, %v1351
          %v1426 = vpop.permute.xlu0 %1425
          %1429 = vset.pattern.permute.xlu0 0
          %1430 = vperm.xlu0 %1429, %v1352
          %v1431 = vpop.permute.xlu0 %1430
          %1434 = vset.pattern.permute.xlu0 0
          %1435 = vperm.xlu0 %1434, %v1353
          %v1436 = vpop.permute.xlu0 %1435
          %1439 = vset.pattern.permute.xlu0 0
          %1440 = vperm.xlu0 %1439, %v1354
          %v1441 = vpop.permute.xlu0 %1440
          %1444 = vset.pattern.permute.xlu0 0
          %1445 = vperm.xlu0 %1444, %v1355
          %v1446 = vpop.permute.xlu0 %1445
          %1449 = vset.pattern.permute.xlu0 0
          %1450 = vperm.xlu0 %1449, %v1356
          %v1451 = vpop.permute.xlu0 %1450
          %1454 = vset.pattern.permute.xlu0 0
          %1455 = vperm.xlu0 %1454, %v1357
          %v1456 = vpop.permute.xlu0 %1455
          %1459 = vset.pattern.permute.xlu0 0
          %1460 = vperm.xlu0 %1459, %v1358
          %v1461 = vpop.permute.xlu0 %1460
          %1464 = vset.pattern.permute.xlu0 0
          %1465 = vperm.xlu0 %1464, %v1359
          %v1466 = vpop.permute.xlu0 %1465
          %1469 = vset.pattern.permute.xlu0 0
          %1470 = vperm.xlu0 %1469, %v1360
          %v1471 = vpop.permute.xlu0 %1470
          %1474 = vset.pattern.permute.xlu0 0
          %1475 = vperm.xlu0 %1474, %v1361
          %v1476 = vpop.permute.xlu0 %1475
          %1479 = vset.pattern.permute.xlu0 0
          %1480 = vperm.xlu0 %1479, %v1362
          %v1481 = vpop.permute.xlu0 %1480
          %1484 = vset.pattern.permute.xlu0 0
          %1485 = vperm.xlu0 %1484, %v1363
          %v1486 = vpop.permute.xlu0 %1485
          %1489 = vset.pattern.permute.xlu0 0
          %1490 = vperm.xlu0 %1489, %v1364
          %v1491 = vpop.permute.xlu0 %1490
          %v1493 = vsub.f32 %v1254, %v1416
          %v1494 = vsub.f32 %v1257, %v1421
          %v1495 = vsub.f32 %v1260, %v1426
          %v1496 = vsub.f32 %v1263, %v1431
          %v1497 = vsub.f32 %v1266, %v1436
          %v1498 = vsub.f32 %v1269, %v1441
          %v1499 = vsub.f32 %v1272, %v1446
          %v1500 = vsub.f32 %v1275, %v1451
          %v1501 = vsub.f32 %v1278, %v1456
          %v1502 = vsub.f32 %v1281, %v1461
          %v1503 = vsub.f32 %v1284, %v1466
          %v1504 = vsub.f32 %v1287, %v1471
          %v1505 = vsub.f32 %v1290, %v1476
          %v1506 = vsub.f32 %v1293, %v1481
          %v1507 = vsub.f32 %v1296, %v1486
          %v1508 = vsub.f32 %v1299, %v1491
          %v1509 = vmul.f32 %v1493, 1.442695
          %v1510 = vpow.pop %v1509
          %v1511 = vmul.f32 %v1494, 1.442695
          %v1512 = vpow.pop %v1511
          %v1513 = vmul.f32 %v1495, 1.442695
          %v1514 = vpow.pop %v1513
          %v1515 = vmul.f32 %v1496, 1.442695
          %v1516 = vpow.pop %v1515
          %v1517 = vmul.f32 %v1497, 1.442695
          %v1518 = vpow.pop %v1517
          %v1519 = vmul.f32 %v1498, 1.442695
          %v1520 = vpow.pop %v1519
          %v1521 = vmul.f32 %v1499, 1.442695
          %v1522 = vpow.pop %v1521
          %v1523 = vmul.f32 %v1500, 1.442695
          %v1524 = vpow.pop %v1523
          %v1525 = vmul.f32 %v1501, 1.442695
          %v1526 = vpow.pop %v1525
          %v1527 = vmul.f32 %v1502, 1.442695
          %v1528 = vpow.pop %v1527
          %v1529 = vmul.f32 %v1503, 1.442695
          %v1530 = vpow.pop %v1529
          %v1531 = vmul.f32 %v1504, 1.442695
          %v1532 = vpow.pop %v1531
          %v1533 = vmul.f32 %v1505, 1.442695
          %v1534 = vpow.pop %v1533
          %v1535 = vmul.f32 %v1506, 1.442695
          %v1536 = vpow.pop %v1535
          %v1537 = vmul.f32 %v1507, 1.442695
          %v1538 = vpow.pop %v1537
          %v1539 = vmul.f32 %v1508, 1.442695
          %v1540 = vpow.pop %v1539
          %v1541 = vmul.f32 %v1510, %v1107
          %v1542 = vmul.f32 %v1512, %v1108
          %v1543 = vmul.f32 %v1514, %v1109
          %v1544 = vmul.f32 %v1516, %v1110
          %v1545 = vmul.f32 %v1518, %v1111
          %v1546 = vmul.f32 %v1520, %v1112
          %v1547 = vmul.f32 %v1522, %v1113
          %v1548 = vmul.f32 %v1524, %v1114
          %v1549 = vmul.f32 %v1526, %v1115
          %v1550 = vmul.f32 %v1528, %v1116
          %v1551 = vmul.f32 %v1530, %v1117
          %v1552 = vmul.f32 %v1532, %v1118
          %v1553 = vmul.f32 %v1534, %v1119
          %v1554 = vmul.f32 %v1536, %v1120
          %v1555 = vmul.f32 %v1538, %v1121
          %v1556 = vmul.f32 %v1540, %v1122
          %v1557 = vld [vmem:[#allocation5] sm:$0xff]
          %v1558 = vld [vmem:[#allocation5 + $0x8] sm:$0xff]
          %v1559 = vld [vmem:[#allocation5 + $0x10] sm:$0xff]
          %v1560 = vld [vmem:[#allocation5 + $0x18] sm:$0xff]
          %v1561 = vld [vmem:[#allocation5 + $0x20] sm:$0xff]
          %v1562 = vld [vmem:[#allocation5 + $0x28] sm:$0xff]
          %v1563 = vld [vmem:[#allocation5 + $0x30] sm:$0xff]
          %v1564 = vld [vmem:[#allocation5 + $0x38] sm:$0xff]
          %v1565 = vld [vmem:[#allocation5 + $0x40] sm:$0xff]
          %v1566 = vld [vmem:[#allocation5 + $0x48] sm:$0xff]
          %v1567 = vld [vmem:[#allocation5 + $0x50] sm:$0xff]
          %v1568 = vld [vmem:[#allocation5 + $0x58] sm:$0xff]
          %v1569 = vld [vmem:[#allocation5 + $0x60] sm:$0xff]
          %v1570 = vld [vmem:[#allocation5 + $0x68] sm:$0xff]
          %v1571 = vld [vmem:[#allocation5 + $0x70] sm:$0xff]
          %v1572 = vld [vmem:[#allocation5 + $0x78] sm:$0xff]
          %v1573 = vmul.f32 %v1382, %v1557
          %v1574 = vmul.f32 %v1384, %v1558
          %v1575 = vmul.f32 %v1386, %v1559
          %v1576 = vmul.f32 %v1388, %v1560
          %v1577 = vmul.f32 %v1390, %v1561
          %v1578 = vmul.f32 %v1392, %v1562
          %v1579 = vmul.f32 %v1394, %v1563
          %v1580 = vmul.f32 %v1396, %v1564
          %v1581 = vmul.f32 %v1398, %v1565
          %v1582 = vmul.f32 %v1400, %v1566
          %v1583 = vmul.f32 %v1402, %v1567
          %v1584 = vmul.f32 %v1404, %v1568
          %v1585 = vmul.f32 %v1406, %v1569
          %v1586 = vmul.f32 %v1408, %v1570
          %v1587 = vmul.f32 %v1410, %v1571
          %v1588 = vmul.f32 %v1412, %v1572
          %1589 = vadd.xlane.f32.xlu0 %v1541
          %v1590 = vpop.xlane.xlu0 %1589
          %1591 = vadd.xlane.f32.xlu0 %v1542
          %v1592 = vpop.xlane.xlu0 %1591
          %1593 = vadd.xlane.f32.xlu0 %v1543
          %v1594 = vpop.xlane.xlu0 %1593
          %1595 = vadd.xlane.f32.xlu0 %v1544
          %v1596 = vpop.xlane.xlu0 %1595
          %1597 = vadd.xlane.f32.xlu0 %v1545
          %v1598 = vpop.xlane.xlu0 %1597
          %1599 = vadd.xlane.f32.xlu0 %v1546
          %v1600 = vpop.xlane.xlu0 %1599
          %1601 = vadd.xlane.f32.xlu0 %v1547
          %v1602 = vpop.xlane.xlu0 %1601
          %1603 = vadd.xlane.f32.xlu0 %v1548
          %v1604 = vpop.xlane.xlu0 %1603
          %1605 = vadd.xlane.f32.xlu0 %v1549
          %v1606 = vpop.xlane.xlu0 %1605
          %1607 = vadd.xlane.f32.xlu0 %v1550
          %v1608 = vpop.xlane.xlu0 %1607
          %1609 = vadd.xlane.f32.xlu0 %v1551
          %v1610 = vpop.xlane.xlu0 %1609
          %1611 = vadd.xlane.f32.xlu0 %v1552
          %v1612 = vpop.xlane.xlu0 %1611
          %1613 = vadd.xlane.f32.xlu0 %v1553
          %v1614 = vpop.xlane.xlu0 %1613
          %1615 = vadd.xlane.f32.xlu0 %v1554
          %v1616 = vpop.xlane.xlu0 %1615
          %1617 = vadd.xlane.f32.xlu0 %v1555
          %v1618 = vpop.xlane.xlu0 %1617
          %1619 = vadd.xlane.f32.xlu0 %v1556
          %v1620 = vpop.xlane.xlu0 %1619
          %v1621 = vadd.f32 %v1573, %v1590
          %v1622 = vadd.f32 %v1574, %v1592
          %v1623 = vadd.f32 %v1575, %v1594
          %v1624 = vadd.f32 %v1576, %v1596
          %v1625 = vadd.f32 %v1577, %v1598
          %v1626 = vadd.f32 %v1578, %v1600
          %v1627 = vadd.f32 %v1579, %v1602
          %v1628 = vadd.f32 %v1580, %v1604
          %v1629 = vadd.f32 %v1581, %v1606
          %v1630 = vadd.f32 %v1582, %v1608
          %v1631 = vadd.f32 %v1583, %v1610
          %v1632 = vadd.f32 %v1584, %v1612
          %v1633 = vadd.f32 %v1585, %v1614
          %v1634 = vadd.f32 %v1586, %v1616
          %v1635 = vadd.f32 %v1587, %v1618
          %v1636 = vadd.f32 %v1588, %v1620
          %vm1637 = vcmask 7168
          %1638 = vst.msk [vmem:[#allocation5] sm:$0xff] %vm1637, %v1621
          %1639 = vst.msk [vmem:[#allocation5 + $0x8] sm:$0xff] %vm1637, %v1622
          %1640 = vst.msk [vmem:[#allocation5 + $0x10] sm:$0xff] %vm1637, %v1623
          %1641 = vst.msk [vmem:[#allocation5 + $0x18] sm:$0xff] %vm1637, %v1624
          %1642 = vst.msk [vmem:[#allocation5 + $0x20] sm:$0xff] %vm1637, %v1625
          %1643 = vst.msk [vmem:[#allocation5 + $0x28] sm:$0xff] %vm1637, %v1626
          %1644 = vst.msk [vmem:[#allocation5 + $0x30] sm:$0xff] %vm1637, %v1627
          %1645 = vst.msk [vmem:[#allocation5 + $0x38] sm:$0xff] %vm1637, %v1628
          %1646 = vst.msk [vmem:[#allocation5 + $0x40] sm:$0xff] %vm1637, %v1629
          %1647 = vst.msk [vmem:[#allocation5 + $0x48] sm:$0xff] %vm1637, %v1630
          %1648 = vst.msk [vmem:[#allocation5 + $0x50] sm:$0xff] %vm1637, %v1631
          %1649 = vst.msk [vmem:[#allocation5 + $0x58] sm:$0xff] %vm1637, %v1632
          %1650 = vst.msk [vmem:[#allocation5 + $0x60] sm:$0xff] %vm1637, %v1633
          %1651 = vst.msk [vmem:[#allocation5 + $0x68] sm:$0xff] %vm1637, %v1634
          %1652 = vst.msk [vmem:[#allocation5 + $0x70] sm:$0xff] %vm1637, %v1635
          %1653 = vst.msk [vmem:[#allocation5 + $0x78] sm:$0xff] %vm1637, %v1636
          %v1654 = vld [vmem:[#allocation6] sm:$0xff]
          %v1655 = vld [vmem:[#allocation6 + $0x8] sm:$0xff]
          %v1656 = vld [vmem:[#allocation6 + $0x10] sm:$0xff]
          %v1657 = vld [vmem:[#allocation6 + $0x18] sm:$0xff]
          %v1658 = vld [vmem:[#allocation6 + $0x20] sm:$0xff]
          %v1659 = vld [vmem:[#allocation6 + $0x28] sm:$0xff]
          %v1660 = vld [vmem:[#allocation6 + $0x30] sm:$0xff]
          %v1661 = vld [vmem:[#allocation6 + $0x38] sm:$0xff]
          %v1662 = vld [vmem:[#allocation6 + $0x40] sm:$0xff]
          %v1663 = vld [vmem:[#allocation6 + $0x48] sm:$0xff]
          %v1664 = vld [vmem:[#allocation6 + $0x50] sm:$0xff]
          %v1665 = vld [vmem:[#allocation6 + $0x58] sm:$0xff]
          %v1666 = vld [vmem:[#allocation6 + $0x60] sm:$0xff]
          %v1667 = vld [vmem:[#allocation6 + $0x68] sm:$0xff]
          %v1668 = vld [vmem:[#allocation6 + $0x70] sm:$0xff]
          %v1669 = vld [vmem:[#allocation6 + $0x78] sm:$0xff]
          %1671 = vset.pattern.permute.xlu0 0
          %1672 = vperm.xlu0 %1671, %v1382
          %v1673 = vpop.permute.xlu0 %1672
          %1676 = vset.pattern.permute.xlu0 0
          %1677 = vperm.xlu0 %1676, %v1384
          %v1678 = vpop.permute.xlu0 %1677
          %1681 = vset.pattern.permute.xlu0 0
          %1682 = vperm.xlu0 %1681, %v1386
          %v1683 = vpop.permute.xlu0 %1682
          %1686 = vset.pattern.permute.xlu0 0
          %1687 = vperm.xlu0 %1686, %v1388
          %v1688 = vpop.permute.xlu0 %1687
          %1691 = vset.pattern.permute.xlu0 0
          %1692 = vperm.xlu0 %1691, %v1390
          %v1693 = vpop.permute.xlu0 %1692
          %1696 = vset.pattern.permute.xlu0 0
          %1697 = vperm.xlu0 %1696, %v1392
          %v1698 = vpop.permute.xlu0 %1697
          %1701 = vset.pattern.permute.xlu0 0
          %1702 = vperm.xlu0 %1701, %v1394
          %v1703 = vpop.permute.xlu0 %1702
          %1706 = vset.pattern.permute.xlu0 0
          %1707 = vperm.xlu0 %1706, %v1396
          %v1708 = vpop.permute.xlu0 %1707
          %1711 = vset.pattern.permute.xlu0 0
          %1712 = vperm.xlu0 %1711, %v1398
          %v1713 = vpop.permute.xlu0 %1712
          %1716 = vset.pattern.permute.xlu0 0
          %1717 = vperm.xlu0 %1716, %v1400
          %v1718 = vpop.permute.xlu0 %1717
          %1721 = vset.pattern.permute.xlu0 0
          %1722 = vperm.xlu0 %1721, %v1402
          %v1723 = vpop.permute.xlu0 %1722
          %1726 = vset.pattern.permute.xlu0 0
          %1727 = vperm.xlu0 %1726, %v1404
          %v1728 = vpop.permute.xlu0 %1727
          %1731 = vset.pattern.permute.xlu0 0
          %1732 = vperm.xlu0 %1731, %v1406
          %v1733 = vpop.permute.xlu0 %1732
          %1736 = vset.pattern.permute.xlu0 0
          %1737 = vperm.xlu0 %1736, %v1408
          %v1738 = vpop.permute.xlu0 %1737
          %1741 = vset.pattern.permute.xlu0 0
          %1742 = vperm.xlu0 %1741, %v1410
          %v1743 = vpop.permute.xlu0 %1742
          %1746 = vset.pattern.permute.xlu0 0
          %1747 = vperm.xlu0 %1746, %v1412
          %v1748 = vpop.permute.xlu0 %1747
          %v1750 = vmul.f32 %v1673, %v1654
          %v1751 = vmul.f32 %v1678, %v1655
          %v1752 = vmul.f32 %v1683, %v1656
          %v1753 = vmul.f32 %v1688, %v1657
          %v1754 = vmul.f32 %v1693, %v1658
          %v1755 = vmul.f32 %v1698, %v1659
          %v1756 = vmul.f32 %v1703, %v1660
          %v1757 = vmul.f32 %v1708, %v1661
          %v1758 = vmul.f32 %v1713, %v1662
          %v1759 = vmul.f32 %v1718, %v1663
          %v1760 = vmul.f32 %v1723, %v1664
          %v1761 = vmul.f32 %v1728, %v1665
          %v1762 = vmul.f32 %v1733, %v1666
          %v1763 = vmul.f32 %v1738, %v1667
          %v1764 = vmul.f32 %v1743, %v1668
          %v1765 = vmul.f32 %v1748, %v1669
          %1766 = vrot.lane.b32.xlu0 %v1044, 64
          %v1767 = vpop.permute.xlu0 %1766
          %1768 = vrot.lane.b32.xlu0 %v1047, 64
          %v1769 = vpop.permute.xlu0 %1768
          %1770 = vrot.lane.b32.xlu0 %v1050, 64
          %v1771 = vpop.permute.xlu0 %1770
          %1772 = vrot.lane.b32.xlu0 %v1053, 64
          %v1773 = vpop.permute.xlu0 %1772
          %1774 = vrot.lane.b32.xlu0 %v1056, 64
          %v1775 = vpop.permute.xlu0 %1774
          %1776 = vrot.lane.b32.xlu0 %v1059, 64
          %v1777 = vpop.permute.xlu0 %1776
          %1778 = vrot.lane.b32.xlu0 %v1062, 64
          %v1779 = vpop.permute.xlu0 %1778
          %1780 = vrot.lane.b32.xlu0 %v1065, 64
          %v1781 = vpop.permute.xlu0 %1780
          %1782 = vrot.lane.b32.xlu0 %v1068, 64
          %v1783 = vpop.permute.xlu0 %1782
          %1784 = vrot.lane.b32.xlu0 %v1071, 64
          %v1785 = vpop.permute.xlu0 %1784
          %1786 = vrot.lane.b32.xlu0 %v1074, 64
          %v1787 = vpop.permute.xlu0 %1786
          %1788 = vrot.lane.b32.xlu0 %v1077, 64
          %v1789 = vpop.permute.xlu0 %1788
          %1790 = vrot.lane.b32.xlu0 %v1080, 64
          %v1791 = vpop.permute.xlu0 %1790
          %1792 = vrot.lane.b32.xlu0 %v1083, 64
          %v1793 = vpop.permute.xlu0 %1792
          %1794 = vrot.lane.b32.xlu0 %v1086, 64
          %v1795 = vpop.permute.xlu0 %1794
          %1796 = vrot.lane.b32.xlu0 %v1089, 64
          %v1797 = vpop.permute.xlu0 %1796
          %1814 = vmatpush.msra.mxu0 %v1797
          %1815 = vmatpush.msra.mxu0 %v1795
          %1816 = vmatpush.msra.mxu0 %v1793
          %1817 = vmatpush.msra.mxu0 %v1791
          %1818 = vmatpush.msra.mxu0 %v1789
          %1819 = vmatpush.msra.mxu0 %v1787
          %1820 = vmatpush.msra.mxu0 %v1785
          %1821 = vmatpush.msra.mxu0 %v1783
          %1822 = vmatpush.msra.mxu0 %v1781
          %1823 = vmatpush.msra.mxu0 %v1779
          %1824 = vmatpush.msra.mxu0 %v1777
          %1825 = vmatpush.msra.mxu0 %v1775
          %1826 = vmatpush.msra.mxu0 %v1773
          %1827 = vmatpush.msra.mxu0 %v1771
          %1828 = vmatpush.msra.mxu0 %v1769
          %1829 = vmatpush.msra.mxu0 %v1767
          %1830 = vmatmul.f32.gmra.mxu0 %v1541
          %v1831 = vpop.f32.mrf.mxu0
          %v1832 = vadd.f32 0.0, %v1831
          %1833 = vmatmul.f32.gmra.mxu0 %v1542
          %v1834 = vpop.f32.mrf.mxu0
          %v1835 = vadd.f32 0.0, %v1834
          %1836 = vmatmul.f32.gmra.mxu0 %v1543
          %v1837 = vpop.f32.mrf.mxu0
          %v1838 = vadd.f32 0.0, %v1837
          %1839 = vmatmul.f32.gmra.mxu0 %v1544
          %v1840 = vpop.f32.mrf.mxu0
          %v1841 = vadd.f32 0.0, %v1840
          %1842 = vmatmul.f32.gmra.mxu0 %v1545
          %v1843 = vpop.f32.mrf.mxu0
          %v1844 = vadd.f32 0.0, %v1843
          %1845 = vmatmul.f32.gmra.mxu0 %v1546
          %v1846 = vpop.f32.mrf.mxu0
          %v1847 = vadd.f32 0.0, %v1846
          %1848 = vmatmul.f32.gmra.mxu0 %v1547
          %v1849 = vpop.f32.mrf.mxu0
          %v1850 = vadd.f32 0.0, %v1849
          %1851 = vmatmul.f32.gmra.mxu0 %v1548
          %v1852 = vpop.f32.mrf.mxu0
          %v1853 = vadd.f32 0.0, %v1852
          %1854 = vmatmul.f32.gmra.mxu0 %v1549
          %v1855 = vpop.f32.mrf.mxu0
          %v1856 = vadd.f32 0.0, %v1855
          %1857 = vmatmul.f32.gmra.mxu0 %v1550
          %v1858 = vpop.f32.mrf.mxu0
          %v1859 = vadd.f32 0.0, %v1858
          %1860 = vmatmul.f32.gmra.mxu0 %v1551
          %v1861 = vpop.f32.mrf.mxu0
          %v1862 = vadd.f32 0.0, %v1861
          %1863 = vmatmul.f32.gmra.mxu0 %v1552
          %v1864 = vpop.f32.mrf.mxu0
          %v1865 = vadd.f32 0.0, %v1864
          %1866 = vmatmul.f32.gmra.mxu0 %v1553
          %v1867 = vpop.f32.mrf.mxu0
          %v1868 = vadd.f32 0.0, %v1867
          %1869 = vmatmul.f32.gmra.mxu0 %v1554
          %v1870 = vpop.f32.mrf.mxu0
          %v1871 = vadd.f32 0.0, %v1870
          %1872 = vmatmul.f32.gmra.mxu0 %v1555
          %v1873 = vpop.f32.mrf.mxu0
          %v1874 = vadd.f32 0.0, %v1873
          %1875 = vmatmul.f32.gmra.mxu0 %v1556
          %v1876 = vpop.f32.mrf.mxu0
          %v1877 = vadd.f32 0.0, %v1876
          %1878 = vdwg.mxu0
          %v1879 = vadd.f32 %v1750, %v1832
          %v1880 = vadd.f32 %v1751, %v1835
          %v1881 = vadd.f32 %v1752, %v1838
          %v1882 = vadd.f32 %v1753, %v1841
          %v1883 = vadd.f32 %v1754, %v1844
          %v1884 = vadd.f32 %v1755, %v1847
          %v1885 = vadd.f32 %v1756, %v1850
          %v1886 = vadd.f32 %v1757, %v1853
          %v1887 = vadd.f32 %v1758, %v1856
          %v1888 = vadd.f32 %v1759, %v1859
          %v1889 = vadd.f32 %v1760, %v1862
          %v1890 = vadd.f32 %v1761, %v1865
          %v1891 = vadd.f32 %v1762, %v1868
          %v1892 = vadd.f32 %v1763, %v1871
          %v1893 = vadd.f32 %v1764, %v1874
          %v1894 = vadd.f32 %v1765, %v1877
          %1895 = vst.msk [vmem:[#allocation6] sm:$0xff] %vm1139, %v1879
          %1896 = vst.msk [vmem:[#allocation6 + $0x8] sm:$0xff] %vm1139, %v1880
          %1897 = vst.msk [vmem:[#allocation6 + $0x10] sm:$0xff] %vm1139, %v1881
          %1898 = vst.msk [vmem:[#allocation6 + $0x18] sm:$0xff] %vm1139, %v1882
          %1899 = vst.msk [vmem:[#allocation6 + $0x20] sm:$0xff] %vm1139, %v1883
          %1900 = vst.msk [vmem:[#allocation6 + $0x28] sm:$0xff] %vm1139, %v1884
          %1901 = vst.msk [vmem:[#allocation6 + $0x30] sm:$0xff] %vm1139, %v1885
          %1902 = vst.msk [vmem:[#allocation6 + $0x38] sm:$0xff] %vm1139, %v1886
          %1903 = vst.msk [vmem:[#allocation6 + $0x40] sm:$0xff] %vm1139, %v1887
          %1904 = vst.msk [vmem:[#allocation6 + $0x48] sm:$0xff] %vm1139, %v1888
          %1905 = vst.msk [vmem:[#allocation6 + $0x50] sm:$0xff] %vm1139, %v1889
          %1906 = vst.msk [vmem:[#allocation6 + $0x58] sm:$0xff] %vm1139, %v1890
          %1907 = vst.msk [vmem:[#allocation6 + $0x60] sm:$0xff] %vm1139, %v1891
          %1908 = vst.msk [vmem:[#allocation6 + $0x68] sm:$0xff] %vm1139, %v1892
          %1909 = vst.msk [vmem:[#allocation6 + $0x70] sm:$0xff] %vm1139, %v1893
          %1910 = vst.msk [vmem:[#allocation6 + $0x78] sm:$0xff] %vm1139, %v1894
          %1911 = vst.msk [vmem:[#allocation4] sm:$0xff] %vm1637, %v1349
          %1912 = vst.msk [vmem:[#allocation4 + $0x8] sm:$0xff] %vm1637, %v1350
          %1913 = vst.msk [vmem:[#allocation4 + $0x10] sm:$0xff] %vm1637, %v1351
          %1914 = vst.msk [vmem:[#allocation4 + $0x18] sm:$0xff] %vm1637, %v1352
          %1915 = vst.msk [vmem:[#allocation4 + $0x20] sm:$0xff] %vm1637, %v1353
          %1916 = vst.msk [vmem:[#allocation4 + $0x28] sm:$0xff] %vm1637, %v1354
          %1917 = vst.msk [vmem:[#allocation4 + $0x30] sm:$0xff] %vm1637, %v1355
          %1918 = vst.msk [vmem:[#allocation4 + $0x38] sm:$0xff] %vm1637, %v1356
          %1919 = vst.msk [vmem:[#allocation4 + $0x40] sm:$0xff] %vm1637, %v1357
          %1920 = vst.msk [vmem:[#allocation4 + $0x48] sm:$0xff] %vm1637, %v1358
          %1921 = vst.msk [vmem:[#allocation4 + $0x50] sm:$0xff] %vm1637, %v1359
          %1922 = vst.msk [vmem:[#allocation4 + $0x58] sm:$0xff] %vm1637, %v1360
          %1923 = vst.msk [vmem:[#allocation4 + $0x60] sm:$0xff] %vm1637, %v1361
          %1924 = vst.msk [vmem:[#allocation4 + $0x68] sm:$0xff] %vm1637, %v1362
          %1925 = vst.msk [vmem:[#allocation4 + $0x70] sm:$0xff] %vm1637, %v1363
          %1926 = vst.msk [vmem:[#allocation4 + $0x78] sm:$0xff] %vm1637, %v1364
          %1927 = vrot.lane.b32.xlu0 %v1123, 112
          %v1928 = vpop.permute.xlu0 %1927
          %1929 = vrot.lane.b32.xlu0 %v1124, 112
          %v1930 = vpop.permute.xlu0 %1929
          %1931 = vrot.lane.b32.xlu0 %v1125, 112
          %v1932 = vpop.permute.xlu0 %1931
          %1933 = vrot.lane.b32.xlu0 %v1126, 112
          %v1934 = vpop.permute.xlu0 %1933
          %1935 = vrot.lane.b32.xlu0 %v1127, 112
          %v1936 = vpop.permute.xlu0 %1935
          %1937 = vrot.lane.b32.xlu0 %v1128, 112
          %v1938 = vpop.permute.xlu0 %1937
          %1939 = vrot.lane.b32.xlu0 %v1129, 112
          %v1940 = vpop.permute.xlu0 %1939
          %1941 = vrot.lane.b32.xlu0 %v1130, 112
          %v1942 = vpop.permute.xlu0 %1941
          %1943 = vrot.lane.b32.xlu0 %v1131, 112
          %v1944 = vpop.permute.xlu0 %1943
          %1945 = vrot.lane.b32.xlu0 %v1132, 112
          %v1946 = vpop.permute.xlu0 %1945
          %1947 = vrot.lane.b32.xlu0 %v1133, 112
          %v1948 = vpop.permute.xlu0 %1947
          %1949 = vrot.lane.b32.xlu0 %v1134, 112
          %v1950 = vpop.permute.xlu0 %1949
          %1951 = vrot.lane.b32.xlu0 %v1135, 112
          %v1952 = vpop.permute.xlu0 %1951
          %1953 = vrot.lane.b32.xlu0 %v1136, 112
          %v1954 = vpop.permute.xlu0 %1953
          %1955 = vrot.lane.b32.xlu0 %v1137, 112
          %v1956 = vpop.permute.xlu0 %1955
          %1957 = vrot.lane.b32.xlu0 %v1138, 112
          %v1958 = vpop.permute.xlu0 %1957
          %1959 = vrot.lane.b32.xlu0 %v1044, 112
          %v1960 = vpop.permute.xlu0 %1959
          %1961 = vrot.lane.b32.xlu0 %v1047, 112
          %v1962 = vpop.permute.xlu0 %1961
          %1963 = vrot.lane.b32.xlu0 %v1050, 112
          %v1964 = vpop.permute.xlu0 %1963
          %1965 = vrot.lane.b32.xlu0 %v1053, 112
          %v1966 = vpop.permute.xlu0 %1965
          %1967 = vrot.lane.b32.xlu0 %v1056, 112
          %v1968 = vpop.permute.xlu0 %1967
          %1969 = vrot.lane.b32.xlu0 %v1059, 112
          %v1970 = vpop.permute.xlu0 %1969
          %1971 = vrot.lane.b32.xlu0 %v1062, 112
          %v1972 = vpop.permute.xlu0 %1971
          %1973 = vrot.lane.b32.xlu0 %v1065, 112
          %v1974 = vpop.permute.xlu0 %1973
          %1975 = vrot.lane.b32.xlu0 %v1068, 112
          %v1976 = vpop.permute.xlu0 %1975
          %1977 = vrot.lane.b32.xlu0 %v1071, 112
          %v1978 = vpop.permute.xlu0 %1977
          %1979 = vrot.lane.b32.xlu0 %v1074, 112
          %v1980 = vpop.permute.xlu0 %1979
          %1981 = vrot.lane.b32.xlu0 %v1077, 112
          %v1982 = vpop.permute.xlu0 %1981
          %1983 = vrot.lane.b32.xlu0 %v1080, 112
          %v1984 = vpop.permute.xlu0 %1983
          %1985 = vrot.lane.b32.xlu0 %v1083, 112
          %v1986 = vpop.permute.xlu0 %1985
          %1987 = vrot.lane.b32.xlu0 %v1086, 112
          %v1988 = vpop.permute.xlu0 %1987
          %1989 = vrot.lane.b32.xlu0 %v1089, 112
          %v1990 = vpop.permute.xlu0 %1989
          %v1991 = vsel %vm1139, %v1928, 0
          %v1993 = vsel %vm1139, %v1930, 0
          %v1995 = vsel %vm1139, %v1932, 0
          %v1997 = vsel %vm1139, %v1934, 0
          %v1999 = vsel %vm1139, %v1936, 0
          %v2001 = vsel %vm1139, %v1938, 0
          %v2003 = vsel %vm1139, %v1940, 0
          %v2005 = vsel %vm1139, %v1942, 0
          %v2007 = vsel %vm1139, %v1944, 0
          %v2009 = vsel %vm1139, %v1946, 0
          %v2011 = vsel %vm1139, %v1948, 0
          %v2013 = vsel %vm1139, %v1950, 0
          %v2015 = vsel %vm1139, %v1952, 0
          %v2017 = vsel %vm1139, %v1954, 0
          %v2019 = vsel %vm1139, %v1956, 0
          %v2021 = vsel %vm1139, %v1958, 0
          %v2023 = vsel %vm1139, %v1960, 0
          %v2025 = vsel %vm1139, %v1962, 0
          %v2027 = vsel %vm1139, %v1964, 0
          %v2029 = vsel %vm1139, %v1966, 0
          %v2031 = vsel %vm1139, %v1968, 0
          %v2033 = vsel %vm1139, %v1970, 0
          %v2035 = vsel %vm1139, %v1972, 0
          %v2037 = vsel %vm1139, %v1974, 0
          %v2039 = vsel %vm1139, %v1976, 0
          %v2041 = vsel %vm1139, %v1978, 0
          %v2043 = vsel %vm1139, %v1980, 0
          %v2045 = vsel %vm1139, %v1982, 0
          %v2047 = vsel %vm1139, %v1984, 0
          %v2049 = vsel %vm1139, %v1986, 0
          %v2051 = vsel %vm1139, %v1988, 0
          %v2053 = vsel %vm1139, %v1990, 0
          %2055 = vmatpush.xpose.msra.mxu0 %v2053
          %2056 = vmatpush.xpose.msra.mxu0 %v2051
          %2057 = vmatpush.xpose.msra.mxu0 %v2049
          %2058 = vmatpush.xpose.msra.mxu0 %v2047
          %2059 = vmatpush.xpose.msra.mxu0 %v2045
          %2060 = vmatpush.xpose.msra.mxu0 %v2043
          %2061 = vmatpush.xpose.msra.mxu0 %v2041
          %2062 = vmatpush.xpose.msra.mxu0 %v2039
          %2063 = vmatpush.xpose.msra.mxu0 %v2037
          %2064 = vmatpush.xpose.msra.mxu0 %v2035
          %2065 = vmatpush.xpose.msra.mxu0 %v2033
          %2066 = vmatpush.xpose.msra.mxu0 %v2031
          %2067 = vmatpush.xpose.msra.mxu0 %v2029
          %2068 = vmatpush.xpose.msra.mxu0 %v2027
          %2069 = vmatpush.xpose.msra.mxu0 %v2025
          %2070 = vmatpush.xpose.msra.mxu0 %v2023
          %2071 = vmatmul.f32.gmra.mxu0 %v1991
          %v2072 = vpop.f32.mrf.mxu0
          %v2073 = vadd.f32 0.0, %v2072
          %2074 = vmatmul.f32.gmra.mxu0 %v1993
          %v2075 = vpop.f32.mrf.mxu0
          %v2076 = vadd.f32 0.0, %v2075
          %2077 = vmatmul.f32.gmra.mxu0 %v1995
          %v2078 = vpop.f32.mrf.mxu0
          %v2079 = vadd.f32 0.0, %v2078
          %2080 = vmatmul.f32.gmra.mxu0 %v1997
          %v2081 = vpop.f32.mrf.mxu0
          %v2082 = vadd.f32 0.0, %v2081
          %2083 = vmatmul.f32.gmra.mxu0 %v1999
          %v2084 = vpop.f32.mrf.mxu0
          %v2085 = vadd.f32 0.0, %v2084
          %2086 = vmatmul.f32.gmra.mxu0 %v2001
          %v2087 = vpop.f32.mrf.mxu0
          %v2088 = vadd.f32 0.0, %v2087
          %2089 = vmatmul.f32.gmra.mxu0 %v2003
          %v2090 = vpop.f32.mrf.mxu0
          %v2091 = vadd.f32 0.0, %v2090
          %2092 = vmatmul.f32.gmra.mxu0 %v2005
          %v2093 = vpop.f32.mrf.mxu0
          %v2094 = vadd.f32 0.0, %v2093
          %2095 = vmatmul.f32.gmra.mxu0 %v2007
          %v2096 = vpop.f32.mrf.mxu0
          %v2097 = vadd.f32 0.0, %v2096
          %2098 = vmatmul.f32.gmra.mxu0 %v2009
          %v2099 = vpop.f32.mrf.mxu0
          %v2100 = vadd.f32 0.0, %v2099
          %2101 = vmatmul.f32.gmra.mxu0 %v2011
          %v2102 = vpop.f32.mrf.mxu0
          %v2103 = vadd.f32 0.0, %v2102
          %2104 = vmatmul.f32.gmra.mxu0 %v2013
          %v2105 = vpop.f32.mrf.mxu0
          %v2106 = vadd.f32 0.0, %v2105
          %2107 = vmatmul.f32.gmra.mxu0 %v2015
          %v2108 = vpop.f32.mrf.mxu0
          %v2109 = vadd.f32 0.0, %v2108
          %2110 = vmatmul.f32.gmra.mxu0 %v2017
          %v2111 = vpop.f32.mrf.mxu0
          %v2112 = vadd.f32 0.0, %v2111
          %2113 = vmatmul.f32.gmra.mxu0 %v2019
          %v2114 = vpop.f32.mrf.mxu0
          %v2115 = vadd.f32 0.0, %v2114
          %2116 = vmatmul.f32.gmra.mxu0 %v2021
          %v2117 = vpop.f32.mrf.mxu0
          %v2118 = vadd.f32 0.0, %v2117
          %2119 = vdwg.mxu0
          %s2120 = scalar_lea.vmem [#allocation4], 128
          %v2121 = vld [vmem:[%s2120] sm:$0xff]
          %v2122 = vld [vmem:[%s2120 + $0x8] sm:$0xff]
          %v2123 = vld [vmem:[%s2120 + $0x10] sm:$0xff]
          %v2124 = vld [vmem:[%s2120 + $0x18] sm:$0xff]
          %v2125 = vld [vmem:[%s2120 + $0x20] sm:$0xff]
          %v2126 = vld [vmem:[%s2120 + $0x28] sm:$0xff]
          %v2127 = vld [vmem:[%s2120 + $0x30] sm:$0xff]
          %v2128 = vld [vmem:[%s2120 + $0x38] sm:$0xff]
          %v2129 = vld [vmem:[%s2120 + $0x40] sm:$0xff]
          %v2130 = vld [vmem:[%s2120 + $0x48] sm:$0xff]
          %v2131 = vld [vmem:[%s2120 + $0x50] sm:$0xff]
          %v2132 = vld [vmem:[%s2120 + $0x58] sm:$0xff]
          %v2133 = vld [vmem:[%s2120 + $0x60] sm:$0xff]
          %v2134 = vld [vmem:[%s2120 + $0x68] sm:$0xff]
          %v2135 = vld [vmem:[%s2120 + $0x70] sm:$0xff]
          %v2136 = vld [vmem:[%s2120 + $0x78] sm:$0xff]
          %2137 = vmax.xlane.f32.xlu0 %v2073
          %v2138 = vpop.xlane.xlu0 %2137
          %2139 = vmax.xlane.f32.xlu0 %v2076
          %v2140 = vpop.xlane.xlu0 %2139
          %2141 = vmax.xlane.f32.xlu0 %v2079
          %v2142 = vpop.xlane.xlu0 %2141
          %2143 = vmax.xlane.f32.xlu0 %v2082
          %v2144 = vpop.xlane.xlu0 %2143
          %2145 = vmax.xlane.f32.xlu0 %v2085
          %v2146 = vpop.xlane.xlu0 %2145
          %2147 = vmax.xlane.f32.xlu0 %v2088
          %v2148 = vpop.xlane.xlu0 %2147
          %2149 = vmax.xlane.f32.xlu0 %v2091
          %v2150 = vpop.xlane.xlu0 %2149
          %2151 = vmax.xlane.f32.xlu0 %v2094
          %v2152 = vpop.xlane.xlu0 %2151
          %2153 = vmax.xlane.f32.xlu0 %v2097
          %v2154 = vpop.xlane.xlu0 %2153
          %2155 = vmax.xlane.f32.xlu0 %v2100
          %v2156 = vpop.xlane.xlu0 %2155
          %2157 = vmax.xlane.f32.xlu0 %v2103
          %v2158 = vpop.xlane.xlu0 %2157
          %2159 = vmax.xlane.f32.xlu0 %v2106
          %v2160 = vpop.xlane.xlu0 %2159
          %2161 = vmax.xlane.f32.xlu0 %v2109
          %v2162 = vpop.xlane.xlu0 %2161
          %2163 = vmax.xlane.f32.xlu0 %v2112
          %v2164 = vpop.xlane.xlu0 %2163
          %2165 = vmax.xlane.f32.xlu0 %v2115
          %v2166 = vpop.xlane.xlu0 %2165
          %2167 = vmax.xlane.f32.xlu0 %v2118
          %v2168 = vpop.xlane.xlu0 %2167
          %v2169 = vmax.f32 %v2121, %v2138
          %v2170 = vmax.f32 %v2122, %v2140
          %v2171 = vmax.f32 %v2123, %v2142
          %v2172 = vmax.f32 %v2124, %v2144
          %v2173 = vmax.f32 %v2125, %v2146
          %v2174 = vmax.f32 %v2126, %v2148
          %v2175 = vmax.f32 %v2127, %v2150
          %v2176 = vmax.f32 %v2128, %v2152
          %v2177 = vmax.f32 %v2129, %v2154
          %v2178 = vmax.f32 %v2130, %v2156
          %v2179 = vmax.f32 %v2131, %v2158
          %v2180 = vmax.f32 %v2132, %v2160
          %v2181 = vmax.f32 %v2133, %v2162
          %v2182 = vmax.f32 %v2134, %v2164
          %v2183 = vmax.f32 %v2135, %v2166
          %v2184 = vmax.f32 %v2136, %v2168
          %v2185 = vsub.f32 %v2121, %v2169
          %v2186 = vsub.f32 %v2122, %v2170
          %v2187 = vsub.f32 %v2123, %v2171
          %v2188 = vsub.f32 %v2124, %v2172
          %v2189 = vsub.f32 %v2125, %v2173
          %v2190 = vsub.f32 %v2126, %v2174
          %v2191 = vsub.f32 %v2127, %v2175
          %v2192 = vsub.f32 %v2128, %v2176
          %v2193 = vsub.f32 %v2129, %v2177
          %v2194 = vsub.f32 %v2130, %v2178
          %v2195 = vsub.f32 %v2131, %v2179
          %v2196 = vsub.f32 %v2132, %v2180
          %v2197 = vsub.f32 %v2133, %v2181
          %v2198 = vsub.f32 %v2134, %v2182
          %v2199 = vsub.f32 %v2135, %v2183
          %v2200 = vsub.f32 %v2136, %v2184
          %v2201 = vmul.f32 %v2185, 1.442695
          %v2202 = vpow.pop %v2201
          %v2203 = vmul.f32 %v2186, 1.442695
          %v2204 = vpow.pop %v2203
          %v2205 = vmul.f32 %v2187, 1.442695
          %v2206 = vpow.pop %v2205
          %v2207 = vmul.f32 %v2188, 1.442695
          %v2208 = vpow.pop %v2207
          %v2209 = vmul.f32 %v2189, 1.442695
          %v2210 = vpow.pop %v2209
          %v2211 = vmul.f32 %v2190, 1.442695
          %v2212 = vpow.pop %v2211
          %v2213 = vmul.f32 %v2191, 1.442695
          %v2214 = vpow.pop %v2213
          %v2215 = vmul.f32 %v2192, 1.442695
          %v2216 = vpow.pop %v2215
          %v2217 = vmul.f32 %v2193, 1.442695
          %v2218 = vpow.pop %v2217
          %v2219 = vmul.f32 %v2194, 1.442695
          %v2220 = vpow.pop %v2219
          %v2221 = vmul.f32 %v2195, 1.442695
          %v2222 = vpow.pop %v2221
          %v2223 = vmul.f32 %v2196, 1.442695
          %v2224 = vpow.pop %v2223
          %v2225 = vmul.f32 %v2197, 1.442695
          %v2226 = vpow.pop %v2225
          %v2227 = vmul.f32 %v2198, 1.442695
          %v2228 = vpow.pop %v2227
          %v2229 = vmul.f32 %v2199, 1.442695
          %v2230 = vpow.pop %v2229
          %v2231 = vmul.f32 %v2200, 1.442695
          %v2232 = vpow.pop %v2231
          %2234 = vset.pattern.permute.xlu0 0
          %2235 = vperm.xlu0 %2234, %v2169
          %v2236 = vpop.permute.xlu0 %2235
          %2239 = vset.pattern.permute.xlu0 0
          %2240 = vperm.xlu0 %2239, %v2170
          %v2241 = vpop.permute.xlu0 %2240
          %2244 = vset.pattern.permute.xlu0 0
          %2245 = vperm.xlu0 %2244, %v2171
          %v2246 = vpop.permute.xlu0 %2245
          %2249 = vset.pattern.permute.xlu0 0
          %2250 = vperm.xlu0 %2249, %v2172
          %v2251 = vpop.permute.xlu0 %2250
          %2254 = vset.pattern.permute.xlu0 0
          %2255 = vperm.xlu0 %2254, %v2173
          %v2256 = vpop.permute.xlu0 %2255
          %2259 = vset.pattern.permute.xlu0 0
          %2260 = vperm.xlu0 %2259, %v2174
          %v2261 = vpop.permute.xlu0 %2260
          %2264 = vset.pattern.permute.xlu0 0
          %2265 = vperm.xlu0 %2264, %v2175
          %v2266 = vpop.permute.xlu0 %2265
          %2269 = vset.pattern.permute.xlu0 0
          %2270 = vperm.xlu0 %2269, %v2176
          %v2271 = vpop.permute.xlu0 %2270
          %2274 = vset.pattern.permute.xlu0 0
          %2275 = vperm.xlu0 %2274, %v2177
          %v2276 = vpop.permute.xlu0 %2275
          %2279 = vset.pattern.permute.xlu0 0
          %2280 = vperm.xlu0 %2279, %v2178
          %v2281 = vpop.permute.xlu0 %2280
          %2284 = vset.pattern.permute.xlu0 0
          %2285 = vperm.xlu0 %2284, %v2179
          %v2286 = vpop.permute.xlu0 %2285
          %2289 = vset.pattern.permute.xlu0 0
          %2290 = vperm.xlu0 %2289, %v2180
          %v2291 = vpop.permute.xlu0 %2290
          %2294 = vset.pattern.permute.xlu0 0
          %2295 = vperm.xlu0 %2294, %v2181
          %v2296 = vpop.permute.xlu0 %2295
          %2299 = vset.pattern.permute.xlu0 0
          %2300 = vperm.xlu0 %2299, %v2182
          %v2301 = vpop.permute.xlu0 %2300
          %2304 = vset.pattern.permute.xlu0 0
          %2305 = vperm.xlu0 %2304, %v2183
          %v2306 = vpop.permute.xlu0 %2305
          %2309 = vset.pattern.permute.xlu0 0
          %2310 = vperm.xlu0 %2309, %v2184
          %v2311 = vpop.permute.xlu0 %2310
          %v2313 = vsub.f32 %v2073, %v2236
          %v2314 = vsub.f32 %v2076, %v2241
          %v2315 = vsub.f32 %v2079, %v2246
          %v2316 = vsub.f32 %v2082, %v2251
          %v2317 = vsub.f32 %v2085, %v2256
          %v2318 = vsub.f32 %v2088, %v2261
          %v2319 = vsub.f32 %v2091, %v2266
          %v2320 = vsub.f32 %v2094, %v2271
          %v2321 = vsub.f32 %v2097, %v2276
          %v2322 = vsub.f32 %v2100, %v2281
          %v2323 = vsub.f32 %v2103, %v2286
          %v2324 = vsub.f32 %v2106, %v2291
          %v2325 = vsub.f32 %v2109, %v2296
          %v2326 = vsub.f32 %v2112, %v2301
          %v2327 = vsub.f32 %v2115, %v2306
          %v2328 = vsub.f32 %v2118, %v2311
          %v2329 = vmul.f32 %v2313, 1.442695
          %v2330 = vpow.pop %v2329
          %v2331 = vmul.f32 %v2314, 1.442695
          %v2332 = vpow.pop %v2331
          %v2333 = vmul.f32 %v2315, 1.442695
          %v2334 = vpow.pop %v2333
          %v2335 = vmul.f32 %v2316, 1.442695
          %v2336 = vpow.pop %v2335
          %v2337 = vmul.f32 %v2317, 1.442695
          %v2338 = vpow.pop %v2337
          %v2339 = vmul.f32 %v2318, 1.442695
          %v2340 = vpow.pop %v2339
          %v2341 = vmul.f32 %v2319, 1.442695
          %v2342 = vpow.pop %v2341
          %v2343 = vmul.f32 %v2320, 1.442695
          %v2344 = vpow.pop %v2343
          %v2345 = vmul.f32 %v2321, 1.442695
          %v2346 = vpow.pop %v2345
          %v2347 = vmul.f32 %v2322, 1.442695
          %v2348 = vpow.pop %v2347
          %v2349 = vmul.f32 %v2323, 1.442695
          %v2350 = vpow.pop %v2349
          %v2351 = vmul.f32 %v2324, 1.442695
          %v2352 = vpow.pop %v2351
          %v2353 = vmul.f32 %v2325, 1.442695
          %v2354 = vpow.pop %v2353
          %v2355 = vmul.f32 %v2326, 1.442695
          %v2356 = vpow.pop %v2355
          %v2357 = vmul.f32 %v2327, 1.442695
          %v2358 = vpow.pop %v2357
          %v2359 = vmul.f32 %v2328, 1.442695
          %v2360 = vpow.pop %v2359
          %v2361 = vmul.f32 %v2330, %v1107
          %v2362 = vmul.f32 %v2332, %v1108
          %v2363 = vmul.f32 %v2334, %v1109
          %v2364 = vmul.f32 %v2336, %v1110
          %v2365 = vmul.f32 %v2338, %v1111
          %v2366 = vmul.f32 %v2340, %v1112
          %v2367 = vmul.f32 %v2342, %v1113
          %v2368 = vmul.f32 %v2344, %v1114
          %v2369 = vmul.f32 %v2346, %v1115
          %v2370 = vmul.f32 %v2348, %v1116
          %v2371 = vmul.f32 %v2350, %v1117
          %v2372 = vmul.f32 %v2352, %v1118
          %v2373 = vmul.f32 %v2354, %v1119
          %v2374 = vmul.f32 %v2356, %v1120
          %v2375 = vmul.f32 %v2358, %v1121
          %v2376 = vmul.f32 %v2360, %v1122
          %s2377 = scalar_lea.vmem [#allocation5], 128
          %v2378 = vld [vmem:[%s2377] sm:$0xff]
          %v2379 = vld [vmem:[%s2377 + $0x8] sm:$0xff]
          %v2380 = vld [vmem:[%s2377 + $0x10] sm:$0xff]
          %v2381 = vld [vmem:[%s2377 + $0x18] sm:$0xff]
          %v2382 = vld [vmem:[%s2377 + $0x20] sm:$0xff]
          %v2383 = vld [vmem:[%s2377 + $0x28] sm:$0xff]
          %v2384 = vld [vmem:[%s2377 + $0x30] sm:$0xff]
          %v2385 = vld [vmem:[%s2377 + $0x38] sm:$0xff]
          %v2386 = vld [vmem:[%s2377 + $0x40] sm:$0xff]
          %v2387 = vld [vmem:[%s2377 + $0x48] sm:$0xff]
          %v2388 = vld [vmem:[%s2377 + $0x50] sm:$0xff]
          %v2389 = vld [vmem:[%s2377 + $0x58] sm:$0xff]
          %v2390 = vld [vmem:[%s2377 + $0x60] sm:$0xff]
          %v2391 = vld [vmem:[%s2377 + $0x68] sm:$0xff]
          %v2392 = vld [vmem:[%s2377 + $0x70] sm:$0xff]
          %v2393 = vld [vmem:[%s2377 + $0x78] sm:$0xff]
          %v2394 = vmul.f32 %v2202, %v2378
          %v2395 = vmul.f32 %v2204, %v2379
          %v2396 = vmul.f32 %v2206, %v2380
          %v2397 = vmul.f32 %v2208, %v2381
          %v2398 = vmul.f32 %v2210, %v2382
          %v2399 = vmul.f32 %v2212, %v2383
          %v2400 = vmul.f32 %v2214, %v2384
          %v2401 = vmul.f32 %v2216, %v2385
          %v2402 = vmul.f32 %v2218, %v2386
          %v2403 = vmul.f32 %v2220, %v2387
          %v2404 = vmul.f32 %v2222, %v2388
          %v2405 = vmul.f32 %v2224, %v2389
          %v2406 = vmul.f32 %v2226, %v2390
          %v2407 = vmul.f32 %v2228, %v2391
          %v2408 = vmul.f32 %v2230, %v2392
          %v2409 = vmul.f32 %v2232, %v2393
          %2410 = vadd.xlane.f32.xlu0 %v2361
          %v2411 = vpop.xlane.xlu0 %2410
          %2412 = vadd.xlane.f32.xlu0 %v2362
          %v2413 = vpop.xlane.xlu0 %2412
          %2414 = vadd.xlane.f32.xlu0 %v2363
          %v2415 = vpop.xlane.xlu0 %2414
          %2416 = vadd.xlane.f32.xlu0 %v2364
          %v2417 = vpop.xlane.xlu0 %2416
          %2418 = vadd.xlane.f32.xlu0 %v2365
          %v2419 = vpop.xlane.xlu0 %2418
          %2420 = vadd.xlane.f32.xlu0 %v2366
          %v2421 = vpop.xlane.xlu0 %2420
          %2422 = vadd.xlane.f32.xlu0 %v2367
          %v2423 = vpop.xlane.xlu0 %2422
          %2424 = vadd.xlane.f32.xlu0 %v2368
          %v2425 = vpop.xlane.xlu0 %2424
          %2426 = vadd.xlane.f32.xlu0 %v2369
          %v2427 = vpop.xlane.xlu0 %2426
          %2428 = vadd.xlane.f32.xlu0 %v2370
          %v2429 = vpop.xlane.xlu0 %2428
          %2430 = vadd.xlane.f32.xlu0 %v2371
          %v2431 = vpop.xlane.xlu0 %2430
          %2432 = vadd.xlane.f32.xlu0 %v2372
          %v2433 = vpop.xlane.xlu0 %2432
          %2434 = vadd.xlane.f32.xlu0 %v2373
          %v2435 = vpop.xlane.xlu0 %2434
          %2436 = vadd.xlane.f32.xlu0 %v2374
          %v2437 = vpop.xlane.xlu0 %2436
          %2438 = vadd.xlane.f32.xlu0 %v2375
          %v2439 = vpop.xlane.xlu0 %2438
          %2440 = vadd.xlane.f32.xlu0 %v2376
          %v2441 = vpop.xlane.xlu0 %2440
          %v2442 = vadd.f32 %v2394, %v2411
          %v2443 = vadd.f32 %v2395, %v2413
          %v2444 = vadd.f32 %v2396, %v2415
          %v2445 = vadd.f32 %v2397, %v2417
          %v2446 = vadd.f32 %v2398, %v2419
          %v2447 = vadd.f32 %v2399, %v2421
          %v2448 = vadd.f32 %v2400, %v2423
          %v2449 = vadd.f32 %v2401, %v2425
          %v2450 = vadd.f32 %v2402, %v2427
          %v2451 = vadd.f32 %v2403, %v2429
          %v2452 = vadd.f32 %v2404, %v2431
          %v2453 = vadd.f32 %v2405, %v2433
          %v2454 = vadd.f32 %v2406, %v2435
          %v2455 = vadd.f32 %v2407, %v2437
          %v2456 = vadd.f32 %v2408, %v2439
          %v2457 = vadd.f32 %v2409, %v2441
          %2458 = vst.msk [vmem:[%s2377] sm:$0xff] %vm1637, %v2442
          %2459 = vst.msk [vmem:[%s2377 + $0x8] sm:$0xff] %vm1637, %v2443
          %2460 = vst.msk [vmem:[%s2377 + $0x10] sm:$0xff] %vm1637, %v2444
          %2461 = vst.msk [vmem:[%s2377 + $0x18] sm:$0xff] %vm1637, %v2445
          %2462 = vst.msk [vmem:[%s2377 + $0x20] sm:$0xff] %vm1637, %v2446
          %2463 = vst.msk [vmem:[%s2377 + $0x28] sm:$0xff] %vm1637, %v2447
          %2464 = vst.msk [vmem:[%s2377 + $0x30] sm:$0xff] %vm1637, %v2448
          %2465 = vst.msk [vmem:[%s2377 + $0x38] sm:$0xff] %vm1637, %v2449
          %2466 = vst.msk [vmem:[%s2377 + $0x40] sm:$0xff] %vm1637, %v2450
          %2467 = vst.msk [vmem:[%s2377 + $0x48] sm:$0xff] %vm1637, %v2451
          %2468 = vst.msk [vmem:[%s2377 + $0x50] sm:$0xff] %vm1637, %v2452
          %2469 = vst.msk [vmem:[%s2377 + $0x58] sm:$0xff] %vm1637, %v2453
          %2470 = vst.msk [vmem:[%s2377 + $0x60] sm:$0xff] %vm1637, %v2454
          %2471 = vst.msk [vmem:[%s2377 + $0x68] sm:$0xff] %vm1637, %v2455
          %2472 = vst.msk [vmem:[%s2377 + $0x70] sm:$0xff] %vm1637, %v2456
          %2473 = vst.msk [vmem:[%s2377 + $0x78] sm:$0xff] %vm1637, %v2457
          %s2474 = scalar_lea.vmem [#allocation6], 128
          %v2475 = vld [vmem:[%s2474] sm:$0xff]
          %v2476 = vld [vmem:[%s2474 + $0x8] sm:$0xff]
          %v2477 = vld [vmem:[%s2474 + $0x10] sm:$0xff]
          %v2478 = vld [vmem:[%s2474 + $0x18] sm:$0xff]
          %v2479 = vld [vmem:[%s2474 + $0x20] sm:$0xff]
          %v2480 = vld [vmem:[%s2474 + $0x28] sm:$0xff]
          %v2481 = vld [vmem:[%s2474 + $0x30] sm:$0xff]
          %v2482 = vld [vmem:[%s2474 + $0x38] sm:$0xff]
          %v2483 = vld [vmem:[%s2474 + $0x40] sm:$0xff]
          %v2484 = vld [vmem:[%s2474 + $0x48] sm:$0xff]
          %v2485 = vld [vmem:[%s2474 + $0x50] sm:$0xff]
          %v2486 = vld [vmem:[%s2474 + $0x58] sm:$0xff]
          %v2487 = vld [vmem:[%s2474 + $0x60] sm:$0xff]
          %v2488 = vld [vmem:[%s2474 + $0x68] sm:$0xff]
          %v2489 = vld [vmem:[%s2474 + $0x70] sm:$0xff]
          %v2490 = vld [vmem:[%s2474 + $0x78] sm:$0xff]
          %2492 = vset.pattern.permute.xlu0 0
          %2493 = vperm.xlu0 %2492, %v2202
          %v2494 = vpop.permute.xlu0 %2493
          %2497 = vset.pattern.permute.xlu0 0
          %2498 = vperm.xlu0 %2497, %v2204
          %v2499 = vpop.permute.xlu0 %2498
          %2502 = vset.pattern.permute.xlu0 0
          %2503 = vperm.xlu0 %2502, %v2206
          %v2504 = vpop.permute.xlu0 %2503
          %2507 = vset.pattern.permute.xlu0 0
          %2508 = vperm.xlu0 %2507, %v2208
          %v2509 = vpop.permute.xlu0 %2508
          %2512 = vset.pattern.permute.xlu0 0
          %2513 = vperm.xlu0 %2512, %v2210
          %v2514 = vpop.permute.xlu0 %2513
          %2517 = vset.pattern.permute.xlu0 0
          %2518 = vperm.xlu0 %2517, %v2212
          %v2519 = vpop.permute.xlu0 %2518
          %2522 = vset.pattern.permute.xlu0 0
          %2523 = vperm.xlu0 %2522, %v2214
          %v2524 = vpop.permute.xlu0 %2523
          %2527 = vset.pattern.permute.xlu0 0
          %2528 = vperm.xlu0 %2527, %v2216
          %v2529 = vpop.permute.xlu0 %2528
          %2532 = vset.pattern.permute.xlu0 0
          %2533 = vperm.xlu0 %2532, %v2218
          %v2534 = vpop.permute.xlu0 %2533
          %2537 = vset.pattern.permute.xlu0 0
          %2538 = vperm.xlu0 %2537, %v2220
          %v2539 = vpop.permute.xlu0 %2538
          %2542 = vset.pattern.permute.xlu0 0
          %2543 = vperm.xlu0 %2542, %v2222
          %v2544 = vpop.permute.xlu0 %2543
          %2547 = vset.pattern.permute.xlu0 0
          %2548 = vperm.xlu0 %2547, %v2224
          %v2549 = vpop.permute.xlu0 %2548
          %2552 = vset.pattern.permute.xlu0 0
          %2553 = vperm.xlu0 %2552, %v2226
          %v2554 = vpop.permute.xlu0 %2553
          %2557 = vset.pattern.permute.xlu0 0
          %2558 = vperm.xlu0 %2557, %v2228
          %v2559 = vpop.permute.xlu0 %2558
          %2562 = vset.pattern.permute.xlu0 0
          %2563 = vperm.xlu0 %2562, %v2230
          %v2564 = vpop.permute.xlu0 %2563
          %2567 = vset.pattern.permute.xlu0 0
          %2568 = vperm.xlu0 %2567, %v2232
          %v2569 = vpop.permute.xlu0 %2568
          %v2571 = vmul.f32 %v2494, %v2475
          %v2572 = vmul.f32 %v2499, %v2476
          %v2573 = vmul.f32 %v2504, %v2477
          %v2574 = vmul.f32 %v2509, %v2478
          %v2575 = vmul.f32 %v2514, %v2479
          %v2576 = vmul.f32 %v2519, %v2480
          %v2577 = vmul.f32 %v2524, %v2481
          %v2578 = vmul.f32 %v2529, %v2482
          %v2579 = vmul.f32 %v2534, %v2483
          %v2580 = vmul.f32 %v2539, %v2484
          %v2581 = vmul.f32 %v2544, %v2485
          %v2582 = vmul.f32 %v2549, %v2486
          %v2583 = vmul.f32 %v2554, %v2487
          %v2584 = vmul.f32 %v2559, %v2488
          %v2585 = vmul.f32 %v2564, %v2489
          %v2586 = vmul.f32 %v2569, %v2490
          %2587 = vrot.lane.b32.xlu0 %v1044, 48
          %v2588 = vpop.permute.xlu0 %2587
          %2589 = vrot.lane.b32.xlu0 %v1047, 48
          %v2590 = vpop.permute.xlu0 %2589
          %2591 = vrot.lane.b32.xlu0 %v1050, 48
          %v2592 = vpop.permute.xlu0 %2591
          %2593 = vrot.lane.b32.xlu0 %v1053, 48
          %v2594 = vpop.permute.xlu0 %2593
          %2595 = vrot.lane.b32.xlu0 %v1056, 48
          %v2596 = vpop.permute.xlu0 %2595
          %2597 = vrot.lane.b32.xlu0 %v1059, 48
          %v2598 = vpop.permute.xlu0 %2597
          %2599 = vrot.lane.b32.xlu0 %v1062, 48
          %v2600 = vpop.permute.xlu0 %2599
          %2601 = vrot.lane.b32.xlu0 %v1065, 48
          %v2602 = vpop.permute.xlu0 %2601
          %2603 = vrot.lane.b32.xlu0 %v1068, 48
          %v2604 = vpop.permute.xlu0 %2603
          %2605 = vrot.lane.b32.xlu0 %v1071, 48
          %v2606 = vpop.permute.xlu0 %2605
          %2607 = vrot.lane.b32.xlu0 %v1074, 48
          %v2608 = vpop.permute.xlu0 %2607
          %2609 = vrot.lane.b32.xlu0 %v1077, 48
          %v2610 = vpop.permute.xlu0 %2609
          %2611 = vrot.lane.b32.xlu0 %v1080, 48
          %v2612 = vpop.permute.xlu0 %2611
          %2613 = vrot.lane.b32.xlu0 %v1083, 48
          %v2614 = vpop.permute.xlu0 %2613
          %2615 = vrot.lane.b32.xlu0 %v1086, 48
          %v2616 = vpop.permute.xlu0 %2615
          %2617 = vrot.lane.b32.xlu0 %v1089, 48
          %v2618 = vpop.permute.xlu0 %2617
          %2635 = vmatpush.msra.mxu0 %v2618
          %2636 = vmatpush.msra.mxu0 %v2616
          %2637 = vmatpush.msra.mxu0 %v2614
          %2638 = vmatpush.msra.mxu0 %v2612
          %2639 = vmatpush.msra.mxu0 %v2610
          %2640 = vmatpush.msra.mxu0 %v2608
          %2641 = vmatpush.msra.mxu0 %v2606
          %2642 = vmatpush.msra.mxu0 %v2604
          %2643 = vmatpush.msra.mxu0 %v2602
          %2644 = vmatpush.msra.mxu0 %v2600
          %2645 = vmatpush.msra.mxu0 %v2598
          %2646 = vmatpush.msra.mxu0 %v2596
          %2647 = vmatpush.msra.mxu0 %v2594
          %2648 = vmatpush.msra.mxu0 %v2592
          %2649 = vmatpush.msra.mxu0 %v2590
          %2650 = vmatpush.msra.mxu0 %v2588
          %2651 = vmatmul.f32.gmra.mxu0 %v2361
          %v2652 = vpop.f32.mrf.mxu0
          %v2653 = vadd.f32 0.0, %v2652
          %2654 = vmatmul.f32.gmra.mxu0 %v2362
          %v2655 = vpop.f32.mrf.mxu0
          %v2656 = vadd.f32 0.0, %v2655
          %2657 = vmatmul.f32.gmra.mxu0 %v2363
          %v2658 = vpop.f32.mrf.mxu0
          %v2659 = vadd.f32 0.0, %v2658
          %2660 = vmatmul.f32.gmra.mxu0 %v2364
          %v2661 = vpop.f32.mrf.mxu0
          %v2662 = vadd.f32 0.0, %v2661
          %2663 = vmatmul.f32.gmra.mxu0 %v2365
          %v2664 = vpop.f32.mrf.mxu0
          %v2665 = vadd.f32 0.0, %v2664
          %2666 = vmatmul.f32.gmra.mxu0 %v2366
          %v2667 = vpop.f32.mrf.mxu0
          %v2668 = vadd.f32 0.0, %v2667
          %2669 = vmatmul.f32.gmra.mxu0 %v2367
          %v2670 = vpop.f32.mrf.mxu0
          %v2671 = vadd.f32 0.0, %v2670
          %2672 = vmatmul.f32.gmra.mxu0 %v2368
          %v2673 = vpop.f32.mrf.mxu0
          %v2674 = vadd.f32 0.0, %v2673
          %2675 = vmatmul.f32.gmra.mxu0 %v2369
          %v2676 = vpop.f32.mrf.mxu0
          %v2677 = vadd.f32 0.0, %v2676
          %2678 = vmatmul.f32.gmra.mxu0 %v2370
          %v2679 = vpop.f32.mrf.mxu0
          %v2680 = vadd.f32 0.0, %v2679
          %2681 = vmatmul.f32.gmra.mxu0 %v2371
          %v2682 = vpop.f32.mrf.mxu0
          %v2683 = vadd.f32 0.0, %v2682
          %2684 = vmatmul.f32.gmra.mxu0 %v2372
          %v2685 = vpop.f32.mrf.mxu0
          %v2686 = vadd.f32 0.0, %v2685
          %2687 = vmatmul.f32.gmra.mxu0 %v2373
          %v2688 = vpop.f32.mrf.mxu0
          %v2689 = vadd.f32 0.0, %v2688
          %2690 = vmatmul.f32.gmra.mxu0 %v2374
          %v2691 = vpop.f32.mrf.mxu0
          %v2692 = vadd.f32 0.0, %v2691
          %2693 = vmatmul.f32.gmra.mxu0 %v2375
          %v2694 = vpop.f32.mrf.mxu0
          %v2695 = vadd.f32 0.0, %v2694
          %2696 = vmatmul.f32.gmra.mxu0 %v2376
          %v2697 = vpop.f32.mrf.mxu0
          %v2698 = vadd.f32 0.0, %v2697
          %2699 = vdwg.mxu0
          %v2700 = vadd.f32 %v2571, %v2653
          %v2701 = vadd.f32 %v2572, %v2656
          %v2702 = vadd.f32 %v2573, %v2659
          %v2703 = vadd.f32 %v2574, %v2662
          %v2704 = vadd.f32 %v2575, %v2665
          %v2705 = vadd.f32 %v2576, %v2668
          %v2706 = vadd.f32 %v2577, %v2671
          %v2707 = vadd.f32 %v2578, %v2674
          %v2708 = vadd.f32 %v2579, %v2677
          %v2709 = vadd.f32 %v2580, %v2680
          %v2710 = vadd.f32 %v2581, %v2683
          %v2711 = vadd.f32 %v2582, %v2686
          %v2712 = vadd.f32 %v2583, %v2689
          %v2713 = vadd.f32 %v2584, %v2692
          %v2714 = vadd.f32 %v2585, %v2695
          %v2715 = vadd.f32 %v2586, %v2698
          %2716 = vst.msk [vmem:[%s2474] sm:$0xff] %vm1139, %v2700
          %2717 = vst.msk [vmem:[%s2474 + $0x8] sm:$0xff] %vm1139, %v2701
          %2718 = vst.msk [vmem:[%s2474 + $0x10] sm:$0xff] %vm1139, %v2702
          %2719 = vst.msk [vmem:[%s2474 + $0x18] sm:$0xff] %vm1139, %v2703
          %2720 = vst.msk [vmem:[%s2474 + $0x20] sm:$0xff] %vm1139, %v2704
          %2721 = vst.msk [vmem:[%s2474 + $0x28] sm:$0xff] %vm1139, %v2705
          %2722 = vst.msk [vmem:[%s2474 + $0x30] sm:$0xff] %vm1139, %v2706
          %2723 = vst.msk [vmem:[%s2474 + $0x38] sm:$0xff] %vm1139, %v2707
          %2724 = vst.msk [vmem:[%s2474 + $0x40] sm:$0xff] %vm1139, %v2708
          %2725 = vst.msk [vmem:[%s2474 + $0x48] sm:$0xff] %vm1139, %v2709
          %2726 = vst.msk [vmem:[%s2474 + $0x50] sm:$0xff] %vm1139, %v2710
          %2727 = vst.msk [vmem:[%s2474 + $0x58] sm:$0xff] %vm1139, %v2711
          %2728 = vst.msk [vmem:[%s2474 + $0x60] sm:$0xff] %vm1139, %v2712
          %2729 = vst.msk [vmem:[%s2474 + $0x68] sm:$0xff] %vm1139, %v2713
          %2730 = vst.msk [vmem:[%s2474 + $0x70] sm:$0xff] %vm1139, %v2714
          %2731 = vst.msk [vmem:[%s2474 + $0x78] sm:$0xff] %vm1139, %v2715
          %2732 = vst.msk [vmem:[%s2120] sm:$0xff] %vm1637, %v2169
          %2733 = vst.msk [vmem:[%s2120 + $0x8] sm:$0xff] %vm1637, %v2170
          %2734 = vst.msk [vmem:[%s2120 + $0x10] sm:$0xff] %vm1637, %v2171
          %2735 = vst.msk [vmem:[%s2120 + $0x18] sm:$0xff] %vm1637, %v2172
          %2736 = vst.msk [vmem:[%s2120 + $0x20] sm:$0xff] %vm1637, %v2173
          %2737 = vst.msk [vmem:[%s2120 + $0x28] sm:$0xff] %vm1637, %v2174
          %2738 = vst.msk [vmem:[%s2120 + $0x30] sm:$0xff] %vm1637, %v2175
          %2739 = vst.msk [vmem:[%s2120 + $0x38] sm:$0xff] %vm1637, %v2176
          %2740 = vst.msk [vmem:[%s2120 + $0x40] sm:$0xff] %vm1637, %v2177
          %2741 = vst.msk [vmem:[%s2120 + $0x48] sm:$0xff] %vm1637, %v2178
          %2742 = vst.msk [vmem:[%s2120 + $0x50] sm:$0xff] %vm1637, %v2179
          %2743 = vst.msk [vmem:[%s2120 + $0x58] sm:$0xff] %vm1637, %v2180
          %2744 = vst.msk [vmem:[%s2120 + $0x60] sm:$0xff] %vm1637, %v2181
          %2745 = vst.msk [vmem:[%s2120 + $0x68] sm:$0xff] %vm1637, %v2182
          %2746 = vst.msk [vmem:[%s2120 + $0x70] sm:$0xff] %vm1637, %v2183
          %2747 = vst.msk [vmem:[%s2120 + $0x78] sm:$0xff] %vm1637, %v2184
          %2748 = vrot.lane.b32.xlu0 %v1123, 96
          %v2749 = vpop.permute.xlu0 %2748
          %2750 = vrot.lane.b32.xlu0 %v1124, 96
          %v2751 = vpop.permute.xlu0 %2750
          %2752 = vrot.lane.b32.xlu0 %v1125, 96
          %v2753 = vpop.permute.xlu0 %2752
          %2754 = vrot.lane.b32.xlu0 %v1126, 96
          %v2755 = vpop.permute.xlu0 %2754
          %2756 = vrot.lane.b32.xlu0 %v1127, 96
          %v2757 = vpop.permute.xlu0 %2756
          %2758 = vrot.lane.b32.xlu0 %v1128, 96
          %v2759 = vpop.permute.xlu0 %2758
          %2760 = vrot.lane.b32.xlu0 %v1129, 96
          %v2761 = vpop.permute.xlu0 %2760
          %2762 = vrot.lane.b32.xlu0 %v1130, 96
          %v2763 = vpop.permute.xlu0 %2762
          %2764 = vrot.lane.b32.xlu0 %v1131, 96
          %v2765 = vpop.permute.xlu0 %2764
          %2766 = vrot.lane.b32.xlu0 %v1132, 96
          %v2767 = vpop.permute.xlu0 %2766
          %2768 = vrot.lane.b32.xlu0 %v1133, 96
          %v2769 = vpop.permute.xlu0 %2768
          %2770 = vrot.lane.b32.xlu0 %v1134, 96
          %v2771 = vpop.permute.xlu0 %2770
          %2772 = vrot.lane.b32.xlu0 %v1135, 96
          %v2773 = vpop.permute.xlu0 %2772
          %2774 = vrot.lane.b32.xlu0 %v1136, 96
          %v2775 = vpop.permute.xlu0 %2774
          %2776 = vrot.lane.b32.xlu0 %v1137, 96
          %v2777 = vpop.permute.xlu0 %2776
          %2778 = vrot.lane.b32.xlu0 %v1138, 96
          %v2779 = vpop.permute.xlu0 %2778
          %2780 = vrot.lane.b32.xlu0 %v1044, 96
          %v2781 = vpop.permute.xlu0 %2780
          %2782 = vrot.lane.b32.xlu0 %v1047, 96
          %v2783 = vpop.permute.xlu0 %2782
          %2784 = vrot.lane.b32.xlu0 %v1050, 96
          %v2785 = vpop.permute.xlu0 %2784
          %2786 = vrot.lane.b32.xlu0 %v1053, 96
          %v2787 = vpop.permute.xlu0 %2786
          %2788 = vrot.lane.b32.xlu0 %v1056, 96
          %v2789 = vpop.permute.xlu0 %2788
          %2790 = vrot.lane.b32.xlu0 %v1059, 96
          %v2791 = vpop.permute.xlu0 %2790
          %2792 = vrot.lane.b32.xlu0 %v1062, 96
          %v2793 = vpop.permute.xlu0 %2792
          %2794 = vrot.lane.b32.xlu0 %v1065, 96
          %v2795 = vpop.permute.xlu0 %2794
          %2796 = vrot.lane.b32.xlu0 %v1068, 96
          %v2797 = vpop.permute.xlu0 %2796
          %2798 = vrot.lane.b32.xlu0 %v1071, 96
          %v2799 = vpop.permute.xlu0 %2798
          %2800 = vrot.lane.b32.xlu0 %v1074, 96
          %v2801 = vpop.permute.xlu0 %2800
          %2802 = vrot.lane.b32.xlu0 %v1077, 96
          %v2803 = vpop.permute.xlu0 %2802
          %2804 = vrot.lane.b32.xlu0 %v1080, 96
          %v2805 = vpop.permute.xlu0 %2804
          %2806 = vrot.lane.b32.xlu0 %v1083, 96
          %v2807 = vpop.permute.xlu0 %2806
          %2808 = vrot.lane.b32.xlu0 %v1086, 96
          %v2809 = vpop.permute.xlu0 %2808
          %2810 = vrot.lane.b32.xlu0 %v1089, 96
          %v2811 = vpop.permute.xlu0 %2810
          %v2812 = vsel %vm1139, %v2749, 0
          %v2814 = vsel %vm1139, %v2751, 0
          %v2816 = vsel %vm1139, %v2753, 0
          %v2818 = vsel %vm1139, %v2755, 0
          %v2820 = vsel %vm1139, %v2757, 0
          %v2822 = vsel %vm1139, %v2759, 0
          %v2824 = vsel %vm1139, %v2761, 0
          %v2826 = vsel %vm1139, %v2763, 0
          %v2828 = vsel %vm1139, %v2765, 0
          %v2830 = vsel %vm1139, %v2767, 0
          %v2832 = vsel %vm1139, %v2769, 0
          %v2834 = vsel %vm1139, %v2771, 0
          %v2836 = vsel %vm1139, %v2773, 0
          %v2838 = vsel %vm1139, %v2775, 0
          %v2840 = vsel %vm1139, %v2777, 0
          %v2842 = vsel %vm1139, %v2779, 0
          %v2844 = vsel %vm1139, %v2781, 0
          %v2846 = vsel %vm1139, %v2783, 0
          %v2848 = vsel %vm1139, %v2785, 0
          %v2850 = vsel %vm1139, %v2787, 0
          %v2852 = vsel %vm1139, %v2789, 0
          %v2854 = vsel %vm1139, %v2791, 0
          %v2856 = vsel %vm1139, %v2793, 0
          %v2858 = vsel %vm1139, %v2795, 0
          %v2860 = vsel %vm1139, %v2797, 0
          %v2862 = vsel %vm1139, %v2799, 0
          %v2864 = vsel %vm1139, %v2801, 0
          %v2866 = vsel %vm1139, %v2803, 0
          %v2868 = vsel %vm1139, %v2805, 0
          %v2870 = vsel %vm1139, %v2807, 0
          %v2872 = vsel %vm1139, %v2809, 0
          %v2874 = vsel %vm1139, %v2811, 0
          %2876 = vmatpush.xpose.msra.mxu0 %v2874
          %2877 = vmatpush.xpose.msra.mxu0 %v2872
          %2878 = vmatpush.xpose.msra.mxu0 %v2870
          %2879 = vmatpush.xpose.msra.mxu0 %v2868
          %2880 = vmatpush.xpose.msra.mxu0 %v2866
          %2881 = vmatpush.xpose.msra.mxu0 %v2864
          %2882 = vmatpush.xpose.msra.mxu0 %v2862
          %2883 = vmatpush.xpose.msra.mxu0 %v2860
          %2884 = vmatpush.xpose.msra.mxu0 %v2858
          %2885 = vmatpush.xpose.msra.mxu0 %v2856
          %2886 = vmatpush.xpose.msra.mxu0 %v2854
          %2887 = vmatpush.xpose.msra.mxu0 %v2852
          %2888 = vmatpush.xpose.msra.mxu0 %v2850
          %2889 = vmatpush.xpose.msra.mxu0 %v2848
          %2890 = vmatpush.xpose.msra.mxu0 %v2846
          %2891 = vmatpush.xpose.msra.mxu0 %v2844
          %2892 = vmatmul.f32.gmra.mxu0 %v2812
          %v2893 = vpop.f32.mrf.mxu0
          %v2894 = vadd.f32 0.0, %v2893
          %2895 = vmatmul.f32.gmra.mxu0 %v2814
          %v2896 = vpop.f32.mrf.mxu0
          %v2897 = vadd.f32 0.0, %v2896
          %2898 = vmatmul.f32.gmra.mxu0 %v2816
          %v2899 = vpop.f32.mrf.mxu0
          %v2900 = vadd.f32 0.0, %v2899
          %2901 = vmatmul.f32.gmra.mxu0 %v2818
          %v2902 = vpop.f32.mrf.mxu0
          %v2903 = vadd.f32 0.0, %v2902
          %2904 = vmatmul.f32.gmra.mxu0 %v2820
          %v2905 = vpop.f32.mrf.mxu0
          %v2906 = vadd.f32 0.0, %v2905
          %2907 = vmatmul.f32.gmra.mxu0 %v2822
          %v2908 = vpop.f32.mrf.mxu0
          %v2909 = vadd.f32 0.0, %v2908
          %2910 = vmatmul.f32.gmra.mxu0 %v2824
          %v2911 = vpop.f32.mrf.mxu0
          %v2912 = vadd.f32 0.0, %v2911
          %2913 = vmatmul.f32.gmra.mxu0 %v2826
          %v2914 = vpop.f32.mrf.mxu0
          %v2915 = vadd.f32 0.0, %v2914
          %2916 = vmatmul.f32.gmra.mxu0 %v2828
          %v2917 = vpop.f32.mrf.mxu0
          %v2918 = vadd.f32 0.0, %v2917
          %2919 = vmatmul.f32.gmra.mxu0 %v2830
          %v2920 = vpop.f32.mrf.mxu0
          %v2921 = vadd.f32 0.0, %v2920
          %2922 = vmatmul.f32.gmra.mxu0 %v2832
          %v2923 = vpop.f32.mrf.mxu0
          %v2924 = vadd.f32 0.0, %v2923
          %2925 = vmatmul.f32.gmra.mxu0 %v2834
          %v2926 = vpop.f32.mrf.mxu0
          %v2927 = vadd.f32 0.0, %v2926
          %2928 = vmatmul.f32.gmra.mxu0 %v2836
          %v2929 = vpop.f32.mrf.mxu0
          %v2930 = vadd.f32 0.0, %v2929
          %2931 = vmatmul.f32.gmra.mxu0 %v2838
          %v2932 = vpop.f32.mrf.mxu0
          %v2933 = vadd.f32 0.0, %v2932
          %2934 = vmatmul.f32.gmra.mxu0 %v2840
          %v2935 = vpop.f32.mrf.mxu0
          %v2936 = vadd.f32 0.0, %v2935
          %2937 = vmatmul.f32.gmra.mxu0 %v2842
          %v2938 = vpop.f32.mrf.mxu0
          %v2939 = vadd.f32 0.0, %v2938
          %2940 = vdwg.mxu0
          %s2941 = scalar_lea.vmem [#allocation4], 256
          %v2942 = vld [vmem:[%s2941] sm:$0xff]
          %v2943 = vld [vmem:[%s2941 + $0x8] sm:$0xff]
          %v2944 = vld [vmem:[%s2941 + $0x10] sm:$0xff]
          %v2945 = vld [vmem:[%s2941 + $0x18] sm:$0xff]
          %v2946 = vld [vmem:[%s2941 + $0x20] sm:$0xff]
          %v2947 = vld [vmem:[%s2941 + $0x28] sm:$0xff]
          %v2948 = vld [vmem:[%s2941 + $0x30] sm:$0xff]
          %v2949 = vld [vmem:[%s2941 + $0x38] sm:$0xff]
          %v2950 = vld [vmem:[%s2941 + $0x40] sm:$0xff]
          %v2951 = vld [vmem:[%s2941 + $0x48] sm:$0xff]
          %v2952 = vld [vmem:[%s2941 + $0x50] sm:$0xff]
          %v2953 = vld [vmem:[%s2941 + $0x58] sm:$0xff]
          %v2954 = vld [vmem:[%s2941 + $0x60] sm:$0xff]
          %v2955 = vld [vmem:[%s2941 + $0x68] sm:$0xff]
          %v2956 = vld [vmem:[%s2941 + $0x70] sm:$0xff]
          %v2957 = vld [vmem:[%s2941 + $0x78] sm:$0xff]
          %2958 = vmax.xlane.f32.xlu0 %v2894
          %v2959 = vpop.xlane.xlu0 %2958
          %2960 = vmax.xlane.f32.xlu0 %v2897
          %v2961 = vpop.xlane.xlu0 %2960
          %2962 = vmax.xlane.f32.xlu0 %v2900
          %v2963 = vpop.xlane.xlu0 %2962
          %2964 = vmax.xlane.f32.xlu0 %v2903
          %v2965 = vpop.xlane.xlu0 %2964
          %2966 = vmax.xlane.f32.xlu0 %v2906
          %v2967 = vpop.xlane.xlu0 %2966
          %2968 = vmax.xlane.f32.xlu0 %v2909
          %v2969 = vpop.xlane.xlu0 %2968
          %2970 = vmax.xlane.f32.xlu0 %v2912
          %v2971 = vpop.xlane.xlu0 %2970
          %2972 = vmax.xlane.f32.xlu0 %v2915
          %v2973 = vpop.xlane.xlu0 %2972
          %2974 = vmax.xlane.f32.xlu0 %v2918
          %v2975 = vpop.xlane.xlu0 %2974
          %2976 = vmax.xlane.f32.xlu0 %v2921
          %v2977 = vpop.xlane.xlu0 %2976
          %2978 = vmax.xlane.f32.xlu0 %v2924
          %v2979 = vpop.xlane.xlu0 %2978
          %2980 = vmax.xlane.f32.xlu0 %v2927
          %v2981 = vpop.xlane.xlu0 %2980
          %2982 = vmax.xlane.f32.xlu0 %v2930
          %v2983 = vpop.xlane.xlu0 %2982
          %2984 = vmax.xlane.f32.xlu0 %v2933
          %v2985 = vpop.xlane.xlu0 %2984
          %2986 = vmax.xlane.f32.xlu0 %v2936
          %v2987 = vpop.xlane.xlu0 %2986
          %2988 = vmax.xlane.f32.xlu0 %v2939
          %v2989 = vpop.xlane.xlu0 %2988
          %v2990 = vmax.f32 %v2942, %v2959
          %v2991 = vmax.f32 %v2943, %v2961
          %v2992 = vmax.f32 %v2944, %v2963
          %v2993 = vmax.f32 %v2945, %v2965
          %v2994 = vmax.f32 %v2946, %v2967
          %v2995 = vmax.f32 %v2947, %v2969
          %v2996 = vmax.f32 %v2948, %v2971
          %v2997 = vmax.f32 %v2949, %v2973
          %v2998 = vmax.f32 %v2950, %v2975
          %v2999 = vmax.f32 %v2951, %v2977
          %v3000 = vmax.f32 %v2952, %v2979
          %v3001 = vmax.f32 %v2953, %v2981
          %v3002 = vmax.f32 %v2954, %v2983
          %v3003 = vmax.f32 %v2955, %v2985
          %v3004 = vmax.f32 %v2956, %v2987
          %v3005 = vmax.f32 %v2957, %v2989
          %v3006 = vsub.f32 %v2942, %v2990
          %v3007 = vsub.f32 %v2943, %v2991
          %v3008 = vsub.f32 %v2944, %v2992
          %v3009 = vsub.f32 %v2945, %v2993
          %v3010 = vsub.f32 %v2946, %v2994
          %v3011 = vsub.f32 %v2947, %v2995
          %v3012 = vsub.f32 %v2948, %v2996
          %v3013 = vsub.f32 %v2949, %v2997
          %v3014 = vsub.f32 %v2950, %v2998
          %v3015 = vsub.f32 %v2951, %v2999
          %v3016 = vsub.f32 %v2952, %v3000
          %v3017 = vsub.f32 %v2953, %v3001
          %v3018 = vsub.f32 %v2954, %v3002
          %v3019 = vsub.f32 %v2955, %v3003
          %v3020 = vsub.f32 %v2956, %v3004
          %v3021 = vsub.f32 %v2957, %v3005
          %v3022 = vmul.f32 %v3006, 1.442695
          %v3023 = vpow.pop %v3022
          %v3024 = vmul.f32 %v3007, 1.442695
          %v3025 = vpow.pop %v3024
          %v3026 = vmul.f32 %v3008, 1.442695
          %v3027 = vpow.pop %v3026
          %v3028 = vmul.f32 %v3009, 1.442695
          %v3029 = vpow.pop %v3028
          %v3030 = vmul.f32 %v3010, 1.442695
          %v3031 = vpow.pop %v3030
          %v3032 = vmul.f32 %v3011, 1.442695
          %v3033 = vpow.pop %v3032
          %v3034 = vmul.f32 %v3012, 1.442695
          %v3035 = vpow.pop %v3034
          %v3036 = vmul.f32 %v3013, 1.442695
          %v3037 = vpow.pop %v3036
          %v3038 = vmul.f32 %v3014, 1.442695
          %v3039 = vpow.pop %v3038
          %v3040 = vmul.f32 %v3015, 1.442695
          %v3041 = vpow.pop %v3040
          %v3042 = vmul.f32 %v3016, 1.442695
          %v3043 = vpow.pop %v3042
          %v3044 = vmul.f32 %v3017, 1.442695
          %v3045 = vpow.pop %v3044
          %v3046 = vmul.f32 %v3018, 1.442695
          %v3047 = vpow.pop %v3046
          %v3048 = vmul.f32 %v3019, 1.442695
          %v3049 = vpow.pop %v3048
          %v3050 = vmul.f32 %v3020, 1.442695
          %v3051 = vpow.pop %v3050
          %v3052 = vmul.f32 %v3021, 1.442695
          %v3053 = vpow.pop %v3052
          %3055 = vset.pattern.permute.xlu0 0
          %3056 = vperm.xlu0 %3055, %v2990
          %v3057 = vpop.permute.xlu0 %3056
          %3060 = vset.pattern.permute.xlu0 0
          %3061 = vperm.xlu0 %3060, %v2991
          %v3062 = vpop.permute.xlu0 %3061
          %3065 = vset.pattern.permute.xlu0 0
          %3066 = vperm.xlu0 %3065, %v2992
          %v3067 = vpop.permute.xlu0 %3066
          %3070 = vset.pattern.permute.xlu0 0
          %3071 = vperm.xlu0 %3070, %v2993
          %v3072 = vpop.permute.xlu0 %3071
          %3075 = vset.pattern.permute.xlu0 0
          %3076 = vperm.xlu0 %3075, %v2994
          %v3077 = vpop.permute.xlu0 %3076
          %3080 = vset.pattern.permute.xlu0 0
          %3081 = vperm.xlu0 %3080, %v2995
          %v3082 = vpop.permute.xlu0 %3081
          %3085 = vset.pattern.permute.xlu0 0
          %3086 = vperm.xlu0 %3085, %v2996
          %v3087 = vpop.permute.xlu0 %3086
          %3090 = vset.pattern.permute.xlu0 0
          %3091 = vperm.xlu0 %3090, %v2997
          %v3092 = vpop.permute.xlu0 %3091
          %3095 = vset.pattern.permute.xlu0 0
          %3096 = vperm.xlu0 %3095, %v2998
          %v3097 = vpop.permute.xlu0 %3096
          %3100 = vset.pattern.permute.xlu0 0
          %3101 = vperm.xlu0 %3100, %v2999
          %v3102 = vpop.permute.xlu0 %3101
          %3105 = vset.pattern.permute.xlu0 0
          %3106 = vperm.xlu0 %3105, %v3000
          %v3107 = vpop.permute.xlu0 %3106
          %3110 = vset.pattern.permute.xlu0 0
          %3111 = vperm.xlu0 %3110, %v3001
          %v3112 = vpop.permute.xlu0 %3111
          %3115 = vset.pattern.permute.xlu0 0
          %3116 = vperm.xlu0 %3115, %v3002
          %v3117 = vpop.permute.xlu0 %3116
          %3120 = vset.pattern.permute.xlu0 0
          %3121 = vperm.xlu0 %3120, %v3003
          %v3122 = vpop.permute.xlu0 %3121
          %3125 = vset.pattern.permute.xlu0 0
          %3126 = vperm.xlu0 %3125, %v3004
          %v3127 = vpop.permute.xlu0 %3126
          %3130 = vset.pattern.permute.xlu0 0
          %3131 = vperm.xlu0 %3130, %v3005
          %v3132 = vpop.permute.xlu0 %3131
          %v3134 = vsub.f32 %v2894, %v3057
          %v3135 = vsub.f32 %v2897, %v3062
          %v3136 = vsub.f32 %v2900, %v3067
          %v3137 = vsub.f32 %v2903, %v3072
          %v3138 = vsub.f32 %v2906, %v3077
          %v3139 = vsub.f32 %v2909, %v3082
          %v3140 = vsub.f32 %v2912, %v3087
          %v3141 = vsub.f32 %v2915, %v3092
          %v3142 = vsub.f32 %v2918, %v3097
          %v3143 = vsub.f32 %v2921, %v3102
          %v3144 = vsub.f32 %v2924, %v3107
          %v3145 = vsub.f32 %v2927, %v3112
          %v3146 = vsub.f32 %v2930, %v3117
          %v3147 = vsub.f32 %v2933, %v3122
          %v3148 = vsub.f32 %v2936, %v3127
          %v3149 = vsub.f32 %v2939, %v3132
          %v3150 = vmul.f32 %v3134, 1.442695
          %v3151 = vpow.pop %v3150
          %v3152 = vmul.f32 %v3135, 1.442695
          %v3153 = vpow.pop %v3152
          %v3154 = vmul.f32 %v3136, 1.442695
          %v3155 = vpow.pop %v3154
          %v3156 = vmul.f32 %v3137, 1.442695
          %v3157 = vpow.pop %v3156
          %v3158 = vmul.f32 %v3138, 1.442695
          %v3159 = vpow.pop %v3158
          %v3160 = vmul.f32 %v3139, 1.442695
          %v3161 = vpow.pop %v3160
          %v3162 = vmul.f32 %v3140, 1.442695
          %v3163 = vpow.pop %v3162
          %v3164 = vmul.f32 %v3141, 1.442695
          %v3165 = vpow.pop %v3164
          %v3166 = vmul.f32 %v3142, 1.442695
          %v3167 = vpow.pop %v3166
          %v3168 = vmul.f32 %v3143, 1.442695
          %v3169 = vpow.pop %v3168
          %v3170 = vmul.f32 %v3144, 1.442695
          %v3171 = vpow.pop %v3170
          %v3172 = vmul.f32 %v3145, 1.442695
          %v3173 = vpow.pop %v3172
          %v3174 = vmul.f32 %v3146, 1.442695
          %v3175 = vpow.pop %v3174
          %v3176 = vmul.f32 %v3147, 1.442695
          %v3177 = vpow.pop %v3176
          %v3178 = vmul.f32 %v3148, 1.442695
          %v3179 = vpow.pop %v3178
          %v3180 = vmul.f32 %v3149, 1.442695
          %v3181 = vpow.pop %v3180
          %v3182 = vmul.f32 %v3151, %v1107
          %v3183 = vmul.f32 %v3153, %v1108
          %v3184 = vmul.f32 %v3155, %v1109
          %v3185 = vmul.f32 %v3157, %v1110
          %v3186 = vmul.f32 %v3159, %v1111
          %v3187 = vmul.f32 %v3161, %v1112
          %v3188 = vmul.f32 %v3163, %v1113
          %v3189 = vmul.f32 %v3165, %v1114
          %v3190 = vmul.f32 %v3167, %v1115
          %v3191 = vmul.f32 %v3169, %v1116
          %v3192 = vmul.f32 %v3171, %v1117
          %v3193 = vmul.f32 %v3173, %v1118
          %v3194 = vmul.f32 %v3175, %v1119
          %v3195 = vmul.f32 %v3177, %v1120
          %v3196 = vmul.f32 %v3179, %v1121
          %v3197 = vmul.f32 %v3181, %v1122
          %s3198 = scalar_lea.vmem [#allocation5], 256
          %v3199 = vld [vmem:[%s3198] sm:$0xff]
          %v3200 = vld [vmem:[%s3198 + $0x8] sm:$0xff]
          %v3201 = vld [vmem:[%s3198 + $0x10] sm:$0xff]
          %v3202 = vld [vmem:[%s3198 + $0x18] sm:$0xff]
          %v3203 = vld [vmem:[%s3198 + $0x20] sm:$0xff]
          %v3204 = vld [vmem:[%s3198 + $0x28] sm:$0xff]
          %v3205 = vld [vmem:[%s3198 + $0x30] sm:$0xff]
          %v3206 = vld [vmem:[%s3198 + $0x38] sm:$0xff]
          %v3207 = vld [vmem:[%s3198 + $0x40] sm:$0xff]
          %v3208 = vld [vmem:[%s3198 + $0x48] sm:$0xff]
          %v3209 = vld [vmem:[%s3198 + $0x50] sm:$0xff]
          %v3210 = vld [vmem:[%s3198 + $0x58] sm:$0xff]
          %v3211 = vld [vmem:[%s3198 + $0x60] sm:$0xff]
          %v3212 = vld [vmem:[%s3198 + $0x68] sm:$0xff]
          %v3213 = vld [vmem:[%s3198 + $0x70] sm:$0xff]
          %v3214 = vld [vmem:[%s3198 + $0x78] sm:$0xff]
          %v3215 = vmul.f32 %v3023, %v3199
          %v3216 = vmul.f32 %v3025, %v3200
          %v3217 = vmul.f32 %v3027, %v3201
          %v3218 = vmul.f32 %v3029, %v3202
          %v3219 = vmul.f32 %v3031, %v3203
          %v3220 = vmul.f32 %v3033, %v3204
          %v3221 = vmul.f32 %v3035, %v3205
          %v3222 = vmul.f32 %v3037, %v3206
          %v3223 = vmul.f32 %v3039, %v3207
          %v3224 = vmul.f32 %v3041, %v3208
          %v3225 = vmul.f32 %v3043, %v3209
          %v3226 = vmul.f32 %v3045, %v3210
          %v3227 = vmul.f32 %v3047, %v3211
          %v3228 = vmul.f32 %v3049, %v3212
          %v3229 = vmul.f32 %v3051, %v3213
          %v3230 = vmul.f32 %v3053, %v3214
          %3231 = vadd.xlane.f32.xlu0 %v3182
          %v3232 = vpop.xlane.xlu0 %3231
          %3233 = vadd.xlane.f32.xlu0 %v3183
          %v3234 = vpop.xlane.xlu0 %3233
          %3235 = vadd.xlane.f32.xlu0 %v3184
          %v3236 = vpop.xlane.xlu0 %3235
          %3237 = vadd.xlane.f32.xlu0 %v3185
          %v3238 = vpop.xlane.xlu0 %3237
          %3239 = vadd.xlane.f32.xlu0 %v3186
          %v3240 = vpop.xlane.xlu0 %3239
          %3241 = vadd.xlane.f32.xlu0 %v3187
          %v3242 = vpop.xlane.xlu0 %3241
          %3243 = vadd.xlane.f32.xlu0 %v3188
          %v3244 = vpop.xlane.xlu0 %3243
          %3245 = vadd.xlane.f32.xlu0 %v3189
          %v3246 = vpop.xlane.xlu0 %3245
          %3247 = vadd.xlane.f32.xlu0 %v3190
          %v3248 = vpop.xlane.xlu0 %3247
          %3249 = vadd.xlane.f32.xlu0 %v3191
          %v3250 = vpop.xlane.xlu0 %3249
          %3251 = vadd.xlane.f32.xlu0 %v3192
          %v3252 = vpop.xlane.xlu0 %3251
          %3253 = vadd.xlane.f32.xlu0 %v3193
          %v3254 = vpop.xlane.xlu0 %3253
          %3255 = vadd.xlane.f32.xlu0 %v3194
          %v3256 = vpop.xlane.xlu0 %3255
          %3257 = vadd.xlane.f32.xlu0 %v3195
          %v3258 = vpop.xlane.xlu0 %3257
          %3259 = vadd.xlane.f32.xlu0 %v3196
          %v3260 = vpop.xlane.xlu0 %3259
          %3261 = vadd.xlane.f32.xlu0 %v3197
          %v3262 = vpop.xlane.xlu0 %3261
          %v3263 = vadd.f32 %v3215, %v3232
          %v3264 = vadd.f32 %v3216, %v3234
          %v3265 = vadd.f32 %v3217, %v3236
          %v3266 = vadd.f32 %v3218, %v3238
          %v3267 = vadd.f32 %v3219, %v3240
          %v3268 = vadd.f32 %v3220, %v3242
          %v3269 = vadd.f32 %v3221, %v3244
          %v3270 = vadd.f32 %v3222, %v3246
          %v3271 = vadd.f32 %v3223, %v3248
          %v3272 = vadd.f32 %v3224, %v3250
          %v3273 = vadd.f32 %v3225, %v3252
          %v3274 = vadd.f32 %v3226, %v3254
          %v3275 = vadd.f32 %v3227, %v3256
          %v3276 = vadd.f32 %v3228, %v3258
          %v3277 = vadd.f32 %v3229, %v3260
          %v3278 = vadd.f32 %v3230, %v3262
          %3279 = vst.msk [vmem:[%s3198] sm:$0xff] %vm1637, %v3263
          %3280 = vst.msk [vmem:[%s3198 + $0x8] sm:$0xff] %vm1637, %v3264
          %3281 = vst.msk [vmem:[%s3198 + $0x10] sm:$0xff] %vm1637, %v3265
          %3282 = vst.msk [vmem:[%s3198 + $0x18] sm:$0xff] %vm1637, %v3266
          %3283 = vst.msk [vmem:[%s3198 + $0x20] sm:$0xff] %vm1637, %v3267
          %3284 = vst.msk [vmem:[%s3198 + $0x28] sm:$0xff] %vm1637, %v3268
          %3285 = vst.msk [vmem:[%s3198 + $0x30] sm:$0xff] %vm1637, %v3269
          %3286 = vst.msk [vmem:[%s3198 + $0x38] sm:$0xff] %vm1637, %v3270
          %3287 = vst.msk [vmem:[%s3198 + $0x40] sm:$0xff] %vm1637, %v3271
          %3288 = vst.msk [vmem:[%s3198 + $0x48] sm:$0xff] %vm1637, %v3272
          %3289 = vst.msk [vmem:[%s3198 + $0x50] sm:$0xff] %vm1637, %v3273
          %3290 = vst.msk [vmem:[%s3198 + $0x58] sm:$0xff] %vm1637, %v3274
          %3291 = vst.msk [vmem:[%s3198 + $0x60] sm:$0xff] %vm1637, %v3275
          %3292 = vst.msk [vmem:[%s3198 + $0x68] sm:$0xff] %vm1637, %v3276
          %3293 = vst.msk [vmem:[%s3198 + $0x70] sm:$0xff] %vm1637, %v3277
          %3294 = vst.msk [vmem:[%s3198 + $0x78] sm:$0xff] %vm1637, %v3278
          %s3295 = scalar_lea.vmem [#allocation6], 256
          %v3296 = vld [vmem:[%s3295] sm:$0xff]
          %v3297 = vld [vmem:[%s3295 + $0x8] sm:$0xff]
          %v3298 = vld [vmem:[%s3295 + $0x10] sm:$0xff]
          %v3299 = vld [vmem:[%s3295 + $0x18] sm:$0xff]
          %v3300 = vld [vmem:[%s3295 + $0x20] sm:$0xff]
          %v3301 = vld [vmem:[%s3295 + $0x28] sm:$0xff]
          %v3302 = vld [vmem:[%s3295 + $0x30] sm:$0xff]
          %v3303 = vld [vmem:[%s3295 + $0x38] sm:$0xff]
          %v3304 = vld [vmem:[%s3295 + $0x40] sm:$0xff]
          %v3305 = vld [vmem:[%s3295 + $0x48] sm:$0xff]
          %v3306 = vld [vmem:[%s3295 + $0x50] sm:$0xff]
          %v3307 = vld [vmem:[%s3295 + $0x58] sm:$0xff]
          %v3308 = vld [vmem:[%s3295 + $0x60] sm:$0xff]
          %v3309 = vld [vmem:[%s3295 + $0x68] sm:$0xff]
          %v3310 = vld [vmem:[%s3295 + $0x70] sm:$0xff]
          %v3311 = vld [vmem:[%s3295 + $0x78] sm:$0xff]
          %3313 = vset.pattern.permute.xlu0 0
          %3314 = vperm.xlu0 %3313, %v3023
          %v3315 = vpop.permute.xlu0 %3314
          %3318 = vset.pattern.permute.xlu0 0
          %3319 = vperm.xlu0 %3318, %v3025
          %v3320 = vpop.permute.xlu0 %3319
          %3323 = vset.pattern.permute.xlu0 0
          %3324 = vperm.xlu0 %3323, %v3027
          %v3325 = vpop.permute.xlu0 %3324
          %3328 = vset.pattern.permute.xlu0 0
          %3329 = vperm.xlu0 %3328, %v3029
          %v3330 = vpop.permute.xlu0 %3329
          %3333 = vset.pattern.permute.xlu0 0
          %3334 = vperm.xlu0 %3333, %v3031
          %v3335 = vpop.permute.xlu0 %3334
          %3338 = vset.pattern.permute.xlu0 0
          %3339 = vperm.xlu0 %3338, %v3033
          %v3340 = vpop.permute.xlu0 %3339
          %3343 = vset.pattern.permute.xlu0 0
          %3344 = vperm.xlu0 %3343, %v3035
          %v3345 = vpop.permute.xlu0 %3344
          %3348 = vset.pattern.permute.xlu0 0
          %3349 = vperm.xlu0 %3348, %v3037
          %v3350 = vpop.permute.xlu0 %3349
          %3353 = vset.pattern.permute.xlu0 0
          %3354 = vperm.xlu0 %3353, %v3039
          %v3355 = vpop.permute.xlu0 %3354
          %3358 = vset.pattern.permute.xlu0 0
          %3359 = vperm.xlu0 %3358, %v3041
          %v3360 = vpop.permute.xlu0 %3359
          %3363 = vset.pattern.permute.xlu0 0
          %3364 = vperm.xlu0 %3363, %v3043
          %v3365 = vpop.permute.xlu0 %3364
          %3368 = vset.pattern.permute.xlu0 0
          %3369 = vperm.xlu0 %3368, %v3045
          %v3370 = vpop.permute.xlu0 %3369
          %3373 = vset.pattern.permute.xlu0 0
          %3374 = vperm.xlu0 %3373, %v3047
          %v3375 = vpop.permute.xlu0 %3374
          %3378 = vset.pattern.permute.xlu0 0
          %3379 = vperm.xlu0 %3378, %v3049
          %v3380 = vpop.permute.xlu0 %3379
          %3383 = vset.pattern.permute.xlu0 0
          %3384 = vperm.xlu0 %3383, %v3051
          %v3385 = vpop.permute.xlu0 %3384
          %3388 = vset.pattern.permute.xlu0 0
          %3389 = vperm.xlu0 %3388, %v3053
          %v3390 = vpop.permute.xlu0 %3389
          %v3392 = vmul.f32 %v3315, %v3296
          %v3393 = vmul.f32 %v3320, %v3297
          %v3394 = vmul.f32 %v3325, %v3298
          %v3395 = vmul.f32 %v3330, %v3299
          %v3396 = vmul.f32 %v3335, %v3300
          %v3397 = vmul.f32 %v3340, %v3301
          %v3398 = vmul.f32 %v3345, %v3302
          %v3399 = vmul.f32 %v3350, %v3303
          %v3400 = vmul.f32 %v3355, %v3304
          %v3401 = vmul.f32 %v3360, %v3305
          %v3402 = vmul.f32 %v3365, %v3306
          %v3403 = vmul.f32 %v3370, %v3307
          %v3404 = vmul.f32 %v3375, %v3308
          %v3405 = vmul.f32 %v3380, %v3309
          %v3406 = vmul.f32 %v3385, %v3310
          %v3407 = vmul.f32 %v3390, %v3311
          %3408 = vrot.lane.b32.xlu0 %v1044, 32
          %v3409 = vpop.permute.xlu0 %3408
          %3410 = vrot.lane.b32.xlu0 %v1047, 32
          %v3411 = vpop.permute.xlu0 %3410
          %3412 = vrot.lane.b32.xlu0 %v1050, 32
          %v3413 = vpop.permute.xlu0 %3412
          %3414 = vrot.lane.b32.xlu0 %v1053, 32
          %v3415 = vpop.permute.xlu0 %3414
          %3416 = vrot.lane.b32.xlu0 %v1056, 32
          %v3417 = vpop.permute.xlu0 %3416
          %3418 = vrot.lane.b32.xlu0 %v1059, 32
          %v3419 = vpop.permute.xlu0 %3418
          %3420 = vrot.lane.b32.xlu0 %v1062, 32
          %v3421 = vpop.permute.xlu0 %3420
          %3422 = vrot.lane.b32.xlu0 %v1065, 32
          %v3423 = vpop.permute.xlu0 %3422
          %3424 = vrot.lane.b32.xlu0 %v1068, 32
          %v3425 = vpop.permute.xlu0 %3424
          %3426 = vrot.lane.b32.xlu0 %v1071, 32
          %v3427 = vpop.permute.xlu0 %3426
          %3428 = vrot.lane.b32.xlu0 %v1074, 32
          %v3429 = vpop.permute.xlu0 %3428
          %3430 = vrot.lane.b32.xlu0 %v1077, 32
          %v3431 = vpop.permute.xlu0 %3430
          %3432 = vrot.lane.b32.xlu0 %v1080, 32
          %v3433 = vpop.permute.xlu0 %3432
          %3434 = vrot.lane.b32.xlu0 %v1083, 32
          %v3435 = vpop.permute.xlu0 %3434
          %3436 = vrot.lane.b32.xlu0 %v1086, 32
          %v3437 = vpop.permute.xlu0 %3436
          %3438 = vrot.lane.b32.xlu0 %v1089, 32
          %v3439 = vpop.permute.xlu0 %3438
          %3456 = vmatpush.msra.mxu0 %v3439
          %3457 = vmatpush.msra.mxu0 %v3437
          %3458 = vmatpush.msra.mxu0 %v3435
          %3459 = vmatpush.msra.mxu0 %v3433
          %3460 = vmatpush.msra.mxu0 %v3431
          %3461 = vmatpush.msra.mxu0 %v3429
          %3462 = vmatpush.msra.mxu0 %v3427
          %3463 = vmatpush.msra.mxu0 %v3425
          %3464 = vmatpush.msra.mxu0 %v3423
          %3465 = vmatpush.msra.mxu0 %v3421
          %3466 = vmatpush.msra.mxu0 %v3419
          %3467 = vmatpush.msra.mxu0 %v3417
          %3468 = vmatpush.msra.mxu0 %v3415
          %3469 = vmatpush.msra.mxu0 %v3413
          %3470 = vmatpush.msra.mxu0 %v3411
          %3471 = vmatpush.msra.mxu0 %v3409
          %3472 = vmatmul.f32.gmra.mxu0 %v3182
          %v3473 = vpop.f32.mrf.mxu0
          %v3474 = vadd.f32 0.0, %v3473
          %3475 = vmatmul.f32.gmra.mxu0 %v3183
          %v3476 = vpop.f32.mrf.mxu0
          %v3477 = vadd.f32 0.0, %v3476
          %3478 = vmatmul.f32.gmra.mxu0 %v3184
          %v3479 = vpop.f32.mrf.mxu0
          %v3480 = vadd.f32 0.0, %v3479
          %3481 = vmatmul.f32.gmra.mxu0 %v3185
          %v3482 = vpop.f32.mrf.mxu0
          %v3483 = vadd.f32 0.0, %v3482
          %3484 = vmatmul.f32.gmra.mxu0 %v3186
          %v3485 = vpop.f32.mrf.mxu0
          %v3486 = vadd.f32 0.0, %v3485
          %3487 = vmatmul.f32.gmra.mxu0 %v3187
          %v3488 = vpop.f32.mrf.mxu0
          %v3489 = vadd.f32 0.0, %v3488
          %3490 = vmatmul.f32.gmra.mxu0 %v3188
          %v3491 = vpop.f32.mrf.mxu0
          %v3492 = vadd.f32 0.0, %v3491
          %3493 = vmatmul.f32.gmra.mxu0 %v3189
          %v3494 = vpop.f32.mrf.mxu0
          %v3495 = vadd.f32 0.0, %v3494
          %3496 = vmatmul.f32.gmra.mxu0 %v3190
          %v3497 = vpop.f32.mrf.mxu0
          %v3498 = vadd.f32 0.0, %v3497
          %3499 = vmatmul.f32.gmra.mxu0 %v3191
          %v3500 = vpop.f32.mrf.mxu0
          %v3501 = vadd.f32 0.0, %v3500
          %3502 = vmatmul.f32.gmra.mxu0 %v3192
          %v3503 = vpop.f32.mrf.mxu0
          %v3504 = vadd.f32 0.0, %v3503
          %3505 = vmatmul.f32.gmra.mxu0 %v3193
          %v3506 = vpop.f32.mrf.mxu0
          %v3507 = vadd.f32 0.0, %v3506
          %3508 = vmatmul.f32.gmra.mxu0 %v3194
          %v3509 = vpop.f32.mrf.mxu0
          %v3510 = vadd.f32 0.0, %v3509
          %3511 = vmatmul.f32.gmra.mxu0 %v3195
          %v3512 = vpop.f32.mrf.mxu0
          %v3513 = vadd.f32 0.0, %v3512
          %3514 = vmatmul.f32.gmra.mxu0 %v3196
          %v3515 = vpop.f32.mrf.mxu0
          %v3516 = vadd.f32 0.0, %v3515
          %3517 = vmatmul.f32.gmra.mxu0 %v3197
          %v3518 = vpop.f32.mrf.mxu0
          %v3519 = vadd.f32 0.0, %v3518
          %3520 = vdwg.mxu0
          %v3521 = vadd.f32 %v3392, %v3474
          %v3522 = vadd.f32 %v3393, %v3477
          %v3523 = vadd.f32 %v3394, %v3480
          %v3524 = vadd.f32 %v3395, %v3483
          %v3525 = vadd.f32 %v3396, %v3486
          %v3526 = vadd.f32 %v3397, %v3489
          %v3527 = vadd.f32 %v3398, %v3492
          %v3528 = vadd.f32 %v3399, %v3495
          %v3529 = vadd.f32 %v3400, %v3498
          %v3530 = vadd.f32 %v3401, %v3501
          %v3531 = vadd.f32 %v3402, %v3504
          %v3532 = vadd.f32 %v3403, %v3507
          %v3533 = vadd.f32 %v3404, %v3510
          %v3534 = vadd.f32 %v3405, %v3513
          %v3535 = vadd.f32 %v3406, %v3516
          %v3536 = vadd.f32 %v3407, %v3519
          %3537 = vst.msk [vmem:[%s3295] sm:$0xff] %vm1139, %v3521
          %3538 = vst.msk [vmem:[%s3295 + $0x8] sm:$0xff] %vm1139, %v3522
          %3539 = vst.msk [vmem:[%s3295 + $0x10] sm:$0xff] %vm1139, %v3523
          %3540 = vst.msk [vmem:[%s3295 + $0x18] sm:$0xff] %vm1139, %v3524
          %3541 = vst.msk [vmem:[%s3295 + $0x20] sm:$0xff] %vm1139, %v3525
          %3542 = vst.msk [vmem:[%s3295 + $0x28] sm:$0xff] %vm1139, %v3526
          %3543 = vst.msk [vmem:[%s3295 + $0x30] sm:$0xff] %vm1139, %v3527
          %3544 = vst.msk [vmem:[%s3295 + $0x38] sm:$0xff] %vm1139, %v3528
          %3545 = vst.msk [vmem:[%s3295 + $0x40] sm:$0xff] %vm1139, %v3529
          %3546 = vst.msk [vmem:[%s3295 + $0x48] sm:$0xff] %vm1139, %v3530
          %3547 = vst.msk [vmem:[%s3295 + $0x50] sm:$0xff] %vm1139, %v3531
          %3548 = vst.msk [vmem:[%s3295 + $0x58] sm:$0xff] %vm1139, %v3532
          %3549 = vst.msk [vmem:[%s3295 + $0x60] sm:$0xff] %vm1139, %v3533
          %3550 = vst.msk [vmem:[%s3295 + $0x68] sm:$0xff] %vm1139, %v3534
          %3551 = vst.msk [vmem:[%s3295 + $0x70] sm:$0xff] %vm1139, %v3535
          %3552 = vst.msk [vmem:[%s3295 + $0x78] sm:$0xff] %vm1139, %v3536
          %3553 = vst.msk [vmem:[%s2941] sm:$0xff] %vm1637, %v2990
          %3554 = vst.msk [vmem:[%s2941 + $0x8] sm:$0xff] %vm1637, %v2991
          %3555 = vst.msk [vmem:[%s2941 + $0x10] sm:$0xff] %vm1637, %v2992
          %3556 = vst.msk [vmem:[%s2941 + $0x18] sm:$0xff] %vm1637, %v2993
          %3557 = vst.msk [vmem:[%s2941 + $0x20] sm:$0xff] %vm1637, %v2994
          %3558 = vst.msk [vmem:[%s2941 + $0x28] sm:$0xff] %vm1637, %v2995
          %3559 = vst.msk [vmem:[%s2941 + $0x30] sm:$0xff] %vm1637, %v2996
          %3560 = vst.msk [vmem:[%s2941 + $0x38] sm:$0xff] %vm1637, %v2997
          %3561 = vst.msk [vmem:[%s2941 + $0x40] sm:$0xff] %vm1637, %v2998
          %3562 = vst.msk [vmem:[%s2941 + $0x48] sm:$0xff] %vm1637, %v2999
          %3563 = vst.msk [vmem:[%s2941 + $0x50] sm:$0xff] %vm1637, %v3000
          %3564 = vst.msk [vmem:[%s2941 + $0x58] sm:$0xff] %vm1637, %v3001
          %3565 = vst.msk [vmem:[%s2941 + $0x60] sm:$0xff] %vm1637, %v3002
          %3566 = vst.msk [vmem:[%s2941 + $0x68] sm:$0xff] %vm1637, %v3003
          %3567 = vst.msk [vmem:[%s2941 + $0x70] sm:$0xff] %vm1637, %v3004
          %3568 = vst.msk [vmem:[%s2941 + $0x78] sm:$0xff] %vm1637, %v3005
          %3569 = vrot.lane.b32.xlu0 %v1123, 80
          %v3570 = vpop.permute.xlu0 %3569
          %3571 = vrot.lane.b32.xlu0 %v1124, 80
          %v3572 = vpop.permute.xlu0 %3571
          %3573 = vrot.lane.b32.xlu0 %v1125, 80
          %v3574 = vpop.permute.xlu0 %3573
          %3575 = vrot.lane.b32.xlu0 %v1126, 80
          %v3576 = vpop.permute.xlu0 %3575
          %3577 = vrot.lane.b32.xlu0 %v1127, 80
          %v3578 = vpop.permute.xlu0 %3577
          %3579 = vrot.lane.b32.xlu0 %v1128, 80
          %v3580 = vpop.permute.xlu0 %3579
          %3581 = vrot.lane.b32.xlu0 %v1129, 80
          %v3582 = vpop.permute.xlu0 %3581
          %3583 = vrot.lane.b32.xlu0 %v1130, 80
          %v3584 = vpop.permute.xlu0 %3583
          %3585 = vrot.lane.b32.xlu0 %v1131, 80
          %v3586 = vpop.permute.xlu0 %3585
          %3587 = vrot.lane.b32.xlu0 %v1132, 80
          %v3588 = vpop.permute.xlu0 %3587
          %3589 = vrot.lane.b32.xlu0 %v1133, 80
          %v3590 = vpop.permute.xlu0 %3589
          %3591 = vrot.lane.b32.xlu0 %v1134, 80
          %v3592 = vpop.permute.xlu0 %3591
          %3593 = vrot.lane.b32.xlu0 %v1135, 80
          %v3594 = vpop.permute.xlu0 %3593
          %3595 = vrot.lane.b32.xlu0 %v1136, 80
          %v3596 = vpop.permute.xlu0 %3595
          %3597 = vrot.lane.b32.xlu0 %v1137, 80
          %v3598 = vpop.permute.xlu0 %3597
          %3599 = vrot.lane.b32.xlu0 %v1138, 80
          %v3600 = vpop.permute.xlu0 %3599
          %3601 = vrot.lane.b32.xlu0 %v1044, 80
          %v3602 = vpop.permute.xlu0 %3601
          %3603 = vrot.lane.b32.xlu0 %v1047, 80
          %v3604 = vpop.permute.xlu0 %3603
          %3605 = vrot.lane.b32.xlu0 %v1050, 80
          %v3606 = vpop.permute.xlu0 %3605
          %3607 = vrot.lane.b32.xlu0 %v1053, 80
          %v3608 = vpop.permute.xlu0 %3607
          %3609 = vrot.lane.b32.xlu0 %v1056, 80
          %v3610 = vpop.permute.xlu0 %3609
          %3611 = vrot.lane.b32.xlu0 %v1059, 80
          %v3612 = vpop.permute.xlu0 %3611
          %3613 = vrot.lane.b32.xlu0 %v1062, 80
          %v3614 = vpop.permute.xlu0 %3613
          %3615 = vrot.lane.b32.xlu0 %v1065, 80
          %v3616 = vpop.permute.xlu0 %3615
          %3617 = vrot.lane.b32.xlu0 %v1068, 80
          %v3618 = vpop.permute.xlu0 %3617
          %3619 = vrot.lane.b32.xlu0 %v1071, 80
          %v3620 = vpop.permute.xlu0 %3619
          %3621 = vrot.lane.b32.xlu0 %v1074, 80
          %v3622 = vpop.permute.xlu0 %3621
          %3623 = vrot.lane.b32.xlu0 %v1077, 80
          %v3624 = vpop.permute.xlu0 %3623
          %3625 = vrot.lane.b32.xlu0 %v1080, 80
          %v3626 = vpop.permute.xlu0 %3625
          %3627 = vrot.lane.b32.xlu0 %v1083, 80
          %v3628 = vpop.permute.xlu0 %3627
          %3629 = vrot.lane.b32.xlu0 %v1086, 80
          %v3630 = vpop.permute.xlu0 %3629
          %3631 = vrot.lane.b32.xlu0 %v1089, 80
          %v3632 = vpop.permute.xlu0 %3631
          %v3633 = vsel %vm1139, %v3570, 0
          %v3635 = vsel %vm1139, %v3572, 0
          %v3637 = vsel %vm1139, %v3574, 0
          %v3639 = vsel %vm1139, %v3576, 0
          %v3641 = vsel %vm1139, %v3578, 0
          %v3643 = vsel %vm1139, %v3580, 0
          %v3645 = vsel %vm1139, %v3582, 0
          %v3647 = vsel %vm1139, %v3584, 0
          %v3649 = vsel %vm1139, %v3586, 0
          %v3651 = vsel %vm1139, %v3588, 0
          %v3653 = vsel %vm1139, %v3590, 0
          %v3655 = vsel %vm1139, %v3592, 0
          %v3657 = vsel %vm1139, %v3594, 0
          %v3659 = vsel %vm1139, %v3596, 0
          %v3661 = vsel %vm1139, %v3598, 0
          %v3663 = vsel %vm1139, %v3600, 0
          %v3665 = vsel %vm1139, %v3602, 0
          %v3667 = vsel %vm1139, %v3604, 0
          %v3669 = vsel %vm1139, %v3606, 0
          %v3671 = vsel %vm1139, %v3608, 0
          %v3673 = vsel %vm1139, %v3610, 0
          %v3675 = vsel %vm1139, %v3612, 0
          %v3677 = vsel %vm1139, %v3614, 0
          %v3679 = vsel %vm1139, %v3616, 0
          %v3681 = vsel %vm1139, %v3618, 0
          %v3683 = vsel %vm1139, %v3620, 0
          %v3685 = vsel %vm1139, %v3622, 0
          %v3687 = vsel %vm1139, %v3624, 0
          %v3689 = vsel %vm1139, %v3626, 0
          %v3691 = vsel %vm1139, %v3628, 0
          %v3693 = vsel %vm1139, %v3630, 0
          %v3695 = vsel %vm1139, %v3632, 0
          %3697 = vmatpush.xpose.msra.mxu0 %v3695
          %3698 = vmatpush.xpose.msra.mxu0 %v3693
          %3699 = vmatpush.xpose.msra.mxu0 %v3691
          %3700 = vmatpush.xpose.msra.mxu0 %v3689
          %3701 = vmatpush.xpose.msra.mxu0 %v3687
          %3702 = vmatpush.xpose.msra.mxu0 %v3685
          %3703 = vmatpush.xpose.msra.mxu0 %v3683
          %3704 = vmatpush.xpose.msra.mxu0 %v3681
          %3705 = vmatpush.xpose.msra.mxu0 %v3679
          %3706 = vmatpush.xpose.msra.mxu0 %v3677
          %3707 = vmatpush.xpose.msra.mxu0 %v3675
          %3708 = vmatpush.xpose.msra.mxu0 %v3673
          %3709 = vmatpush.xpose.msra.mxu0 %v3671
          %3710 = vmatpush.xpose.msra.mxu0 %v3669
          %3711 = vmatpush.xpose.msra.mxu0 %v3667
          %3712 = vmatpush.xpose.msra.mxu0 %v3665
          %3713 = vmatmul.f32.gmra.mxu0 %v3633
          %v3714 = vpop.f32.mrf.mxu0
          %v3715 = vadd.f32 0.0, %v3714
          %3716 = vmatmul.f32.gmra.mxu0 %v3635
          %v3717 = vpop.f32.mrf.mxu0
          %v3718 = vadd.f32 0.0, %v3717
          %3719 = vmatmul.f32.gmra.mxu0 %v3637
          %v3720 = vpop.f32.mrf.mxu0
          %v3721 = vadd.f32 0.0, %v3720
          %3722 = vmatmul.f32.gmra.mxu0 %v3639
          %v3723 = vpop.f32.mrf.mxu0
          %v3724 = vadd.f32 0.0, %v3723
          %3725 = vmatmul.f32.gmra.mxu0 %v3641
          %v3726 = vpop.f32.mrf.mxu0
          %v3727 = vadd.f32 0.0, %v3726
          %3728 = vmatmul.f32.gmra.mxu0 %v3643
          %v3729 = vpop.f32.mrf.mxu0
          %v3730 = vadd.f32 0.0, %v3729
          %3731 = vmatmul.f32.gmra.mxu0 %v3645
          %v3732 = vpop.f32.mrf.mxu0
          %v3733 = vadd.f32 0.0, %v3732
          %3734 = vmatmul.f32.gmra.mxu0 %v3647
          %v3735 = vpop.f32.mrf.mxu0
          %v3736 = vadd.f32 0.0, %v3735
          %3737 = vmatmul.f32.gmra.mxu0 %v3649
          %v3738 = vpop.f32.mrf.mxu0
          %v3739 = vadd.f32 0.0, %v3738
          %3740 = vmatmul.f32.gmra.mxu0 %v3651
          %v3741 = vpop.f32.mrf.mxu0
          %v3742 = vadd.f32 0.0, %v3741
          %3743 = vmatmul.f32.gmra.mxu0 %v3653
          %v3744 = vpop.f32.mrf.mxu0
          %v3745 = vadd.f32 0.0, %v3744
          %3746 = vmatmul.f32.gmra.mxu0 %v3655
          %v3747 = vpop.f32.mrf.mxu0
          %v3748 = vadd.f32 0.0, %v3747
          %3749 = vmatmul.f32.gmra.mxu0 %v3657
          %v3750 = vpop.f32.mrf.mxu0
          %v3751 = vadd.f32 0.0, %v3750
          %3752 = vmatmul.f32.gmra.mxu0 %v3659
          %v3753 = vpop.f32.mrf.mxu0
          %v3754 = vadd.f32 0.0, %v3753
          %3755 = vmatmul.f32.gmra.mxu0 %v3661
          %v3756 = vpop.f32.mrf.mxu0
          %v3757 = vadd.f32 0.0, %v3756
          %3758 = vmatmul.f32.gmra.mxu0 %v3663
          %v3759 = vpop.f32.mrf.mxu0
          %v3760 = vadd.f32 0.0, %v3759
          %3761 = vdwg.mxu0
          %s3762 = scalar_lea.vmem [#allocation4], 384
          %v3763 = vld [vmem:[%s3762] sm:$0xff]
          %v3764 = vld [vmem:[%s3762 + $0x8] sm:$0xff]
          %v3765 = vld [vmem:[%s3762 + $0x10] sm:$0xff]
          %v3766 = vld [vmem:[%s3762 + $0x18] sm:$0xff]
          %v3767 = vld [vmem:[%s3762 + $0x20] sm:$0xff]
          %v3768 = vld [vmem:[%s3762 + $0x28] sm:$0xff]
          %v3769 = vld [vmem:[%s3762 + $0x30] sm:$0xff]
          %v3770 = vld [vmem:[%s3762 + $0x38] sm:$0xff]
          %v3771 = vld [vmem:[%s3762 + $0x40] sm:$0xff]
          %v3772 = vld [vmem:[%s3762 + $0x48] sm:$0xff]
          %v3773 = vld [vmem:[%s3762 + $0x50] sm:$0xff]
          %v3774 = vld [vmem:[%s3762 + $0x58] sm:$0xff]
          %v3775 = vld [vmem:[%s3762 + $0x60] sm:$0xff]
          %v3776 = vld [vmem:[%s3762 + $0x68] sm:$0xff]
          %v3777 = vld [vmem:[%s3762 + $0x70] sm:$0xff]
          %v3778 = vld [vmem:[%s3762 + $0x78] sm:$0xff]
          %3779 = vmax.xlane.f32.xlu0 %v3715
          %v3780 = vpop.xlane.xlu0 %3779
          %3781 = vmax.xlane.f32.xlu0 %v3718
          %v3782 = vpop.xlane.xlu0 %3781
          %3783 = vmax.xlane.f32.xlu0 %v3721
          %v3784 = vpop.xlane.xlu0 %3783
          %3785 = vmax.xlane.f32.xlu0 %v3724
          %v3786 = vpop.xlane.xlu0 %3785
          %3787 = vmax.xlane.f32.xlu0 %v3727
          %v3788 = vpop.xlane.xlu0 %3787
          %3789 = vmax.xlane.f32.xlu0 %v3730
          %v3790 = vpop.xlane.xlu0 %3789
          %3791 = vmax.xlane.f32.xlu0 %v3733
          %v3792 = vpop.xlane.xlu0 %3791
          %3793 = vmax.xlane.f32.xlu0 %v3736
          %v3794 = vpop.xlane.xlu0 %3793
          %3795 = vmax.xlane.f32.xlu0 %v3739
          %v3796 = vpop.xlane.xlu0 %3795
          %3797 = vmax.xlane.f32.xlu0 %v3742
          %v3798 = vpop.xlane.xlu0 %3797
          %3799 = vmax.xlane.f32.xlu0 %v3745
          %v3800 = vpop.xlane.xlu0 %3799
          %3801 = vmax.xlane.f32.xlu0 %v3748
          %v3802 = vpop.xlane.xlu0 %3801
          %3803 = vmax.xlane.f32.xlu0 %v3751
          %v3804 = vpop.xlane.xlu0 %3803
          %3805 = vmax.xlane.f32.xlu0 %v3754
          %v3806 = vpop.xlane.xlu0 %3805
          %3807 = vmax.xlane.f32.xlu0 %v3757
          %v3808 = vpop.xlane.xlu0 %3807
          %3809 = vmax.xlane.f32.xlu0 %v3760
          %v3810 = vpop.xlane.xlu0 %3809
          %v3811 = vmax.f32 %v3763, %v3780
          %v3812 = vmax.f32 %v3764, %v3782
          %v3813 = vmax.f32 %v3765, %v3784
          %v3814 = vmax.f32 %v3766, %v3786
          %v3815 = vmax.f32 %v3767, %v3788
          %v3816 = vmax.f32 %v3768, %v3790
          %v3817 = vmax.f32 %v3769, %v3792
          %v3818 = vmax.f32 %v3770, %v3794
          %v3819 = vmax.f32 %v3771, %v3796
          %v3820 = vmax.f32 %v3772, %v3798
          %v3821 = vmax.f32 %v3773, %v3800
          %v3822 = vmax.f32 %v3774, %v3802
          %v3823 = vmax.f32 %v3775, %v3804
          %v3824 = vmax.f32 %v3776, %v3806
          %v3825 = vmax.f32 %v3777, %v3808
          %v3826 = vmax.f32 %v3778, %v3810
          %v3827 = vsub.f32 %v3763, %v3811
          %v3828 = vsub.f32 %v3764, %v3812
          %v3829 = vsub.f32 %v3765, %v3813
          %v3830 = vsub.f32 %v3766, %v3814
          %v3831 = vsub.f32 %v3767, %v3815
          %v3832 = vsub.f32 %v3768, %v3816
          %v3833 = vsub.f32 %v3769, %v3817
          %v3834 = vsub.f32 %v3770, %v3818
          %v3835 = vsub.f32 %v3771, %v3819
          %v3836 = vsub.f32 %v3772, %v3820
          %v3837 = vsub.f32 %v3773, %v3821
          %v3838 = vsub.f32 %v3774, %v3822
          %v3839 = vsub.f32 %v3775, %v3823
          %v3840 = vsub.f32 %v3776, %v3824
          %v3841 = vsub.f32 %v3777, %v3825
          %v3842 = vsub.f32 %v3778, %v3826
          %v3843 = vmul.f32 %v3827, 1.442695
          %v3844 = vpow.pop %v3843
          %v3845 = vmul.f32 %v3828, 1.442695
          %v3846 = vpow.pop %v3845
          %v3847 = vmul.f32 %v3829, 1.442695
          %v3848 = vpow.pop %v3847
          %v3849 = vmul.f32 %v3830, 1.442695
          %v3850 = vpow.pop %v3849
          %v3851 = vmul.f32 %v3831, 1.442695
          %v3852 = vpow.pop %v3851
          %v3853 = vmul.f32 %v3832, 1.442695
          %v3854 = vpow.pop %v3853
          %v3855 = vmul.f32 %v3833, 1.442695
          %v3856 = vpow.pop %v3855
          %v3857 = vmul.f32 %v3834, 1.442695
          %v3858 = vpow.pop %v3857
          %v3859 = vmul.f32 %v3835, 1.442695
          %v3860 = vpow.pop %v3859
          %v3861 = vmul.f32 %v3836, 1.442695
          %v3862 = vpow.pop %v3861
          %v3863 = vmul.f32 %v3837, 1.442695
          %v3864 = vpow.pop %v3863
          %v3865 = vmul.f32 %v3838, 1.442695
          %v3866 = vpow.pop %v3865
          %v3867 = vmul.f32 %v3839, 1.442695
          %v3868 = vpow.pop %v3867
          %v3869 = vmul.f32 %v3840, 1.442695
          %v3870 = vpow.pop %v3869
          %v3871 = vmul.f32 %v3841, 1.442695
          %v3872 = vpow.pop %v3871
          %v3873 = vmul.f32 %v3842, 1.442695
          %v3874 = vpow.pop %v3873
          %3876 = vset.pattern.permute.xlu0 0
          %3877 = vperm.xlu0 %3876, %v3811
          %v3878 = vpop.permute.xlu0 %3877
          %3881 = vset.pattern.permute.xlu0 0
          %3882 = vperm.xlu0 %3881, %v3812
          %v3883 = vpop.permute.xlu0 %3882
          %3886 = vset.pattern.permute.xlu0 0
          %3887 = vperm.xlu0 %3886, %v3813
          %v3888 = vpop.permute.xlu0 %3887
          %3891 = vset.pattern.permute.xlu0 0
          %3892 = vperm.xlu0 %3891, %v3814
          %v3893 = vpop.permute.xlu0 %3892
          %3896 = vset.pattern.permute.xlu0 0
          %3897 = vperm.xlu0 %3896, %v3815
          %v3898 = vpop.permute.xlu0 %3897
          %3901 = vset.pattern.permute.xlu0 0
          %3902 = vperm.xlu0 %3901, %v3816
          %v3903 = vpop.permute.xlu0 %3902
          %3906 = vset.pattern.permute.xlu0 0
          %3907 = vperm.xlu0 %3906, %v3817
          %v3908 = vpop.permute.xlu0 %3907
          %3911 = vset.pattern.permute.xlu0 0
          %3912 = vperm.xlu0 %3911, %v3818
          %v3913 = vpop.permute.xlu0 %3912
          %3916 = vset.pattern.permute.xlu0 0
          %3917 = vperm.xlu0 %3916, %v3819
          %v3918 = vpop.permute.xlu0 %3917
          %3921 = vset.pattern.permute.xlu0 0
          %3922 = vperm.xlu0 %3921, %v3820
          %v3923 = vpop.permute.xlu0 %3922
          %3926 = vset.pattern.permute.xlu0 0
          %3927 = vperm.xlu0 %3926, %v3821
          %v3928 = vpop.permute.xlu0 %3927
          %3931 = vset.pattern.permute.xlu0 0
          %3932 = vperm.xlu0 %3931, %v3822
          %v3933 = vpop.permute.xlu0 %3932
          %3936 = vset.pattern.permute.xlu0 0
          %3937 = vperm.xlu0 %3936, %v3823
          %v3938 = vpop.permute.xlu0 %3937
          %3941 = vset.pattern.permute.xlu0 0
          %3942 = vperm.xlu0 %3941, %v3824
          %v3943 = vpop.permute.xlu0 %3942
          %3946 = vset.pattern.permute.xlu0 0
          %3947 = vperm.xlu0 %3946, %v3825
          %v3948 = vpop.permute.xlu0 %3947
          %3951 = vset.pattern.permute.xlu0 0
          %3952 = vperm.xlu0 %3951, %v3826
          %v3953 = vpop.permute.xlu0 %3952
          %v3955 = vsub.f32 %v3715, %v3878
          %v3956 = vsub.f32 %v3718, %v3883
          %v3957 = vsub.f32 %v3721, %v3888
          %v3958 = vsub.f32 %v3724, %v3893
          %v3959 = vsub.f32 %v3727, %v3898
          %v3960 = vsub.f32 %v3730, %v3903
          %v3961 = vsub.f32 %v3733, %v3908
          %v3962 = vsub.f32 %v3736, %v3913
          %v3963 = vsub.f32 %v3739, %v3918
          %v3964 = vsub.f32 %v3742, %v3923
          %v3965 = vsub.f32 %v3745, %v3928
          %v3966 = vsub.f32 %v3748, %v3933
          %v3967 = vsub.f32 %v3751, %v3938
          %v3968 = vsub.f32 %v3754, %v3943
          %v3969 = vsub.f32 %v3757, %v3948
          %v3970 = vsub.f32 %v3760, %v3953
          %v3971 = vmul.f32 %v3955, 1.442695
          %v3972 = vpow.pop %v3971
          %v3973 = vmul.f32 %v3956, 1.442695
          %v3974 = vpow.pop %v3973
          %v3975 = vmul.f32 %v3957, 1.442695
          %v3976 = vpow.pop %v3975
          %v3977 = vmul.f32 %v3958, 1.442695
          %v3978 = vpow.pop %v3977
          %v3979 = vmul.f32 %v3959, 1.442695
          %v3980 = vpow.pop %v3979
          %v3981 = vmul.f32 %v3960, 1.442695
          %v3982 = vpow.pop %v3981
          %v3983 = vmul.f32 %v3961, 1.442695
          %v3984 = vpow.pop %v3983
          %v3985 = vmul.f32 %v3962, 1.442695
          %v3986 = vpow.pop %v3985
          %v3987 = vmul.f32 %v3963, 1.442695
          %v3988 = vpow.pop %v3987
          %v3989 = vmul.f32 %v3964, 1.442695
          %v3990 = vpow.pop %v3989
          %v3991 = vmul.f32 %v3965, 1.442695
          %v3992 = vpow.pop %v3991
          %v3993 = vmul.f32 %v3966, 1.442695
          %v3994 = vpow.pop %v3993
          %v3995 = vmul.f32 %v3967, 1.442695
          %v3996 = vpow.pop %v3995
          %v3997 = vmul.f32 %v3968, 1.442695
          %v3998 = vpow.pop %v3997
          %v3999 = vmul.f32 %v3969, 1.442695
          %v4000 = vpow.pop %v3999
          %v4001 = vmul.f32 %v3970, 1.442695
          %v4002 = vpow.pop %v4001
          %v4003 = vmul.f32 %v3972, %v1107
          %v4004 = vmul.f32 %v3974, %v1108
          %v4005 = vmul.f32 %v3976, %v1109
          %v4006 = vmul.f32 %v3978, %v1110
          %v4007 = vmul.f32 %v3980, %v1111
          %v4008 = vmul.f32 %v3982, %v1112
          %v4009 = vmul.f32 %v3984, %v1113
          %v4010 = vmul.f32 %v3986, %v1114
          %v4011 = vmul.f32 %v3988, %v1115
          %v4012 = vmul.f32 %v3990, %v1116
          %v4013 = vmul.f32 %v3992, %v1117
          %v4014 = vmul.f32 %v3994, %v1118
          %v4015 = vmul.f32 %v3996, %v1119
          %v4016 = vmul.f32 %v3998, %v1120
          %v4017 = vmul.f32 %v4000, %v1121
          %v4018 = vmul.f32 %v4002, %v1122
          %s4019 = scalar_lea.vmem [#allocation5], 384
          %v4020 = vld [vmem:[%s4019] sm:$0xff]
          %v4021 = vld [vmem:[%s4019 + $0x8] sm:$0xff]
          %v4022 = vld [vmem:[%s4019 + $0x10] sm:$0xff]
          %v4023 = vld [vmem:[%s4019 + $0x18] sm:$0xff]
          %v4024 = vld [vmem:[%s4019 + $0x20] sm:$0xff]
          %v4025 = vld [vmem:[%s4019 + $0x28] sm:$0xff]
          %v4026 = vld [vmem:[%s4019 + $0x30] sm:$0xff]
          %v4027 = vld [vmem:[%s4019 + $0x38] sm:$0xff]
          %v4028 = vld [vmem:[%s4019 + $0x40] sm:$0xff]
          %v4029 = vld [vmem:[%s4019 + $0x48] sm:$0xff]
          %v4030 = vld [vmem:[%s4019 + $0x50] sm:$0xff]
          %v4031 = vld [vmem:[%s4019 + $0x58] sm:$0xff]
          %v4032 = vld [vmem:[%s4019 + $0x60] sm:$0xff]
          %v4033 = vld [vmem:[%s4019 + $0x68] sm:$0xff]
          %v4034 = vld [vmem:[%s4019 + $0x70] sm:$0xff]
          %v4035 = vld [vmem:[%s4019 + $0x78] sm:$0xff]
          %v4036 = vmul.f32 %v3844, %v4020
          %v4037 = vmul.f32 %v3846, %v4021
          %v4038 = vmul.f32 %v3848, %v4022
          %v4039 = vmul.f32 %v3850, %v4023
          %v4040 = vmul.f32 %v3852, %v4024
          %v4041 = vmul.f32 %v3854, %v4025
          %v4042 = vmul.f32 %v3856, %v4026
          %v4043 = vmul.f32 %v3858, %v4027
          %v4044 = vmul.f32 %v3860, %v4028
          %v4045 = vmul.f32 %v3862, %v4029
          %v4046 = vmul.f32 %v3864, %v4030
          %v4047 = vmul.f32 %v3866, %v4031
          %v4048 = vmul.f32 %v3868, %v4032
          %v4049 = vmul.f32 %v3870, %v4033
          %v4050 = vmul.f32 %v3872, %v4034
          %v4051 = vmul.f32 %v3874, %v4035
          %4052 = vadd.xlane.f32.xlu0 %v4003
          %v4053 = vpop.xlane.xlu0 %4052
          %4054 = vadd.xlane.f32.xlu0 %v4004
          %v4055 = vpop.xlane.xlu0 %4054
          %4056 = vadd.xlane.f32.xlu0 %v4005
          %v4057 = vpop.xlane.xlu0 %4056
          %4058 = vadd.xlane.f32.xlu0 %v4006
          %v4059 = vpop.xlane.xlu0 %4058
          %4060 = vadd.xlane.f32.xlu0 %v4007
          %v4061 = vpop.xlane.xlu0 %4060
          %4062 = vadd.xlane.f32.xlu0 %v4008
          %v4063 = vpop.xlane.xlu0 %4062
          %4064 = vadd.xlane.f32.xlu0 %v4009
          %v4065 = vpop.xlane.xlu0 %4064
          %4066 = vadd.xlane.f32.xlu0 %v4010
          %v4067 = vpop.xlane.xlu0 %4066
          %4068 = vadd.xlane.f32.xlu0 %v4011
          %v4069 = vpop.xlane.xlu0 %4068
          %4070 = vadd.xlane.f32.xlu0 %v4012
          %v4071 = vpop.xlane.xlu0 %4070
          %4072 = vadd.xlane.f32.xlu0 %v4013
          %v4073 = vpop.xlane.xlu0 %4072
          %4074 = vadd.xlane.f32.xlu0 %v4014
          %v4075 = vpop.xlane.xlu0 %4074
          %4076 = vadd.xlane.f32.xlu0 %v4015
          %v4077 = vpop.xlane.xlu0 %4076
          %4078 = vadd.xlane.f32.xlu0 %v4016
          %v4079 = vpop.xlane.xlu0 %4078
          %4080 = vadd.xlane.f32.xlu0 %v4017
          %v4081 = vpop.xlane.xlu0 %4080
          %4082 = vadd.xlane.f32.xlu0 %v4018
          %v4083 = vpop.xlane.xlu0 %4082
          %v4084 = vadd.f32 %v4036, %v4053
          %v4085 = vadd.f32 %v4037, %v4055
          %v4086 = vadd.f32 %v4038, %v4057
          %v4087 = vadd.f32 %v4039, %v4059
          %v4088 = vadd.f32 %v4040, %v4061
          %v4089 = vadd.f32 %v4041, %v4063
          %v4090 = vadd.f32 %v4042, %v4065
          %v4091 = vadd.f32 %v4043, %v4067
          %v4092 = vadd.f32 %v4044, %v4069
          %v4093 = vadd.f32 %v4045, %v4071
          %v4094 = vadd.f32 %v4046, %v4073
          %v4095 = vadd.f32 %v4047, %v4075
          %v4096 = vadd.f32 %v4048, %v4077
          %v4097 = vadd.f32 %v4049, %v4079
          %v4098 = vadd.f32 %v4050, %v4081
          %v4099 = vadd.f32 %v4051, %v4083
          %4100 = vst.msk [vmem:[%s4019] sm:$0xff] %vm1637, %v4084
          %4101 = vst.msk [vmem:[%s4019 + $0x8] sm:$0xff] %vm1637, %v4085
          %4102 = vst.msk [vmem:[%s4019 + $0x10] sm:$0xff] %vm1637, %v4086
          %4103 = vst.msk [vmem:[%s4019 + $0x18] sm:$0xff] %vm1637, %v4087
          %4104 = vst.msk [vmem:[%s4019 + $0x20] sm:$0xff] %vm1637, %v4088
          %4105 = vst.msk [vmem:[%s4019 + $0x28] sm:$0xff] %vm1637, %v4089
          %4106 = vst.msk [vmem:[%s4019 + $0x30] sm:$0xff] %vm1637, %v4090
          %4107 = vst.msk [vmem:[%s4019 + $0x38] sm:$0xff] %vm1637, %v4091
          %4108 = vst.msk [vmem:[%s4019 + $0x40] sm:$0xff] %vm1637, %v4092
          %4109 = vst.msk [vmem:[%s4019 + $0x48] sm:$0xff] %vm1637, %v4093
          %4110 = vst.msk [vmem:[%s4019 + $0x50] sm:$0xff] %vm1637, %v4094
          %4111 = vst.msk [vmem:[%s4019 + $0x58] sm:$0xff] %vm1637, %v4095
          %4112 = vst.msk [vmem:[%s4019 + $0x60] sm:$0xff] %vm1637, %v4096
          %4113 = vst.msk [vmem:[%s4019 + $0x68] sm:$0xff] %vm1637, %v4097
          %4114 = vst.msk [vmem:[%s4019 + $0x70] sm:$0xff] %vm1637, %v4098
          %4115 = vst.msk [vmem:[%s4019 + $0x78] sm:$0xff] %vm1637, %v4099
          %s4116 = scalar_lea.vmem [#allocation6], 384
          %v4117 = vld [vmem:[%s4116] sm:$0xff]
          %v4118 = vld [vmem:[%s4116 + $0x8] sm:$0xff]
          %v4119 = vld [vmem:[%s4116 + $0x10] sm:$0xff]
          %v4120 = vld [vmem:[%s4116 + $0x18] sm:$0xff]
          %v4121 = vld [vmem:[%s4116 + $0x20] sm:$0xff]
          %v4122 = vld [vmem:[%s4116 + $0x28] sm:$0xff]
          %v4123 = vld [vmem:[%s4116 + $0x30] sm:$0xff]
          %v4124 = vld [vmem:[%s4116 + $0x38] sm:$0xff]
          %v4125 = vld [vmem:[%s4116 + $0x40] sm:$0xff]
          %v4126 = vld [vmem:[%s4116 + $0x48] sm:$0xff]
          %v4127 = vld [vmem:[%s4116 + $0x50] sm:$0xff]
          %v4128 = vld [vmem:[%s4116 + $0x58] sm:$0xff]
          %v4129 = vld [vmem:[%s4116 + $0x60] sm:$0xff]
          %v4130 = vld [vmem:[%s4116 + $0x68] sm:$0xff]
          %v4131 = vld [vmem:[%s4116 + $0x70] sm:$0xff]
          %v4132 = vld [vmem:[%s4116 + $0x78] sm:$0xff]
          %4134 = vset.pattern.permute.xlu0 0
          %4135 = vperm.xlu0 %4134, %v3844
          %v4136 = vpop.permute.xlu0 %4135
          %4139 = vset.pattern.permute.xlu0 0
          %4140 = vperm.xlu0 %4139, %v3846
          %v4141 = vpop.permute.xlu0 %4140
          %4144 = vset.pattern.permute.xlu0 0
          %4145 = vperm.xlu0 %4144, %v3848
          %v4146 = vpop.permute.xlu0 %4145
          %4149 = vset.pattern.permute.xlu0 0
          %4150 = vperm.xlu0 %4149, %v3850
          %v4151 = vpop.permute.xlu0 %4150
          %4154 = vset.pattern.permute.xlu0 0
          %4155 = vperm.xlu0 %4154, %v3852
          %v4156 = vpop.permute.xlu0 %4155
          %4159 = vset.pattern.permute.xlu0 0
          %4160 = vperm.xlu0 %4159, %v3854
          %v4161 = vpop.permute.xlu0 %4160
          %4164 = vset.pattern.permute.xlu0 0
          %4165 = vperm.xlu0 %4164, %v3856
          %v4166 = vpop.permute.xlu0 %4165
          %4169 = vset.pattern.permute.xlu0 0
          %4170 = vperm.xlu0 %4169, %v3858
          %v4171 = vpop.permute.xlu0 %4170
          %4174 = vset.pattern.permute.xlu0 0
          %4175 = vperm.xlu0 %4174, %v3860
          %v4176 = vpop.permute.xlu0 %4175
          %4179 = vset.pattern.permute.xlu0 0
          %4180 = vperm.xlu0 %4179, %v3862
          %v4181 = vpop.permute.xlu0 %4180
          %4184 = vset.pattern.permute.xlu0 0
          %4185 = vperm.xlu0 %4184, %v3864
          %v4186 = vpop.permute.xlu0 %4185
          %4189 = vset.pattern.permute.xlu0 0
          %4190 = vperm.xlu0 %4189, %v3866
          %v4191 = vpop.permute.xlu0 %4190
          %4194 = vset.pattern.permute.xlu0 0
          %4195 = vperm.xlu0 %4194, %v3868
          %v4196 = vpop.permute.xlu0 %4195
          %4199 = vset.pattern.permute.xlu0 0
          %4200 = vperm.xlu0 %4199, %v3870
          %v4201 = vpop.permute.xlu0 %4200
          %4204 = vset.pattern.permute.xlu0 0
          %4205 = vperm.xlu0 %4204, %v3872
          %v4206 = vpop.permute.xlu0 %4205
          %4209 = vset.pattern.permute.xlu0 0
          %4210 = vperm.xlu0 %4209, %v3874
          %v4211 = vpop.permute.xlu0 %4210
          %v4213 = vmul.f32 %v4136, %v4117
          %v4214 = vmul.f32 %v4141, %v4118
          %v4215 = vmul.f32 %v4146, %v4119
          %v4216 = vmul.f32 %v4151, %v4120
          %v4217 = vmul.f32 %v4156, %v4121
          %v4218 = vmul.f32 %v4161, %v4122
          %v4219 = vmul.f32 %v4166, %v4123
          %v4220 = vmul.f32 %v4171, %v4124
          %v4221 = vmul.f32 %v4176, %v4125
          %v4222 = vmul.f32 %v4181, %v4126
          %v4223 = vmul.f32 %v4186, %v4127
          %v4224 = vmul.f32 %v4191, %v4128
          %v4225 = vmul.f32 %v4196, %v4129
          %v4226 = vmul.f32 %v4201, %v4130
          %v4227 = vmul.f32 %v4206, %v4131
          %v4228 = vmul.f32 %v4211, %v4132
          %4229 = vrot.lane.b32.xlu0 %v1044, 16
          %v4230 = vpop.permute.xlu0 %4229
          %4231 = vrot.lane.b32.xlu0 %v1047, 16
          %v4232 = vpop.permute.xlu0 %4231
          %4233 = vrot.lane.b32.xlu0 %v1050, 16
          %v4234 = vpop.permute.xlu0 %4233
          %4235 = vrot.lane.b32.xlu0 %v1053, 16
          %v4236 = vpop.permute.xlu0 %4235
          %4237 = vrot.lane.b32.xlu0 %v1056, 16
          %v4238 = vpop.permute.xlu0 %4237
          %4239 = vrot.lane.b32.xlu0 %v1059, 16
          %v4240 = vpop.permute.xlu0 %4239
          %4241 = vrot.lane.b32.xlu0 %v1062, 16
          %v4242 = vpop.permute.xlu0 %4241
          %4243 = vrot.lane.b32.xlu0 %v1065, 16
          %v4244 = vpop.permute.xlu0 %4243
          %4245 = vrot.lane.b32.xlu0 %v1068, 16
          %v4246 = vpop.permute.xlu0 %4245
          %4247 = vrot.lane.b32.xlu0 %v1071, 16
          %v4248 = vpop.permute.xlu0 %4247
          %4249 = vrot.lane.b32.xlu0 %v1074, 16
          %v4250 = vpop.permute.xlu0 %4249
          %4251 = vrot.lane.b32.xlu0 %v1077, 16
          %v4252 = vpop.permute.xlu0 %4251
          %4253 = vrot.lane.b32.xlu0 %v1080, 16
          %v4254 = vpop.permute.xlu0 %4253
          %4255 = vrot.lane.b32.xlu0 %v1083, 16
          %v4256 = vpop.permute.xlu0 %4255
          %4257 = vrot.lane.b32.xlu0 %v1086, 16
          %v4258 = vpop.permute.xlu0 %4257
          %4259 = vrot.lane.b32.xlu0 %v1089, 16
          %v4260 = vpop.permute.xlu0 %4259
          %4277 = vmatpush.msra.mxu0 %v4260
          %4278 = vmatpush.msra.mxu0 %v4258
          %4279 = vmatpush.msra.mxu0 %v4256
          %4280 = vmatpush.msra.mxu0 %v4254
          %4281 = vmatpush.msra.mxu0 %v4252
          %4282 = vmatpush.msra.mxu0 %v4250
          %4283 = vmatpush.msra.mxu0 %v4248
          %4284 = vmatpush.msra.mxu0 %v4246
          %4285 = vmatpush.msra.mxu0 %v4244
          %4286 = vmatpush.msra.mxu0 %v4242
          %4287 = vmatpush.msra.mxu0 %v4240
          %4288 = vmatpush.msra.mxu0 %v4238
          %4289 = vmatpush.msra.mxu0 %v4236
          %4290 = vmatpush.msra.mxu0 %v4234
          %4291 = vmatpush.msra.mxu0 %v4232
          %4292 = vmatpush.msra.mxu0 %v4230
          %4293 = vmatmul.f32.gmra.mxu0 %v4003
          %v4294 = vpop.f32.mrf.mxu0
          %v4295 = vadd.f32 0.0, %v4294
          %4296 = vmatmul.f32.gmra.mxu0 %v4004
          %v4297 = vpop.f32.mrf.mxu0
          %v4298 = vadd.f32 0.0, %v4297
          %4299 = vmatmul.f32.gmra.mxu0 %v4005
          %v4300 = vpop.f32.mrf.mxu0
          %v4301 = vadd.f32 0.0, %v4300
          %4302 = vmatmul.f32.gmra.mxu0 %v4006
          %v4303 = vpop.f32.mrf.mxu0
          %v4304 = vadd.f32 0.0, %v4303
          %4305 = vmatmul.f32.gmra.mxu0 %v4007
          %v4306 = vpop.f32.mrf.mxu0
          %v4307 = vadd.f32 0.0, %v4306
          %4308 = vmatmul.f32.gmra.mxu0 %v4008
          %v4309 = vpop.f32.mrf.mxu0
          %v4310 = vadd.f32 0.0, %v4309
          %4311 = vmatmul.f32.gmra.mxu0 %v4009
          %v4312 = vpop.f32.mrf.mxu0
          %v4313 = vadd.f32 0.0, %v4312
          %4314 = vmatmul.f32.gmra.mxu0 %v4010
          %v4315 = vpop.f32.mrf.mxu0
          %v4316 = vadd.f32 0.0, %v4315
          %4317 = vmatmul.f32.gmra.mxu0 %v4011
          %v4318 = vpop.f32.mrf.mxu0
          %v4319 = vadd.f32 0.0, %v4318
          %4320 = vmatmul.f32.gmra.mxu0 %v4012
          %v4321 = vpop.f32.mrf.mxu0
          %v4322 = vadd.f32 0.0, %v4321
          %4323 = vmatmul.f32.gmra.mxu0 %v4013
          %v4324 = vpop.f32.mrf.mxu0
          %v4325 = vadd.f32 0.0, %v4324
          %4326 = vmatmul.f32.gmra.mxu0 %v4014
          %v4327 = vpop.f32.mrf.mxu0
          %v4328 = vadd.f32 0.0, %v4327
          %4329 = vmatmul.f32.gmra.mxu0 %v4015
          %v4330 = vpop.f32.mrf.mxu0
          %v4331 = vadd.f32 0.0, %v4330
          %4332 = vmatmul.f32.gmra.mxu0 %v4016
          %v4333 = vpop.f32.mrf.mxu0
          %v4334 = vadd.f32 0.0, %v4333
          %4335 = vmatmul.f32.gmra.mxu0 %v4017
          %v4336 = vpop.f32.mrf.mxu0
          %v4337 = vadd.f32 0.0, %v4336
          %4338 = vmatmul.f32.gmra.mxu0 %v4018
          %v4339 = vpop.f32.mrf.mxu0
          %v4340 = vadd.f32 0.0, %v4339
          %4341 = vdwg.mxu0
          %v4342 = vadd.f32 %v4213, %v4295
          %v4343 = vadd.f32 %v4214, %v4298
          %v4344 = vadd.f32 %v4215, %v4301
          %v4345 = vadd.f32 %v4216, %v4304
          %v4346 = vadd.f32 %v4217, %v4307
          %v4347 = vadd.f32 %v4218, %v4310
          %v4348 = vadd.f32 %v4219, %v4313
          %v4349 = vadd.f32 %v4220, %v4316
          %v4350 = vadd.f32 %v4221, %v4319
          %v4351 = vadd.f32 %v4222, %v4322
          %v4352 = vadd.f32 %v4223, %v4325
          %v4353 = vadd.f32 %v4224, %v4328
          %v4354 = vadd.f32 %v4225, %v4331
          %v4355 = vadd.f32 %v4226, %v4334
          %v4356 = vadd.f32 %v4227, %v4337
          %v4357 = vadd.f32 %v4228, %v4340
          %4358 = vst.msk [vmem:[%s4116] sm:$0xff] %vm1139, %v4342
          %4359 = vst.msk [vmem:[%s4116 + $0x8] sm:$0xff] %vm1139, %v4343
          %4360 = vst.msk [vmem:[%s4116 + $0x10] sm:$0xff] %vm1139, %v4344
          %4361 = vst.msk [vmem:[%s4116 + $0x18] sm:$0xff] %vm1139, %v4345
          %4362 = vst.msk [vmem:[%s4116 + $0x20] sm:$0xff] %vm1139, %v4346
          %4363 = vst.msk [vmem:[%s4116 + $0x28] sm:$0xff] %vm1139, %v4347
          %4364 = vst.msk [vmem:[%s4116 + $0x30] sm:$0xff] %vm1139, %v4348
          %4365 = vst.msk [vmem:[%s4116 + $0x38] sm:$0xff] %vm1139, %v4349
          %4366 = vst.msk [vmem:[%s4116 + $0x40] sm:$0xff] %vm1139, %v4350
          %4367 = vst.msk [vmem:[%s4116 + $0x48] sm:$0xff] %vm1139, %v4351
          %4368 = vst.msk [vmem:[%s4116 + $0x50] sm:$0xff] %vm1139, %v4352
          %4369 = vst.msk [vmem:[%s4116 + $0x58] sm:$0xff] %vm1139, %v4353
          %4370 = vst.msk [vmem:[%s4116 + $0x60] sm:$0xff] %vm1139, %v4354
          %4371 = vst.msk [vmem:[%s4116 + $0x68] sm:$0xff] %vm1139, %v4355
          %4372 = vst.msk [vmem:[%s4116 + $0x70] sm:$0xff] %vm1139, %v4356
          %4373 = vst.msk [vmem:[%s4116 + $0x78] sm:$0xff] %vm1139, %v4357
          %4374 = vst.msk [vmem:[%s3762] sm:$0xff] %vm1637, %v3811
          %4375 = vst.msk [vmem:[%s3762 + $0x8] sm:$0xff] %vm1637, %v3812
          %4376 = vst.msk [vmem:[%s3762 + $0x10] sm:$0xff] %vm1637, %v3813
          %4377 = vst.msk [vmem:[%s3762 + $0x18] sm:$0xff] %vm1637, %v3814
          %4378 = vst.msk [vmem:[%s3762 + $0x20] sm:$0xff] %vm1637, %v3815
          %4379 = vst.msk [vmem:[%s3762 + $0x28] sm:$0xff] %vm1637, %v3816
          %4380 = vst.msk [vmem:[%s3762 + $0x30] sm:$0xff] %vm1637, %v3817
          %4381 = vst.msk [vmem:[%s3762 + $0x38] sm:$0xff] %vm1637, %v3818
          %4382 = vst.msk [vmem:[%s3762 + $0x40] sm:$0xff] %vm1637, %v3819
          %4383 = vst.msk [vmem:[%s3762 + $0x48] sm:$0xff] %vm1637, %v3820
          %4384 = vst.msk [vmem:[%s3762 + $0x50] sm:$0xff] %vm1637, %v3821
          %4385 = vst.msk [vmem:[%s3762 + $0x58] sm:$0xff] %vm1637, %v3822
          %4386 = vst.msk [vmem:[%s3762 + $0x60] sm:$0xff] %vm1637, %v3823
          %4387 = vst.msk [vmem:[%s3762 + $0x68] sm:$0xff] %vm1637, %v3824
          %4388 = vst.msk [vmem:[%s3762 + $0x70] sm:$0xff] %vm1637, %v3825
          %4389 = vst.msk [vmem:[%s3762 + $0x78] sm:$0xff] %vm1637, %v3826
        $region105: #{tpu_custom_call.1} parent=92 // pred_fallthru
          _
        %p4390 = scmp.eq.s32.totalorder %s34, 1
        // Predicated region
        $region106: #{tpu_custom_call.1} parent=92 // pred_check
          %p4391 = pneg %p4390
        $region107: #{tpu_custom_call.1} parent=92 // pred_check_branch
          %4393 = sbr.rel (%p4391) target = $region109
        $region108: #{tpu_custom_call.1} parent=92 // pred_region
          %v4394 = vld [vmem:[#allocation3] sm:$0xff]
          %v4395 = vld [vmem:[#allocation3 + $0x8] sm:$0xff]
          %v4396 = vld [vmem:[#allocation3 + $0x10] sm:$0xff]
          %v4397 = vld [vmem:[#allocation3 + $0x18] sm:$0xff]
          %v4398 = vld [vmem:[#allocation3 + $0x20] sm:$0xff]
          %v4399 = vld [vmem:[#allocation3 + $0x28] sm:$0xff]
          %v4400 = vld [vmem:[#allocation3 + $0x30] sm:$0xff]
          %v4401 = vld [vmem:[#allocation3 + $0x38] sm:$0xff]
          %v4402 = vld [vmem:[#allocation3 + $0x40] sm:$0xff]
          %v4403 = vld [vmem:[#allocation3 + $0x48] sm:$0xff]
          %v4404 = vld [vmem:[#allocation3 + $0x50] sm:$0xff]
          %v4405 = vld [vmem:[#allocation3 + $0x58] sm:$0xff]
          %v4406 = vld [vmem:[#allocation3 + $0x60] sm:$0xff]
          %v4407 = vld [vmem:[#allocation3 + $0x68] sm:$0xff]
          %v4408 = vld [vmem:[#allocation3 + $0x70] sm:$0xff]
          %v4409 = vld [vmem:[#allocation3 + $0x78] sm:$0xff]
          %v4410 = vld [vmem:[#allocation5] sm:$0xff]
          %v4411 = vld [vmem:[#allocation5 + $0x8] sm:$0xff]
          %v4412 = vld [vmem:[#allocation5 + $0x10] sm:$0xff]
          %v4413 = vld [vmem:[#allocation5 + $0x18] sm:$0xff]
          %v4414 = vld [vmem:[#allocation5 + $0x20] sm:$0xff]
          %v4415 = vld [vmem:[#allocation5 + $0x28] sm:$0xff]
          %v4416 = vld [vmem:[#allocation5 + $0x30] sm:$0xff]
          %v4417 = vld [vmem:[#allocation5 + $0x38] sm:$0xff]
          %v4418 = vld [vmem:[#allocation5 + $0x40] sm:$0xff]
          %v4419 = vld [vmem:[#allocation5 + $0x48] sm:$0xff]
          %v4420 = vld [vmem:[#allocation5 + $0x50] sm:$0xff]
          %v4421 = vld [vmem:[#allocation5 + $0x58] sm:$0xff]
          %v4422 = vld [vmem:[#allocation5 + $0x60] sm:$0xff]
          %v4423 = vld [vmem:[#allocation5 + $0x68] sm:$0xff]
          %v4424 = vld [vmem:[#allocation5 + $0x70] sm:$0xff]
          %v4425 = vld [vmem:[#allocation5 + $0x78] sm:$0xff]
          %v4426 = vmax.f32 %v4410, 1e-16
          %v4427 = vmax.f32 %v4411, 1e-16
          %v4428 = vmax.f32 %v4412, 1e-16
          %v4429 = vmax.f32 %v4413, 1e-16
          %v4430 = vmax.f32 %v4414, 1e-16
          %v4431 = vmax.f32 %v4415, 1e-16
          %v4432 = vmax.f32 %v4416, 1e-16
          %v4433 = vmax.f32 %v4417, 1e-16
          %v4434 = vmax.f32 %v4418, 1e-16
          %v4435 = vmax.f32 %v4419, 1e-16
          %v4436 = vmax.f32 %v4420, 1e-16
          %v4437 = vmax.f32 %v4421, 1e-16
          %v4438 = vmax.f32 %v4422, 1e-16
          %v4439 = vmax.f32 %v4423, 1e-16
          %v4440 = vmax.f32 %v4424, 1e-16
          %v4441 = vmax.f32 %v4425, 1e-16
          %v4442 = vrcp.pop %v4426
          %v4443 = vrcp.pop %v4427
          %v4444 = vrcp.pop %v4428
          %v4445 = vrcp.pop %v4429
          %v4446 = vrcp.pop %v4430
          %v4447 = vrcp.pop %v4431
          %v4448 = vrcp.pop %v4432
          %v4449 = vrcp.pop %v4433
          %v4450 = vrcp.pop %v4434
          %v4451 = vrcp.pop %v4435
          %v4452 = vrcp.pop %v4436
          %v4453 = vrcp.pop %v4437
          %v4454 = vrcp.pop %v4438
          %v4455 = vrcp.pop %v4439
          %v4456 = vrcp.pop %v4440
          %v4457 = vrcp.pop %v4441
          %v4458 = vld [vmem:[#allocation6] sm:$0xff]
          %v4459 = vld [vmem:[#allocation6 + $0x8] sm:$0xff]
          %v4460 = vld [vmem:[#allocation6 + $0x10] sm:$0xff]
          %v4461 = vld [vmem:[#allocation6 + $0x18] sm:$0xff]
          %v4462 = vld [vmem:[#allocation6 + $0x20] sm:$0xff]
          %v4463 = vld [vmem:[#allocation6 + $0x28] sm:$0xff]
          %v4464 = vld [vmem:[#allocation6 + $0x30] sm:$0xff]
          %v4465 = vld [vmem:[#allocation6 + $0x38] sm:$0xff]
          %v4466 = vld [vmem:[#allocation6 + $0x40] sm:$0xff]
          %v4467 = vld [vmem:[#allocation6 + $0x48] sm:$0xff]
          %v4468 = vld [vmem:[#allocation6 + $0x50] sm:$0xff]
          %v4469 = vld [vmem:[#allocation6 + $0x58] sm:$0xff]
          %v4470 = vld [vmem:[#allocation6 + $0x60] sm:$0xff]
          %v4471 = vld [vmem:[#allocation6 + $0x68] sm:$0xff]
          %v4472 = vld [vmem:[#allocation6 + $0x70] sm:$0xff]
          %v4473 = vld [vmem:[#allocation6 + $0x78] sm:$0xff]
          %4475 = vset.pattern.permute.xlu0 0
          %4476 = vperm.xlu0 %4475, %v4442
          %v4477 = vpop.permute.xlu0 %4476
          %4480 = vset.pattern.permute.xlu0 0
          %4481 = vperm.xlu0 %4480, %v4443
          %v4482 = vpop.permute.xlu0 %4481
          %4485 = vset.pattern.permute.xlu0 0
          %4486 = vperm.xlu0 %4485, %v4444
          %v4487 = vpop.permute.xlu0 %4486
          %4490 = vset.pattern.permute.xlu0 0
          %4491 = vperm.xlu0 %4490, %v4445
          %v4492 = vpop.permute.xlu0 %4491
          %4495 = vset.pattern.permute.xlu0 0
          %4496 = vperm.xlu0 %4495, %v4446
          %v4497 = vpop.permute.xlu0 %4496
          %4500 = vset.pattern.permute.xlu0 0
          %4501 = vperm.xlu0 %4500, %v4447
          %v4502 = vpop.permute.xlu0 %4501
          %4505 = vset.pattern.permute.xlu0 0
          %4506 = vperm.xlu0 %4505, %v4448
          %v4507 = vpop.permute.xlu0 %4506
          %4510 = vset.pattern.permute.xlu0 0
          %4511 = vperm.xlu0 %4510, %v4449
          %v4512 = vpop.permute.xlu0 %4511
          %4515 = vset.pattern.permute.xlu0 0
          %4516 = vperm.xlu0 %4515, %v4450
          %v4517 = vpop.permute.xlu0 %4516
          %4520 = vset.pattern.permute.xlu0 0
          %4521 = vperm.xlu0 %4520, %v4451
          %v4522 = vpop.permute.xlu0 %4521
          %4525 = vset.pattern.permute.xlu0 0
          %4526 = vperm.xlu0 %4525, %v4452
          %v4527 = vpop.permute.xlu0 %4526
          %4530 = vset.pattern.permute.xlu0 0
          %4531 = vperm.xlu0 %4530, %v4453
          %v4532 = vpop.permute.xlu0 %4531
          %4535 = vset.pattern.permute.xlu0 0
          %4536 = vperm.xlu0 %4535, %v4454
          %v4537 = vpop.permute.xlu0 %4536
          %4540 = vset.pattern.permute.xlu0 0
          %4541 = vperm.xlu0 %4540, %v4455
          %v4542 = vpop.permute.xlu0 %4541
          %4545 = vset.pattern.permute.xlu0 0
          %4546 = vperm.xlu0 %4545, %v4456
          %v4547 = vpop.permute.xlu0 %4546
          %4550 = vset.pattern.permute.xlu0 0
          %4551 = vperm.xlu0 %4550, %v4457
          %v4552 = vpop.permute.xlu0 %4551
          %v4554 = vmul.f32 %v4458, %v4477
          %v4555 = vmul.f32 %v4459, %v4482
          %v4556 = vmul.f32 %v4460, %v4487
          %v4557 = vmul.f32 %v4461, %v4492
          %v4558 = vmul.f32 %v4462, %v4497
          %v4559 = vmul.f32 %v4463, %v4502
          %v4560 = vmul.f32 %v4464, %v4507
          %v4561 = vmul.f32 %v4465, %v4512
          %v4562 = vmul.f32 %v4466, %v4517
          %v4563 = vmul.f32 %v4467, %v4522
          %v4564 = vmul.f32 %v4468, %v4527
          %v4565 = vmul.f32 %v4469, %v4532
          %v4566 = vmul.f32 %v4470, %v4537
          %v4567 = vmul.f32 %v4471, %v4542
          %v4568 = vmul.f32 %v4472, %v4547
          %v4569 = vmul.f32 %v4473, %v4552
          %s4570 = scalar_lea.vmem [#allocation5], 128
          %v4571 = vld [vmem:[%s4570] sm:$0xff]
          %v4572 = vld [vmem:[%s4570 + $0x8] sm:$0xff]
          %v4573 = vld [vmem:[%s4570 + $0x10] sm:$0xff]
          %v4574 = vld [vmem:[%s4570 + $0x18] sm:$0xff]
          %v4575 = vld [vmem:[%s4570 + $0x20] sm:$0xff]
          %v4576 = vld [vmem:[%s4570 + $0x28] sm:$0xff]
          %v4577 = vld [vmem:[%s4570 + $0x30] sm:$0xff]
          %v4578 = vld [vmem:[%s4570 + $0x38] sm:$0xff]
          %v4579 = vld [vmem:[%s4570 + $0x40] sm:$0xff]
          %v4580 = vld [vmem:[%s4570 + $0x48] sm:$0xff]
          %v4581 = vld [vmem:[%s4570 + $0x50] sm:$0xff]
          %v4582 = vld [vmem:[%s4570 + $0x58] sm:$0xff]
          %v4583 = vld [vmem:[%s4570 + $0x60] sm:$0xff]
          %v4584 = vld [vmem:[%s4570 + $0x68] sm:$0xff]
          %v4585 = vld [vmem:[%s4570 + $0x70] sm:$0xff]
          %v4586 = vld [vmem:[%s4570 + $0x78] sm:$0xff]
          %v4587 = vmax.f32 %v4571, 1e-16
          %v4588 = vmax.f32 %v4572, 1e-16
          %v4589 = vmax.f32 %v4573, 1e-16
          %v4590 = vmax.f32 %v4574, 1e-16
          %v4591 = vmax.f32 %v4575, 1e-16
          %v4592 = vmax.f32 %v4576, 1e-16
          %v4593 = vmax.f32 %v4577, 1e-16
          %v4594 = vmax.f32 %v4578, 1e-16
          %v4595 = vmax.f32 %v4579, 1e-16
          %v4596 = vmax.f32 %v4580, 1e-16
          %v4597 = vmax.f32 %v4581, 1e-16
          %v4598 = vmax.f32 %v4582, 1e-16
          %v4599 = vmax.f32 %v4583, 1e-16
          %v4600 = vmax.f32 %v4584, 1e-16
          %v4601 = vmax.f32 %v4585, 1e-16
          %v4602 = vmax.f32 %v4586, 1e-16
          %v4603 = vrcp.pop %v4587
          %v4604 = vrcp.pop %v4588
          %v4605 = vrcp.pop %v4589
          %v4606 = vrcp.pop %v4590
          %v4607 = vrcp.pop %v4591
          %v4608 = vrcp.pop %v4592
          %v4609 = vrcp.pop %v4593
          %v4610 = vrcp.pop %v4594
          %v4611 = vrcp.pop %v4595
          %v4612 = vrcp.pop %v4596
          %v4613 = vrcp.pop %v4597
          %v4614 = vrcp.pop %v4598
          %v4615 = vrcp.pop %v4599
          %v4616 = vrcp.pop %v4600
          %v4617 = vrcp.pop %v4601
          %v4618 = vrcp.pop %v4602
          %s4619 = scalar_lea.vmem [#allocation6], 128
          %v4620 = vld [vmem:[%s4619] sm:$0xff]
          %v4621 = vld [vmem:[%s4619 + $0x8] sm:$0xff]
          %v4622 = vld [vmem:[%s4619 + $0x10] sm:$0xff]
          %v4623 = vld [vmem:[%s4619 + $0x18] sm:$0xff]
          %v4624 = vld [vmem:[%s4619 + $0x20] sm:$0xff]
          %v4625 = vld [vmem:[%s4619 + $0x28] sm:$0xff]
          %v4626 = vld [vmem:[%s4619 + $0x30] sm:$0xff]
          %v4627 = vld [vmem:[%s4619 + $0x38] sm:$0xff]
          %v4628 = vld [vmem:[%s4619 + $0x40] sm:$0xff]
          %v4629 = vld [vmem:[%s4619 + $0x48] sm:$0xff]
          %v4630 = vld [vmem:[%s4619 + $0x50] sm:$0xff]
          %v4631 = vld [vmem:[%s4619 + $0x58] sm:$0xff]
          %v4632 = vld [vmem:[%s4619 + $0x60] sm:$0xff]
          %v4633 = vld [vmem:[%s4619 + $0x68] sm:$0xff]
          %v4634 = vld [vmem:[%s4619 + $0x70] sm:$0xff]
          %v4635 = vld [vmem:[%s4619 + $0x78] sm:$0xff]
          %4637 = vset.pattern.permute.xlu0 0
          %4638 = vperm.xlu0 %4637, %v4603
          %v4639 = vpop.permute.xlu0 %4638
          %4642 = vset.pattern.permute.xlu0 0
          %4643 = vperm.xlu0 %4642, %v4604
          %v4644 = vpop.permute.xlu0 %4643
          %4647 = vset.pattern.permute.xlu0 0
          %4648 = vperm.xlu0 %4647, %v4605
          %v4649 = vpop.permute.xlu0 %4648
          %4652 = vset.pattern.permute.xlu0 0
          %4653 = vperm.xlu0 %4652, %v4606
          %v4654 = vpop.permute.xlu0 %4653
          %4657 = vset.pattern.permute.xlu0 0
          %4658 = vperm.xlu0 %4657, %v4607
          %v4659 = vpop.permute.xlu0 %4658
          %4662 = vset.pattern.permute.xlu0 0
          %4663 = vperm.xlu0 %4662, %v4608
          %v4664 = vpop.permute.xlu0 %4663
          %4667 = vset.pattern.permute.xlu0 0
          %4668 = vperm.xlu0 %4667, %v4609
          %v4669 = vpop.permute.xlu0 %4668
          %4672 = vset.pattern.permute.xlu0 0
          %4673 = vperm.xlu0 %4672, %v4610
          %v4674 = vpop.permute.xlu0 %4673
          %4677 = vset.pattern.permute.xlu0 0
          %4678 = vperm.xlu0 %4677, %v4611
          %v4679 = vpop.permute.xlu0 %4678
          %4682 = vset.pattern.permute.xlu0 0
          %4683 = vperm.xlu0 %4682, %v4612
          %v4684 = vpop.permute.xlu0 %4683
          %4687 = vset.pattern.permute.xlu0 0
          %4688 = vperm.xlu0 %4687, %v4613
          %v4689 = vpop.permute.xlu0 %4688
          %4692 = vset.pattern.permute.xlu0 0
          %4693 = vperm.xlu0 %4692, %v4614
          %v4694 = vpop.permute.xlu0 %4693
          %4697 = vset.pattern.permute.xlu0 0
          %4698 = vperm.xlu0 %4697, %v4615
          %v4699 = vpop.permute.xlu0 %4698
          %4702 = vset.pattern.permute.xlu0 0
          %4703 = vperm.xlu0 %4702, %v4616
          %v4704 = vpop.permute.xlu0 %4703
          %4707 = vset.pattern.permute.xlu0 0
          %4708 = vperm.xlu0 %4707, %v4617
          %v4709 = vpop.permute.xlu0 %4708
          %4712 = vset.pattern.permute.xlu0 0
          %4713 = vperm.xlu0 %4712, %v4618
          %v4714 = vpop.permute.xlu0 %4713
          %v4716 = vmul.f32 %v4620, %v4639
          %v4717 = vmul.f32 %v4621, %v4644
          %v4718 = vmul.f32 %v4622, %v4649
          %v4719 = vmul.f32 %v4623, %v4654
          %v4720 = vmul.f32 %v4624, %v4659
          %v4721 = vmul.f32 %v4625, %v4664
          %v4722 = vmul.f32 %v4626, %v4669
          %v4723 = vmul.f32 %v4627, %v4674
          %v4724 = vmul.f32 %v4628, %v4679
          %v4725 = vmul.f32 %v4629, %v4684
          %v4726 = vmul.f32 %v4630, %v4689
          %v4727 = vmul.f32 %v4631, %v4694
          %v4728 = vmul.f32 %v4632, %v4699
          %v4729 = vmul.f32 %v4633, %v4704
          %v4730 = vmul.f32 %v4634, %v4709
          %v4731 = vmul.f32 %v4635, %v4714
          %s4732 = scalar_lea.vmem [#allocation5], 256
          %v4733 = vld [vmem:[%s4732] sm:$0xff]
          %v4734 = vld [vmem:[%s4732 + $0x8] sm:$0xff]
          %v4735 = vld [vmem:[%s4732 + $0x10] sm:$0xff]
          %v4736 = vld [vmem:[%s4732 + $0x18] sm:$0xff]
          %v4737 = vld [vmem:[%s4732 + $0x20] sm:$0xff]
          %v4738 = vld [vmem:[%s4732 + $0x28] sm:$0xff]
          %v4739 = vld [vmem:[%s4732 + $0x30] sm:$0xff]
          %v4740 = vld [vmem:[%s4732 + $0x38] sm:$0xff]
          %v4741 = vld [vmem:[%s4732 + $0x40] sm:$0xff]
          %v4742 = vld [vmem:[%s4732 + $0x48] sm:$0xff]
          %v4743 = vld [vmem:[%s4732 + $0x50] sm:$0xff]
          %v4744 = vld [vmem:[%s4732 + $0x58] sm:$0xff]
          %v4745 = vld [vmem:[%s4732 + $0x60] sm:$0xff]
          %v4746 = vld [vmem:[%s4732 + $0x68] sm:$0xff]
          %v4747 = vld [vmem:[%s4732 + $0x70] sm:$0xff]
          %v4748 = vld [vmem:[%s4732 + $0x78] sm:$0xff]
          %v4749 = vmax.f32 %v4733, 1e-16
          %v4750 = vmax.f32 %v4734, 1e-16
          %v4751 = vmax.f32 %v4735, 1e-16
          %v4752 = vmax.f32 %v4736, 1e-16
          %v4753 = vmax.f32 %v4737, 1e-16
          %v4754 = vmax.f32 %v4738, 1e-16
          %v4755 = vmax.f32 %v4739, 1e-16
          %v4756 = vmax.f32 %v4740, 1e-16
          %v4757 = vmax.f32 %v4741, 1e-16
          %v4758 = vmax.f32 %v4742, 1e-16
          %v4759 = vmax.f32 %v4743, 1e-16
          %v4760 = vmax.f32 %v4744, 1e-16
          %v4761 = vmax.f32 %v4745, 1e-16
          %v4762 = vmax.f32 %v4746, 1e-16
          %v4763 = vmax.f32 %v4747, 1e-16
          %v4764 = vmax.f32 %v4748, 1e-16
          %v4765 = vrcp.pop %v4749
          %v4766 = vrcp.pop %v4750
          %v4767 = vrcp.pop %v4751
          %v4768 = vrcp.pop %v4752
          %v4769 = vrcp.pop %v4753
          %v4770 = vrcp.pop %v4754
          %v4771 = vrcp.pop %v4755
          %v4772 = vrcp.pop %v4756
          %v4773 = vrcp.pop %v4757
          %v4774 = vrcp.pop %v4758
          %v4775 = vrcp.pop %v4759
          %v4776 = vrcp.pop %v4760
          %v4777 = vrcp.pop %v4761
          %v4778 = vrcp.pop %v4762
          %v4779 = vrcp.pop %v4763
          %v4780 = vrcp.pop %v4764
          %s4781 = scalar_lea.vmem [#allocation6], 256
          %v4782 = vld [vmem:[%s4781] sm:$0xff]
          %v4783 = vld [vmem:[%s4781 + $0x8] sm:$0xff]
          %v4784 = vld [vmem:[%s4781 + $0x10] sm:$0xff]
          %v4785 = vld [vmem:[%s4781 + $0x18] sm:$0xff]
          %v4786 = vld [vmem:[%s4781 + $0x20] sm:$0xff]
          %v4787 = vld [vmem:[%s4781 + $0x28] sm:$0xff]
          %v4788 = vld [vmem:[%s4781 + $0x30] sm:$0xff]
          %v4789 = vld [vmem:[%s4781 + $0x38] sm:$0xff]
          %v4790 = vld [vmem:[%s4781 + $0x40] sm:$0xff]
          %v4791 = vld [vmem:[%s4781 + $0x48] sm:$0xff]
          %v4792 = vld [vmem:[%s4781 + $0x50] sm:$0xff]
          %v4793 = vld [vmem:[%s4781 + $0x58] sm:$0xff]
          %v4794 = vld [vmem:[%s4781 + $0x60] sm:$0xff]
          %v4795 = vld [vmem:[%s4781 + $0x68] sm:$0xff]
          %v4796 = vld [vmem:[%s4781 + $0x70] sm:$0xff]
          %v4797 = vld [vmem:[%s4781 + $0x78] sm:$0xff]
          %4799 = vset.pattern.permute.xlu0 0
          %4800 = vperm.xlu0 %4799, %v4765
          %v4801 = vpop.permute.xlu0 %4800
          %4804 = vset.pattern.permute.xlu0 0
          %4805 = vperm.xlu0 %4804, %v4766
          %v4806 = vpop.permute.xlu0 %4805
          %4809 = vset.pattern.permute.xlu0 0
          %4810 = vperm.xlu0 %4809, %v4767
          %v4811 = vpop.permute.xlu0 %4810
          %4814 = vset.pattern.permute.xlu0 0
          %4815 = vperm.xlu0 %4814, %v4768
          %v4816 = vpop.permute.xlu0 %4815
          %4819 = vset.pattern.permute.xlu0 0
          %4820 = vperm.xlu0 %4819, %v4769
          %v4821 = vpop.permute.xlu0 %4820
          %4824 = vset.pattern.permute.xlu0 0
          %4825 = vperm.xlu0 %4824, %v4770
          %v4826 = vpop.permute.xlu0 %4825
          %4829 = vset.pattern.permute.xlu0 0
          %4830 = vperm.xlu0 %4829, %v4771
          %v4831 = vpop.permute.xlu0 %4830
          %4834 = vset.pattern.permute.xlu0 0
          %4835 = vperm.xlu0 %4834, %v4772
          %v4836 = vpop.permute.xlu0 %4835
          %4839 = vset.pattern.permute.xlu0 0
          %4840 = vperm.xlu0 %4839, %v4773
          %v4841 = vpop.permute.xlu0 %4840
          %4844 = vset.pattern.permute.xlu0 0
          %4845 = vperm.xlu0 %4844, %v4774
          %v4846 = vpop.permute.xlu0 %4845
          %4849 = vset.pattern.permute.xlu0 0
          %4850 = vperm.xlu0 %4849, %v4775
          %v4851 = vpop.permute.xlu0 %4850
          %4854 = vset.pattern.permute.xlu0 0
          %4855 = vperm.xlu0 %4854, %v4776
          %v4856 = vpop.permute.xlu0 %4855
          %4859 = vset.pattern.permute.xlu0 0
          %4860 = vperm.xlu0 %4859, %v4777
          %v4861 = vpop.permute.xlu0 %4860
          %4864 = vset.pattern.permute.xlu0 0
          %4865 = vperm.xlu0 %4864, %v4778
          %v4866 = vpop.permute.xlu0 %4865
          %4869 = vset.pattern.permute.xlu0 0
          %4870 = vperm.xlu0 %4869, %v4779
          %v4871 = vpop.permute.xlu0 %4870
          %4874 = vset.pattern.permute.xlu0 0
          %4875 = vperm.xlu0 %4874, %v4780
          %v4876 = vpop.permute.xlu0 %4875
          %v4878 = vmul.f32 %v4782, %v4801
          %v4879 = vmul.f32 %v4783, %v4806
          %v4880 = vmul.f32 %v4784, %v4811
          %v4881 = vmul.f32 %v4785, %v4816
          %v4882 = vmul.f32 %v4786, %v4821
          %v4883 = vmul.f32 %v4787, %v4826
          %v4884 = vmul.f32 %v4788, %v4831
          %v4885 = vmul.f32 %v4789, %v4836
          %v4886 = vmul.f32 %v4790, %v4841
          %v4887 = vmul.f32 %v4791, %v4846
          %v4888 = vmul.f32 %v4792, %v4851
          %v4889 = vmul.f32 %v4793, %v4856
          %v4890 = vmul.f32 %v4794, %v4861
          %v4891 = vmul.f32 %v4795, %v4866
          %v4892 = vmul.f32 %v4796, %v4871
          %v4893 = vmul.f32 %v4797, %v4876
          %s4894 = scalar_lea.vmem [#allocation5], 384
          %v4895 = vld [vmem:[%s4894] sm:$0xff]
          %v4896 = vld [vmem:[%s4894 + $0x8] sm:$0xff]
          %v4897 = vld [vmem:[%s4894 + $0x10] sm:$0xff]
          %v4898 = vld [vmem:[%s4894 + $0x18] sm:$0xff]
          %v4899 = vld [vmem:[%s4894 + $0x20] sm:$0xff]
          %v4900 = vld [vmem:[%s4894 + $0x28] sm:$0xff]
          %v4901 = vld [vmem:[%s4894 + $0x30] sm:$0xff]
          %v4902 = vld [vmem:[%s4894 + $0x38] sm:$0xff]
          %v4903 = vld [vmem:[%s4894 + $0x40] sm:$0xff]
          %v4904 = vld [vmem:[%s4894 + $0x48] sm:$0xff]
          %v4905 = vld [vmem:[%s4894 + $0x50] sm:$0xff]
          %v4906 = vld [vmem:[%s4894 + $0x58] sm:$0xff]
          %v4907 = vld [vmem:[%s4894 + $0x60] sm:$0xff]
          %v4908 = vld [vmem:[%s4894 + $0x68] sm:$0xff]
          %v4909 = vld [vmem:[%s4894 + $0x70] sm:$0xff]
          %v4910 = vld [vmem:[%s4894 + $0x78] sm:$0xff]
          %v4911 = vmax.f32 %v4895, 1e-16
          %v4912 = vmax.f32 %v4896, 1e-16
          %v4913 = vmax.f32 %v4897, 1e-16
          %v4914 = vmax.f32 %v4898, 1e-16
          %v4915 = vmax.f32 %v4899, 1e-16
          %v4916 = vmax.f32 %v4900, 1e-16
          %v4917 = vmax.f32 %v4901, 1e-16
          %v4918 = vmax.f32 %v4902, 1e-16
          %v4919 = vmax.f32 %v4903, 1e-16
          %v4920 = vmax.f32 %v4904, 1e-16
          %v4921 = vmax.f32 %v4905, 1e-16
          %v4922 = vmax.f32 %v4906, 1e-16
          %v4923 = vmax.f32 %v4907, 1e-16
          %v4924 = vmax.f32 %v4908, 1e-16
          %v4925 = vmax.f32 %v4909, 1e-16
          %v4926 = vmax.f32 %v4910, 1e-16
          %v4927 = vrcp.pop %v4911
          %v4928 = vrcp.pop %v4912
          %v4929 = vrcp.pop %v4913
          %v4930 = vrcp.pop %v4914
          %v4931 = vrcp.pop %v4915
          %v4932 = vrcp.pop %v4916
          %v4933 = vrcp.pop %v4917
          %v4934 = vrcp.pop %v4918
          %v4935 = vrcp.pop %v4919
          %v4936 = vrcp.pop %v4920
          %v4937 = vrcp.pop %v4921
          %v4938 = vrcp.pop %v4922
          %v4939 = vrcp.pop %v4923
          %v4940 = vrcp.pop %v4924
          %v4941 = vrcp.pop %v4925
          %v4942 = vrcp.pop %v4926
          %s4943 = scalar_lea.vmem [#allocation6], 384
          %v4944 = vld [vmem:[%s4943] sm:$0xff]
          %v4945 = vld [vmem:[%s4943 + $0x8] sm:$0xff]
          %v4946 = vld [vmem:[%s4943 + $0x10] sm:$0xff]
          %v4947 = vld [vmem:[%s4943 + $0x18] sm:$0xff]
          %v4948 = vld [vmem:[%s4943 + $0x20] sm:$0xff]
          %v4949 = vld [vmem:[%s4943 + $0x28] sm:$0xff]
          %v4950 = vld [vmem:[%s4943 + $0x30] sm:$0xff]
          %v4951 = vld [vmem:[%s4943 + $0x38] sm:$0xff]
          %v4952 = vld [vmem:[%s4943 + $0x40] sm:$0xff]
          %v4953 = vld [vmem:[%s4943 + $0x48] sm:$0xff]
          %v4954 = vld [vmem:[%s4943 + $0x50] sm:$0xff]
          %v4955 = vld [vmem:[%s4943 + $0x58] sm:$0xff]
          %v4956 = vld [vmem:[%s4943 + $0x60] sm:$0xff]
          %v4957 = vld [vmem:[%s4943 + $0x68] sm:$0xff]
          %v4958 = vld [vmem:[%s4943 + $0x70] sm:$0xff]
          %v4959 = vld [vmem:[%s4943 + $0x78] sm:$0xff]
          %4961 = vset.pattern.permute.xlu0 0
          %4962 = vperm.xlu0 %4961, %v4927
          %v4963 = vpop.permute.xlu0 %4962
          %4966 = vset.pattern.permute.xlu0 0
          %4967 = vperm.xlu0 %4966, %v4928
          %v4968 = vpop.permute.xlu0 %4967
          %4971 = vset.pattern.permute.xlu0 0
          %4972 = vperm.xlu0 %4971, %v4929
          %v4973 = vpop.permute.xlu0 %4972
          %4976 = vset.pattern.permute.xlu0 0
          %4977 = vperm.xlu0 %4976, %v4930
          %v4978 = vpop.permute.xlu0 %4977
          %4981 = vset.pattern.permute.xlu0 0
          %4982 = vperm.xlu0 %4981, %v4931
          %v4983 = vpop.permute.xlu0 %4982
          %4986 = vset.pattern.permute.xlu0 0
          %4987 = vperm.xlu0 %4986, %v4932
          %v4988 = vpop.permute.xlu0 %4987
          %4991 = vset.pattern.permute.xlu0 0
          %4992 = vperm.xlu0 %4991, %v4933
          %v4993 = vpop.permute.xlu0 %4992
          %4996 = vset.pattern.permute.xlu0 0
          %4997 = vperm.xlu0 %4996, %v4934
          %v4998 = vpop.permute.xlu0 %4997
          %5001 = vset.pattern.permute.xlu0 0
          %5002 = vperm.xlu0 %5001, %v4935
          %v5003 = vpop.permute.xlu0 %5002
          %5006 = vset.pattern.permute.xlu0 0
          %5007 = vperm.xlu0 %5006, %v4936
          %v5008 = vpop.permute.xlu0 %5007
          %5011 = vset.pattern.permute.xlu0 0
          %5012 = vperm.xlu0 %5011, %v4937
          %v5013 = vpop.permute.xlu0 %5012
          %5016 = vset.pattern.permute.xlu0 0
          %5017 = vperm.xlu0 %5016, %v4938
          %v5018 = vpop.permute.xlu0 %5017
          %5021 = vset.pattern.permute.xlu0 0
          %5022 = vperm.xlu0 %5021, %v4939
          %v5023 = vpop.permute.xlu0 %5022
          %5026 = vset.pattern.permute.xlu0 0
          %5027 = vperm.xlu0 %5026, %v4940
          %v5028 = vpop.permute.xlu0 %5027
          %5031 = vset.pattern.permute.xlu0 0
          %5032 = vperm.xlu0 %5031, %v4941
          %v5033 = vpop.permute.xlu0 %5032
          %5036 = vset.pattern.permute.xlu0 0
          %5037 = vperm.xlu0 %5036, %v4942
          %v5038 = vpop.permute.xlu0 %5037
          %v5040 = vmul.f32 %v4944, %v4963
          %v5041 = vmul.f32 %v4945, %v4968
          %v5042 = vmul.f32 %v4946, %v4973
          %v5043 = vmul.f32 %v4947, %v4978
          %v5044 = vmul.f32 %v4948, %v4983
          %v5045 = vmul.f32 %v4949, %v4988
          %v5046 = vmul.f32 %v4950, %v4993
          %v5047 = vmul.f32 %v4951, %v4998
          %v5048 = vmul.f32 %v4952, %v5003
          %v5049 = vmul.f32 %v4953, %v5008
          %v5050 = vmul.f32 %v4954, %v5013
          %v5051 = vmul.f32 %v4955, %v5018
          %v5052 = vmul.f32 %v4956, %v5023
          %v5053 = vmul.f32 %v4957, %v5028
          %v5054 = vmul.f32 %v4958, %v5033
          %v5055 = vmul.f32 %v4959, %v5038
          %5072 = vrot.lane.b32.xlu0 %v4716, 16
          %v5073 = vpop.permute.xlu0 %5072
          %5074 = vrot.lane.b32.xlu0 %v4717, 16
          %v5075 = vpop.permute.xlu0 %5074
          %5076 = vrot.lane.b32.xlu0 %v4718, 16
          %v5077 = vpop.permute.xlu0 %5076
          %5078 = vrot.lane.b32.xlu0 %v4719, 16
          %v5079 = vpop.permute.xlu0 %5078
          %5080 = vrot.lane.b32.xlu0 %v4720, 16
          %v5081 = vpop.permute.xlu0 %5080
          %5082 = vrot.lane.b32.xlu0 %v4721, 16
          %v5083 = vpop.permute.xlu0 %5082
          %5084 = vrot.lane.b32.xlu0 %v4722, 16
          %v5085 = vpop.permute.xlu0 %5084
          %5086 = vrot.lane.b32.xlu0 %v4723, 16
          %v5087 = vpop.permute.xlu0 %5086
          %5088 = vrot.lane.b32.xlu0 %v4724, 16
          %v5089 = vpop.permute.xlu0 %5088
          %5090 = vrot.lane.b32.xlu0 %v4725, 16
          %v5091 = vpop.permute.xlu0 %5090
          %5092 = vrot.lane.b32.xlu0 %v4726, 16
          %v5093 = vpop.permute.xlu0 %5092
          %5094 = vrot.lane.b32.xlu0 %v4727, 16
          %v5095 = vpop.permute.xlu0 %5094
          %5096 = vrot.lane.b32.xlu0 %v4728, 16
          %v5097 = vpop.permute.xlu0 %5096
          %5098 = vrot.lane.b32.xlu0 %v4729, 16
          %v5099 = vpop.permute.xlu0 %5098
          %5100 = vrot.lane.b32.xlu0 %v4730, 16
          %v5101 = vpop.permute.xlu0 %5100
          %5102 = vrot.lane.b32.xlu0 %v4731, 16
          %v5103 = vpop.permute.xlu0 %5102
          %5136 = vrot.lane.b32.xlu0 %v4878, 32
          %v5137 = vpop.permute.xlu0 %5136
          %5138 = vrot.lane.b32.xlu0 %v4879, 32
          %v5139 = vpop.permute.xlu0 %5138
          %5140 = vrot.lane.b32.xlu0 %v4880, 32
          %v5141 = vpop.permute.xlu0 %5140
          %5142 = vrot.lane.b32.xlu0 %v4881, 32
          %v5143 = vpop.permute.xlu0 %5142
          %5144 = vrot.lane.b32.xlu0 %v4882, 32
          %v5145 = vpop.permute.xlu0 %5144
          %5146 = vrot.lane.b32.xlu0 %v4883, 32
          %v5147 = vpop.permute.xlu0 %5146
          %5148 = vrot.lane.b32.xlu0 %v4884, 32
          %v5149 = vpop.permute.xlu0 %5148
          %5150 = vrot.lane.b32.xlu0 %v4885, 32
          %v5151 = vpop.permute.xlu0 %5150
          %5152 = vrot.lane.b32.xlu0 %v4886, 32
          %v5153 = vpop.permute.xlu0 %5152
          %5154 = vrot.lane.b32.xlu0 %v4887, 32
          %v5155 = vpop.permute.xlu0 %5154
          %5156 = vrot.lane.b32.xlu0 %v4888, 32
          %v5157 = vpop.permute.xlu0 %5156
          %5158 = vrot.lane.b32.xlu0 %v4889, 32
          %v5159 = vpop.permute.xlu0 %5158
          %5160 = vrot.lane.b32.xlu0 %v4890, 32
          %v5161 = vpop.permute.xlu0 %5160
          %5162 = vrot.lane.b32.xlu0 %v4891, 32
          %v5163 = vpop.permute.xlu0 %5162
          %5164 = vrot.lane.b32.xlu0 %v4892, 32
          %v5165 = vpop.permute.xlu0 %5164
          %5166 = vrot.lane.b32.xlu0 %v4893, 32
          %v5167 = vpop.permute.xlu0 %5166
          %5200 = vrot.lane.b32.xlu0 %v5040, 48
          %v5201 = vpop.permute.xlu0 %5200
          %5202 = vrot.lane.b32.xlu0 %v5041, 48
          %v5203 = vpop.permute.xlu0 %5202
          %5204 = vrot.lane.b32.xlu0 %v5042, 48
          %v5205 = vpop.permute.xlu0 %5204
          %5206 = vrot.lane.b32.xlu0 %v5043, 48
          %v5207 = vpop.permute.xlu0 %5206
          %5208 = vrot.lane.b32.xlu0 %v5044, 48
          %v5209 = vpop.permute.xlu0 %5208
          %5210 = vrot.lane.b32.xlu0 %v5045, 48
          %v5211 = vpop.permute.xlu0 %5210
          %5212 = vrot.lane.b32.xlu0 %v5046, 48
          %v5213 = vpop.permute.xlu0 %5212
          %5214 = vrot.lane.b32.xlu0 %v5047, 48
          %v5215 = vpop.permute.xlu0 %5214
          %5216 = vrot.lane.b32.xlu0 %v5048, 48
          %v5217 = vpop.permute.xlu0 %5216
          %5218 = vrot.lane.b32.xlu0 %v5049, 48
          %v5219 = vpop.permute.xlu0 %5218
          %5220 = vrot.lane.b32.xlu0 %v5050, 48
          %v5221 = vpop.permute.xlu0 %5220
          %5222 = vrot.lane.b32.xlu0 %v5051, 48
          %v5223 = vpop.permute.xlu0 %5222
          %5224 = vrot.lane.b32.xlu0 %v5052, 48
          %v5225 = vpop.permute.xlu0 %5224
          %5226 = vrot.lane.b32.xlu0 %v5053, 48
          %v5227 = vpop.permute.xlu0 %5226
          %5228 = vrot.lane.b32.xlu0 %v5054, 48
          %v5229 = vpop.permute.xlu0 %5228
          %5230 = vrot.lane.b32.xlu0 %v5055, 48
          %v5231 = vpop.permute.xlu0 %5230
          %vm5248 = vcmask 130048
          %v5249 = vsel %vm5248, %v4554, %v5073
          %v5250 = vsel %vm5248, %v4555, %v5075
          %v5251 = vsel %vm5248, %v4556, %v5077
          %v5252 = vsel %vm5248, %v4557, %v5079
          %v5253 = vsel %vm5248, %v4558, %v5081
          %v5254 = vsel %vm5248, %v4559, %v5083
          %v5255 = vsel %vm5248, %v4560, %v5085
          %v5256 = vsel %vm5248, %v4561, %v5087
          %v5257 = vsel %vm5248, %v4562, %v5089
          %v5258 = vsel %vm5248, %v4563, %v5091
          %v5259 = vsel %vm5248, %v4564, %v5093
          %v5260 = vsel %vm5248, %v4565, %v5095
          %v5261 = vsel %vm5248, %v4566, %v5097
          %v5262 = vsel %vm5248, %v4567, %v5099
          %v5263 = vsel %vm5248, %v4568, %v5101
          %v5264 = vsel %vm5248, %v4569, %v5103
          %vm5265 = vcmask 261120
          %v5266 = vsel %vm5265, %v5249, %v5137
          %v5267 = vsel %vm5265, %v5250, %v5139
          %v5268 = vsel %vm5265, %v5251, %v5141
          %v5269 = vsel %vm5265, %v5252, %v5143
          %v5270 = vsel %vm5265, %v5253, %v5145
          %v5271 = vsel %vm5265, %v5254, %v5147
          %v5272 = vsel %vm5265, %v5255, %v5149
          %v5273 = vsel %vm5265, %v5256, %v5151
          %v5274 = vsel %vm5265, %v5257, %v5153
          %v5275 = vsel %vm5265, %v5258, %v5155
          %v5276 = vsel %vm5265, %v5259, %v5157
          %v5277 = vsel %vm5265, %v5260, %v5159
          %v5278 = vsel %vm5265, %v5261, %v5161
          %v5279 = vsel %vm5265, %v5262, %v5163
          %v5280 = vsel %vm5265, %v5263, %v5165
          %v5281 = vsel %vm5265, %v5264, %v5167
          %vm5282 = vcmask 392192
          %v5283 = vsel %vm5282, %v5266, %v5201
          %v5284 = vsel %vm5282, %v5267, %v5203
          %v5285 = vsel %vm5282, %v5268, %v5205
          %v5286 = vsel %vm5282, %v5269, %v5207
          %v5287 = vsel %vm5282, %v5270, %v5209
          %v5288 = vsel %vm5282, %v5271, %v5211
          %v5289 = vsel %vm5282, %v5272, %v5213
          %v5290 = vsel %vm5282, %v5273, %v5215
          %v5291 = vsel %vm5282, %v5274, %v5217
          %v5292 = vsel %vm5282, %v5275, %v5219
          %v5293 = vsel %vm5282, %v5276, %v5221
          %v5294 = vsel %vm5282, %v5277, %v5223
          %v5295 = vsel %vm5282, %v5278, %v5225
          %v5296 = vsel %vm5282, %v5279, %v5227
          %v5297 = vsel %vm5282, %v5280, %v5229
          %v5298 = vsel %vm5282, %v5281, %v5231
          %v5299 = vld [vmem:[%s8] sm:$0xff]
          %v5300 = vld [vmem:[%s8 + $0x8] sm:$0xff]
          %v5301 = vld [vmem:[%s8 + $0x10] sm:$0xff]
          %v5302 = vld [vmem:[%s8 + $0x18] sm:$0xff]
          %v5303 = vld [vmem:[%s8 + $0x20] sm:$0xff]
          %v5304 = vld [vmem:[%s8 + $0x28] sm:$0xff]
          %v5305 = vld [vmem:[%s8 + $0x30] sm:$0xff]
          %v5306 = vld [vmem:[%s8 + $0x38] sm:$0xff]
          %v5307 = vld [vmem:[%s9] sm:$0xff]
          %v5308 = vld [vmem:[%s9 + $0x8] sm:$0xff]
          %v5309 = vld [vmem:[%s9 + $0x10] sm:$0xff]
          %v5310 = vld [vmem:[%s9 + $0x18] sm:$0xff]
          %v5311 = vld [vmem:[%s9 + $0x20] sm:$0xff]
          %v5312 = vld [vmem:[%s9 + $0x28] sm:$0xff]
          %v5313 = vld [vmem:[%s9 + $0x30] sm:$0xff]
          %v5314 = vld [vmem:[%s9 + $0x38] sm:$0xff]
          %vm5315 = vcmask 523264
          %v5317 = vsel %vm5315, %v4394, 0
          %v5320 = vsel %vm5315, %v4395, 0
          %v5323 = vsel %vm5315, %v4396, 0
          %v5326 = vsel %vm5315, %v4397, 0
          %v5329 = vsel %vm5315, %v4398, 0
          %v5332 = vsel %vm5315, %v4399, 0
          %v5335 = vsel %vm5315, %v4400, 0
          %v5338 = vsel %vm5315, %v4401, 0
          %v5341 = vsel %vm5315, %v4402, 0
          %v5344 = vsel %vm5315, %v4403, 0
          %v5347 = vsel %vm5315, %v4404, 0
          %v5350 = vsel %vm5315, %v4405, 0
          %v5353 = vsel %vm5315, %v4406, 0
          %v5356 = vsel %vm5315, %v4407, 0
          %v5359 = vsel %vm5315, %v4408, 0
          %v5362 = vsel %vm5315, %v4409, 0
          %5364 = vmatpush.msra.mxu0 0.0
          %5365 = vmatpush.msra.mxu0 0.0
          %5366 = vmatpush.msra.mxu0 0.0
          %5367 = vmatpush.msra.mxu0 0.0
          %5368 = vmatpush.msra.mxu0 0.0
          %5369 = vmatpush.msra.mxu0 0.0
          %5370 = vmatpush.msra.mxu0 0.0
          %5371 = vmatpush.msra.mxu0 0.0
          %5372 = vmatpush.msra.mxu0 %v5314
          %5373 = vmatpush.msra.mxu0 %v5313
          %5374 = vmatpush.msra.mxu0 %v5312
          %5375 = vmatpush.msra.mxu0 %v5311
          %5376 = vmatpush.msra.mxu0 %v5310
          %5377 = vmatpush.msra.mxu0 %v5309
          %5378 = vmatpush.msra.mxu0 %v5308
          %5379 = vmatpush.msra.mxu0 %v5307
          %5380 = vmatmul.f32.gmra.mxu0 %v5317
          %v5381 = vpop.f32.mrf.mxu0
          %v5382 = vadd.f32 0.0, %v5381
          %5383 = vmatmul.f32.gmra.mxu0 %v5320
          %v5384 = vpop.f32.mrf.mxu0
          %v5385 = vadd.f32 0.0, %v5384
          %5386 = vmatmul.f32.gmra.mxu0 %v5323
          %v5387 = vpop.f32.mrf.mxu0
          %v5388 = vadd.f32 0.0, %v5387
          %5389 = vmatmul.f32.gmra.mxu0 %v5326
          %v5390 = vpop.f32.mrf.mxu0
          %v5391 = vadd.f32 0.0, %v5390
          %5392 = vmatmul.f32.gmra.mxu0 %v5329
          %v5393 = vpop.f32.mrf.mxu0
          %v5394 = vadd.f32 0.0, %v5393
          %5395 = vmatmul.f32.gmra.mxu0 %v5332
          %v5396 = vpop.f32.mrf.mxu0
          %v5397 = vadd.f32 0.0, %v5396
          %5398 = vmatmul.f32.gmra.mxu0 %v5335
          %v5399 = vpop.f32.mrf.mxu0
          %v5400 = vadd.f32 0.0, %v5399
          %5401 = vmatmul.f32.gmra.mxu0 %v5338
          %v5402 = vpop.f32.mrf.mxu0
          %v5403 = vadd.f32 0.0, %v5402
          %5404 = vmatmul.f32.gmra.mxu0 %v5341
          %v5405 = vpop.f32.mrf.mxu0
          %v5406 = vadd.f32 0.0, %v5405
          %5407 = vmatmul.f32.gmra.mxu0 %v5344
          %v5408 = vpop.f32.mrf.mxu0
          %v5409 = vadd.f32 0.0, %v5408
          %5410 = vmatmul.f32.gmra.mxu0 %v5347
          %v5411 = vpop.f32.mrf.mxu0
          %v5412 = vadd.f32 0.0, %v5411
          %5413 = vmatmul.f32.gmra.mxu0 %v5350
          %v5414 = vpop.f32.mrf.mxu0
          %v5415 = vadd.f32 0.0, %v5414
          %5416 = vmatmul.f32.gmra.mxu0 %v5353
          %v5417 = vpop.f32.mrf.mxu0
          %v5418 = vadd.f32 0.0, %v5417
          %5419 = vmatmul.f32.gmra.mxu0 %v5356
          %v5420 = vpop.f32.mrf.mxu0
          %v5421 = vadd.f32 0.0, %v5420
          %5422 = vmatmul.f32.gmra.mxu0 %v5359
          %v5423 = vpop.f32.mrf.mxu0
          %v5424 = vadd.f32 0.0, %v5423
          %5425 = vmatmul.f32.gmra.mxu0 %v5362
          %v5426 = vpop.f32.mrf.mxu0
          %v5427 = vadd.f32 0.0, %v5426
          %5428 = vdwg.mxu0
          %v5430 = vsel %vm5315, %v5283, 0
          %v5433 = vsel %vm5315, %v5284, 0
          %v5436 = vsel %vm5315, %v5285, 0
          %v5439 = vsel %vm5315, %v5286, 0
          %v5442 = vsel %vm5315, %v5287, 0
          %v5445 = vsel %vm5315, %v5288, 0
          %v5448 = vsel %vm5315, %v5289, 0
          %v5451 = vsel %vm5315, %v5290, 0
          %v5454 = vsel %vm5315, %v5291, 0
          %v5457 = vsel %vm5315, %v5292, 0
          %v5460 = vsel %vm5315, %v5293, 0
          %v5463 = vsel %vm5315, %v5294, 0
          %v5466 = vsel %vm5315, %v5295, 0
          %v5469 = vsel %vm5315, %v5296, 0
          %v5472 = vsel %vm5315, %v5297, 0
          %v5475 = vsel %vm5315, %v5298, 0
          %5477 = vmatpush.msra.mxu0 0.0
          %5478 = vmatpush.msra.mxu0 0.0
          %5479 = vmatpush.msra.mxu0 0.0
          %5480 = vmatpush.msra.mxu0 0.0
          %5481 = vmatpush.msra.mxu0 0.0
          %5482 = vmatpush.msra.mxu0 0.0
          %5483 = vmatpush.msra.mxu0 0.0
          %5484 = vmatpush.msra.mxu0 0.0
          %5485 = vmatpush.msra.mxu0 %v5306
          %5486 = vmatpush.msra.mxu0 %v5305
          %5487 = vmatpush.msra.mxu0 %v5304
          %5488 = vmatpush.msra.mxu0 %v5303
          %5489 = vmatpush.msra.mxu0 %v5302
          %5490 = vmatpush.msra.mxu0 %v5301
          %5491 = vmatpush.msra.mxu0 %v5300
          %5492 = vmatpush.msra.mxu0 %v5299
          %5493 = vmatmul.f32.gmra.mxu0 %v5430
          %v5494 = vpop.f32.mrf.mxu0
          %v5495 = vadd.f32 %v5382, %v5494
          %5496 = vmatmul.f32.gmra.mxu0 %v5433
          %v5497 = vpop.f32.mrf.mxu0
          %v5498 = vadd.f32 %v5385, %v5497
          %5499 = vmatmul.f32.gmra.mxu0 %v5436
          %v5500 = vpop.f32.mrf.mxu0
          %v5501 = vadd.f32 %v5388, %v5500
          %5502 = vmatmul.f32.gmra.mxu0 %v5439
          %v5503 = vpop.f32.mrf.mxu0
          %v5504 = vadd.f32 %v5391, %v5503
          %5505 = vmatmul.f32.gmra.mxu0 %v5442
          %v5506 = vpop.f32.mrf.mxu0
          %v5507 = vadd.f32 %v5394, %v5506
          %5508 = vmatmul.f32.gmra.mxu0 %v5445
          %v5509 = vpop.f32.mrf.mxu0
          %v5510 = vadd.f32 %v5397, %v5509
          %5511 = vmatmul.f32.gmra.mxu0 %v5448
          %v5512 = vpop.f32.mrf.mxu0
          %v5513 = vadd.f32 %v5400, %v5512
          %5514 = vmatmul.f32.gmra.mxu0 %v5451
          %v5515 = vpop.f32.mrf.mxu0
          %v5516 = vadd.f32 %v5403, %v5515
          %5517 = vmatmul.f32.gmra.mxu0 %v5454
          %v5518 = vpop.f32.mrf.mxu0
          %v5519 = vadd.f32 %v5406, %v5518
          %5520 = vmatmul.f32.gmra.mxu0 %v5457
          %v5521 = vpop.f32.mrf.mxu0
          %v5522 = vadd.f32 %v5409, %v5521
          %5523 = vmatmul.f32.gmra.mxu0 %v5460
          %v5524 = vpop.f32.mrf.mxu0
          %v5525 = vadd.f32 %v5412, %v5524
          %5526 = vmatmul.f32.gmra.mxu0 %v5463
          %v5527 = vpop.f32.mrf.mxu0
          %v5528 = vadd.f32 %v5415, %v5527
          %5529 = vmatmul.f32.gmra.mxu0 %v5466
          %v5530 = vpop.f32.mrf.mxu0
          %v5531 = vadd.f32 %v5418, %v5530
          %5532 = vmatmul.f32.gmra.mxu0 %v5469
          %v5533 = vpop.f32.mrf.mxu0
          %v5534 = vadd.f32 %v5421, %v5533
          %5535 = vmatmul.f32.gmra.mxu0 %v5472
          %v5536 = vpop.f32.mrf.mxu0
          %v5537 = vadd.f32 %v5424, %v5536
          %5538 = vmatmul.f32.gmra.mxu0 %v5475
          %v5539 = vpop.f32.mrf.mxu0
          %v5540 = vadd.f32 %v5427, %v5539
          %5541 = vdwg.mxu0
          %v5542 = vxor.u32 %v5495, 2147483648
          %v5543 = vxor.u32 %v5498, 2147483648
          %v5544 = vxor.u32 %v5501, 2147483648
          %v5545 = vxor.u32 %v5504, 2147483648
          %v5546 = vxor.u32 %v5507, 2147483648
          %v5547 = vxor.u32 %v5510, 2147483648
          %v5548 = vxor.u32 %v5513, 2147483648
          %v5549 = vxor.u32 %v5516, 2147483648
          %v5550 = vxor.u32 %v5519, 2147483648
          %v5551 = vxor.u32 %v5522, 2147483648
          %v5552 = vxor.u32 %v5525, 2147483648
          %v5553 = vxor.u32 %v5528, 2147483648
          %v5554 = vxor.u32 %v5531, 2147483648
          %v5555 = vxor.u32 %v5534, 2147483648
          %v5556 = vxor.u32 %v5537, 2147483648
          %v5557 = vxor.u32 %v5540, 2147483648
          %v5558 = vmul.f32 %v5542, 1.442695
          %v5559 = vpow.pop %v5558
          %v5560 = vmul.f32 %v5543, 1.442695
          %v5561 = vpow.pop %v5560
          %v5562 = vmul.f32 %v5544, 1.442695
          %v5563 = vpow.pop %v5562
          %v5564 = vmul.f32 %v5545, 1.442695
          %v5565 = vpow.pop %v5564
          %v5566 = vmul.f32 %v5546, 1.442695
          %v5567 = vpow.pop %v5566
          %v5568 = vmul.f32 %v5547, 1.442695
          %v5569 = vpow.pop %v5568
          %v5570 = vmul.f32 %v5548, 1.442695
          %v5571 = vpow.pop %v5570
          %v5572 = vmul.f32 %v5549, 1.442695
          %v5573 = vpow.pop %v5572
          %v5574 = vmul.f32 %v5550, 1.442695
          %v5575 = vpow.pop %v5574
          %v5576 = vmul.f32 %v5551, 1.442695
          %v5577 = vpow.pop %v5576
          %v5578 = vmul.f32 %v5552, 1.442695
          %v5579 = vpow.pop %v5578
          %v5580 = vmul.f32 %v5553, 1.442695
          %v5581 = vpow.pop %v5580
          %v5582 = vmul.f32 %v5554, 1.442695
          %v5583 = vpow.pop %v5582
          %v5584 = vmul.f32 %v5555, 1.442695
          %v5585 = vpow.pop %v5584
          %v5586 = vmul.f32 %v5556, 1.442695
          %v5587 = vpow.pop %v5586
          %v5588 = vmul.f32 %v5557, 1.442695
          %v5589 = vpow.pop %v5588
          %v5590 = vadd.f32 %v5559, 1.0
          %v5591 = vadd.f32 %v5561, 1.0
          %v5592 = vadd.f32 %v5563, 1.0
          %v5593 = vadd.f32 %v5565, 1.0
          %v5594 = vadd.f32 %v5567, 1.0
          %v5595 = vadd.f32 %v5569, 1.0
          %v5596 = vadd.f32 %v5571, 1.0
          %v5597 = vadd.f32 %v5573, 1.0
          %v5598 = vadd.f32 %v5575, 1.0
          %v5599 = vadd.f32 %v5577, 1.0
          %v5600 = vadd.f32 %v5579, 1.0
          %v5601 = vadd.f32 %v5581, 1.0
          %v5602 = vadd.f32 %v5583, 1.0
          %v5603 = vadd.f32 %v5585, 1.0
          %v5604 = vadd.f32 %v5587, 1.0
          %v5605 = vadd.f32 %v5589, 1.0
          %v5606 = vrcp.pop %v5590
          %v5607 = vmul.f32 %v5590, %v5606
          %v5608 = vsub.f32 1.0, %v5607
          %v5609 = vmul.f32 %v5606, %v5608
          %v5610 = vadd.f32 %v5606, %v5609
          %vm5611 = vweird.f32 %v5590
          %vm5612 = vweird.f32 %v5606
          %vm5613 = vmor %vm5611, %vm5612
          %v5614 = vsel %vm5613, %v5606, %v5610
          %v5615 = vand.u32 2147483647, %v5590
          %vm5616 = vcmp.eq.f32.partialorder %v5615, 8.507059e+37
          %v5617 = vand.u32 %v5590, 2147483648
          %v5618 = vor.u32 1.1754944e-38, %v5617
          %v5619 = vsel %vm5616, %v5618, %v5614
          %v5620 = vmul.f32 1.0, %v5619
          %v5621 = vrcp.pop %v5591
          %v5622 = vmul.f32 %v5591, %v5621
          %v5623 = vsub.f32 1.0, %v5622
          %v5624 = vmul.f32 %v5621, %v5623
          %v5625 = vadd.f32 %v5621, %v5624
          %vm5626 = vweird.f32 %v5591
          %vm5627 = vweird.f32 %v5621
          %vm5628 = vmor %vm5626, %vm5627
          %v5629 = vsel %vm5628, %v5621, %v5625
          %v5630 = vand.u32 2147483647, %v5591
          %vm5631 = vcmp.eq.f32.partialorder %v5630, 8.507059e+37
          %v5632 = vand.u32 %v5591, 2147483648
          %v5633 = vor.u32 1.1754944e-38, %v5632
          %v5634 = vsel %vm5631, %v5633, %v5629
          %v5635 = vmul.f32 1.0, %v5634
          %v5636 = vrcp.pop %v5592
          %v5637 = vmul.f32 %v5592, %v5636
          %v5638 = vsub.f32 1.0, %v5637
          %v5639 = vmul.f32 %v5636, %v5638
          %v5640 = vadd.f32 %v5636, %v5639
          %vm5641 = vweird.f32 %v5592
          %vm5642 = vweird.f32 %v5636
          %vm5643 = vmor %vm5641, %vm5642
          %v5644 = vsel %vm5643, %v5636, %v5640
          %v5645 = vand.u32 2147483647, %v5592
          %vm5646 = vcmp.eq.f32.partialorder %v5645, 8.507059e+37
          %v5647 = vand.u32 %v5592, 2147483648
          %v5648 = vor.u32 1.1754944e-38, %v5647
          %v5649 = vsel %vm5646, %v5648, %v5644
          %v5650 = vmul.f32 1.0, %v5649
          %v5651 = vrcp.pop %v5593
          %v5652 = vmul.f32 %v5593, %v5651
          %v5653 = vsub.f32 1.0, %v5652
          %v5654 = vmul.f32 %v5651, %v5653
          %v5655 = vadd.f32 %v5651, %v5654
          %vm5656 = vweird.f32 %v5593
          %vm5657 = vweird.f32 %v5651
          %vm5658 = vmor %vm5656, %vm5657
          %v5659 = vsel %vm5658, %v5651, %v5655
          %v5660 = vand.u32 2147483647, %v5593
          %vm5661 = vcmp.eq.f32.partialorder %v5660, 8.507059e+37
          %v5662 = vand.u32 %v5593, 2147483648
          %v5663 = vor.u32 1.1754944e-38, %v5662
          %v5664 = vsel %vm5661, %v5663, %v5659
          %v5665 = vmul.f32 1.0, %v5664
          %v5666 = vrcp.pop %v5594
          %v5667 = vmul.f32 %v5594, %v5666
          %v5668 = vsub.f32 1.0, %v5667
          %v5669 = vmul.f32 %v5666, %v5668
          %v5670 = vadd.f32 %v5666, %v5669
          %vm5671 = vweird.f32 %v5594
          %vm5672 = vweird.f32 %v5666
          %vm5673 = vmor %vm5671, %vm5672
          %v5674 = vsel %vm5673, %v5666, %v5670
          %v5675 = vand.u32 2147483647, %v5594
          %vm5676 = vcmp.eq.f32.partialorder %v5675, 8.507059e+37
          %v5677 = vand.u32 %v5594, 2147483648
          %v5678 = vor.u32 1.1754944e-38, %v5677
          %v5679 = vsel %vm5676, %v5678, %v5674
          %v5680 = vmul.f32 1.0, %v5679
          %v5681 = vrcp.pop %v5595
          %v5682 = vmul.f32 %v5595, %v5681
          %v5683 = vsub.f32 1.0, %v5682
          %v5684 = vmul.f32 %v5681, %v5683
          %v5685 = vadd.f32 %v5681, %v5684
          %vm5686 = vweird.f32 %v5595
          %vm5687 = vweird.f32 %v5681
          %vm5688 = vmor %vm5686, %vm5687
          %v5689 = vsel %vm5688, %v5681, %v5685
          %v5690 = vand.u32 2147483647, %v5595
          %vm5691 = vcmp.eq.f32.partialorder %v5690, 8.507059e+37
          %v5692 = vand.u32 %v5595, 2147483648
          %v5693 = vor.u32 1.1754944e-38, %v5692
          %v5694 = vsel %vm5691, %v5693, %v5689
          %v5695 = vmul.f32 1.0, %v5694
          %v5696 = vrcp.pop %v5596
          %v5697 = vmul.f32 %v5596, %v5696
          %v5698 = vsub.f32 1.0, %v5697
          %v5699 = vmul.f32 %v5696, %v5698
          %v5700 = vadd.f32 %v5696, %v5699
          %vm5701 = vweird.f32 %v5596
          %vm5702 = vweird.f32 %v5696
          %vm5703 = vmor %vm5701, %vm5702
          %v5704 = vsel %vm5703, %v5696, %v5700
          %v5705 = vand.u32 2147483647, %v5596
          %vm5706 = vcmp.eq.f32.partialorder %v5705, 8.507059e+37
          %v5707 = vand.u32 %v5596, 2147483648
          %v5708 = vor.u32 1.1754944e-38, %v5707
          %v5709 = vsel %vm5706, %v5708, %v5704
          %v5710 = vmul.f32 1.0, %v5709
          %v5711 = vrcp.pop %v5597
          %v5712 = vmul.f32 %v5597, %v5711
          %v5713 = vsub.f32 1.0, %v5712
          %v5714 = vmul.f32 %v5711, %v5713
          %v5715 = vadd.f32 %v5711, %v5714
          %vm5716 = vweird.f32 %v5597
          %vm5717 = vweird.f32 %v5711
          %vm5718 = vmor %vm5716, %vm5717
          %v5719 = vsel %vm5718, %v5711, %v5715
          %v5720 = vand.u32 2147483647, %v5597
          %vm5721 = vcmp.eq.f32.partialorder %v5720, 8.507059e+37
          %v5722 = vand.u32 %v5597, 2147483648
          %v5723 = vor.u32 1.1754944e-38, %v5722
          %v5724 = vsel %vm5721, %v5723, %v5719
          %v5725 = vmul.f32 1.0, %v5724
          %v5726 = vrcp.pop %v5598
          %v5727 = vmul.f32 %v5598, %v5726
          %v5728 = vsub.f32 1.0, %v5727
          %v5729 = vmul.f32 %v5726, %v5728
          %v5730 = vadd.f32 %v5726, %v5729
          %vm5731 = vweird.f32 %v5598
          %vm5732 = vweird.f32 %v5726
          %vm5733 = vmor %vm5731, %vm5732
          %v5734 = vsel %vm5733, %v5726, %v5730
          %v5735 = vand.u32 2147483647, %v5598
          %vm5736 = vcmp.eq.f32.partialorder %v5735, 8.507059e+37
          %v5737 = vand.u32 %v5598, 2147483648
          %v5738 = vor.u32 1.1754944e-38, %v5737
          %v5739 = vsel %vm5736, %v5738, %v5734
          %v5740 = vmul.f32 1.0, %v5739
          %v5741 = vrcp.pop %v5599
          %v5742 = vmul.f32 %v5599, %v5741
          %v5743 = vsub.f32 1.0, %v5742
          %v5744 = vmul.f32 %v5741, %v5743
          %v5745 = vadd.f32 %v5741, %v5744
          %vm5746 = vweird.f32 %v5599
          %vm5747 = vweird.f32 %v5741
          %vm5748 = vmor %vm5746, %vm5747
          %v5749 = vsel %vm5748, %v5741, %v5745
          %v5750 = vand.u32 2147483647, %v5599
          %vm5751 = vcmp.eq.f32.partialorder %v5750, 8.507059e+37
          %v5752 = vand.u32 %v5599, 2147483648
          %v5753 = vor.u32 1.1754944e-38, %v5752
          %v5754 = vsel %vm5751, %v5753, %v5749
          %v5755 = vmul.f32 1.0, %v5754
          %v5756 = vrcp.pop %v5600
          %v5757 = vmul.f32 %v5600, %v5756
          %v5758 = vsub.f32 1.0, %v5757
          %v5759 = vmul.f32 %v5756, %v5758
          %v5760 = vadd.f32 %v5756, %v5759
          %vm5761 = vweird.f32 %v5600
          %vm5762 = vweird.f32 %v5756
          %vm5763 = vmor %vm5761, %vm5762
          %v5764 = vsel %vm5763, %v5756, %v5760
          %v5765 = vand.u32 2147483647, %v5600
          %vm5766 = vcmp.eq.f32.partialorder %v5765, 8.507059e+37
          %v5767 = vand.u32 %v5600, 2147483648
          %v5768 = vor.u32 1.1754944e-38, %v5767
          %v5769 = vsel %vm5766, %v5768, %v5764
          %v5770 = vmul.f32 1.0, %v5769
          %v5771 = vrcp.pop %v5601
          %v5772 = vmul.f32 %v5601, %v5771
          %v5773 = vsub.f32 1.0, %v5772
          %v5774 = vmul.f32 %v5771, %v5773
          %v5775 = vadd.f32 %v5771, %v5774
          %vm5776 = vweird.f32 %v5601
          %vm5777 = vweird.f32 %v5771
          %vm5778 = vmor %vm5776, %vm5777
          %v5779 = vsel %vm5778, %v5771, %v5775
          %v5780 = vand.u32 2147483647, %v5601
          %vm5781 = vcmp.eq.f32.partialorder %v5780, 8.507059e+37
          %v5782 = vand.u32 %v5601, 2147483648
          %v5783 = vor.u32 1.1754944e-38, %v5782
          %v5784 = vsel %vm5781, %v5783, %v5779
          %v5785 = vmul.f32 1.0, %v5784
          %v5786 = vrcp.pop %v5602
          %v5787 = vmul.f32 %v5602, %v5786
          %v5788 = vsub.f32 1.0, %v5787
          %v5789 = vmul.f32 %v5786, %v5788
          %v5790 = vadd.f32 %v5786, %v5789
          %vm5791 = vweird.f32 %v5602
          %vm5792 = vweird.f32 %v5786
          %vm5793 = vmor %vm5791, %vm5792
          %v5794 = vsel %vm5793, %v5786, %v5790
          %v5795 = vand.u32 2147483647, %v5602
          %vm5796 = vcmp.eq.f32.partialorder %v5795, 8.507059e+37
          %v5797 = vand.u32 %v5602, 2147483648
          %v5798 = vor.u32 1.1754944e-38, %v5797
          %v5799 = vsel %vm5796, %v5798, %v5794
          %v5800 = vmul.f32 1.0, %v5799
          %v5801 = vrcp.pop %v5603
          %v5802 = vmul.f32 %v5603, %v5801
          %v5803 = vsub.f32 1.0, %v5802
          %v5804 = vmul.f32 %v5801, %v5803
          %v5805 = vadd.f32 %v5801, %v5804
          %vm5806 = vweird.f32 %v5603
          %vm5807 = vweird.f32 %v5801
          %vm5808 = vmor %vm5806, %vm5807
          %v5809 = vsel %vm5808, %v5801, %v5805
          %v5810 = vand.u32 2147483647, %v5603
          %vm5811 = vcmp.eq.f32.partialorder %v5810, 8.507059e+37
          %v5812 = vand.u32 %v5603, 2147483648
          %v5813 = vor.u32 1.1754944e-38, %v5812
          %v5814 = vsel %vm5811, %v5813, %v5809
          %v5815 = vmul.f32 1.0, %v5814
          %v5816 = vrcp.pop %v5604
          %v5817 = vmul.f32 %v5604, %v5816
          %v5818 = vsub.f32 1.0, %v5817
          %v5819 = vmul.f32 %v5816, %v5818
          %v5820 = vadd.f32 %v5816, %v5819
          %vm5821 = vweird.f32 %v5604
          %vm5822 = vweird.f32 %v5816
          %vm5823 = vmor %vm5821, %vm5822
          %v5824 = vsel %vm5823, %v5816, %v5820
          %v5825 = vand.u32 2147483647, %v5604
          %vm5826 = vcmp.eq.f32.partialorder %v5825, 8.507059e+37
          %v5827 = vand.u32 %v5604, 2147483648
          %v5828 = vor.u32 1.1754944e-38, %v5827
          %v5829 = vsel %vm5826, %v5828, %v5824
          %v5830 = vmul.f32 1.0, %v5829
          %v5831 = vrcp.pop %v5605
          %v5832 = vmul.f32 %v5605, %v5831
          %v5833 = vsub.f32 1.0, %v5832
          %v5834 = vmul.f32 %v5831, %v5833
          %v5835 = vadd.f32 %v5831, %v5834
          %vm5836 = vweird.f32 %v5605
          %vm5837 = vweird.f32 %v5831
          %vm5838 = vmor %vm5836, %vm5837
          %v5839 = vsel %vm5838, %v5831, %v5835
          %v5840 = vand.u32 2147483647, %v5605
          %vm5841 = vcmp.eq.f32.partialorder %v5840, 8.507059e+37
          %v5842 = vand.u32 %v5605, 2147483648
          %v5843 = vor.u32 1.1754944e-38, %v5842
          %v5844 = vsel %vm5841, %v5843, %v5839
          %v5845 = vmul.f32 1.0, %v5844
          %5847 = vset.pattern.permute.xlu0 0
          %5848 = vperm.xlu0 %5847, %v5620
          %v5849 = vpop.permute.xlu0 %5848
          %5852 = vset.pattern.permute.xlu0 0
          %5853 = vperm.xlu0 %5852, %v5635
          %v5854 = vpop.permute.xlu0 %5853
          %5857 = vset.pattern.permute.xlu0 0
          %5858 = vperm.xlu0 %5857, %v5650
          %v5859 = vpop.permute.xlu0 %5858
          %5862 = vset.pattern.permute.xlu0 0
          %5863 = vperm.xlu0 %5862, %v5665
          %v5864 = vpop.permute.xlu0 %5863
          %5867 = vset.pattern.permute.xlu0 0
          %5868 = vperm.xlu0 %5867, %v5680
          %v5869 = vpop.permute.xlu0 %5868
          %5872 = vset.pattern.permute.xlu0 0
          %5873 = vperm.xlu0 %5872, %v5695
          %v5874 = vpop.permute.xlu0 %5873
          %5877 = vset.pattern.permute.xlu0 0
          %5878 = vperm.xlu0 %5877, %v5710
          %v5879 = vpop.permute.xlu0 %5878
          %5882 = vset.pattern.permute.xlu0 0
          %5883 = vperm.xlu0 %5882, %v5725
          %v5884 = vpop.permute.xlu0 %5883
          %5887 = vset.pattern.permute.xlu0 0
          %5888 = vperm.xlu0 %5887, %v5740
          %v5889 = vpop.permute.xlu0 %5888
          %5892 = vset.pattern.permute.xlu0 0
          %5893 = vperm.xlu0 %5892, %v5755
          %v5894 = vpop.permute.xlu0 %5893
          %5897 = vset.pattern.permute.xlu0 0
          %5898 = vperm.xlu0 %5897, %v5770
          %v5899 = vpop.permute.xlu0 %5898
          %5902 = vset.pattern.permute.xlu0 0
          %5903 = vperm.xlu0 %5902, %v5785
          %v5904 = vpop.permute.xlu0 %5903
          %5907 = vset.pattern.permute.xlu0 0
          %5908 = vperm.xlu0 %5907, %v5800
          %v5909 = vpop.permute.xlu0 %5908
          %5912 = vset.pattern.permute.xlu0 0
          %5913 = vperm.xlu0 %5912, %v5815
          %v5914 = vpop.permute.xlu0 %5913
          %5917 = vset.pattern.permute.xlu0 0
          %5918 = vperm.xlu0 %5917, %v5830
          %v5919 = vpop.permute.xlu0 %5918
          %5922 = vset.pattern.permute.xlu0 0
          %5923 = vperm.xlu0 %5922, %v5845
          %v5924 = vpop.permute.xlu0 %5923
          %v5926 = vmul.f32 %v5849, %v4394
          %v5927 = vmul.f32 %v5854, %v4395
          %v5928 = vmul.f32 %v5859, %v4396
          %v5929 = vmul.f32 %v5864, %v4397
          %v5930 = vmul.f32 %v5869, %v4398
          %v5931 = vmul.f32 %v5874, %v4399
          %v5932 = vmul.f32 %v5879, %v4400
          %v5933 = vmul.f32 %v5884, %v4401
          %v5934 = vmul.f32 %v5889, %v4402
          %v5935 = vmul.f32 %v5894, %v4403
          %v5936 = vmul.f32 %v5899, %v4404
          %v5937 = vmul.f32 %v5904, %v4405
          %v5938 = vmul.f32 %v5909, %v4406
          %v5939 = vmul.f32 %v5914, %v4407
          %v5940 = vmul.f32 %v5919, %v4408
          %v5941 = vmul.f32 %v5924, %v4409
          %v5942 = vsub.f32 1.0, %v5620
          %v5943 = vsub.f32 1.0, %v5635
          %v5944 = vsub.f32 1.0, %v5650
          %v5945 = vsub.f32 1.0, %v5665
          %v5946 = vsub.f32 1.0, %v5680
          %v5947 = vsub.f32 1.0, %v5695
          %v5948 = vsub.f32 1.0, %v5710
          %v5949 = vsub.f32 1.0, %v5725
          %v5950 = vsub.f32 1.0, %v5740
          %v5951 = vsub.f32 1.0, %v5755
          %v5952 = vsub.f32 1.0, %v5770
          %v5953 = vsub.f32 1.0, %v5785
          %v5954 = vsub.f32 1.0, %v5800
          %v5955 = vsub.f32 1.0, %v5815
          %v5956 = vsub.f32 1.0, %v5830
          %v5957 = vsub.f32 1.0, %v5845
          %5959 = vset.pattern.permute.xlu0 0
          %5960 = vperm.xlu0 %5959, %v5942
          %v5961 = vpop.permute.xlu0 %5960
          %5964 = vset.pattern.permute.xlu0 0
          %5965 = vperm.xlu0 %5964, %v5943
          %v5966 = vpop.permute.xlu0 %5965
          %5969 = vset.pattern.permute.xlu0 0
          %5970 = vperm.xlu0 %5969, %v5944
          %v5971 = vpop.permute.xlu0 %5970
          %5974 = vset.pattern.permute.xlu0 0
          %5975 = vperm.xlu0 %5974, %v5945
          %v5976 = vpop.permute.xlu0 %5975
          %5979 = vset.pattern.permute.xlu0 0
          %5980 = vperm.xlu0 %5979, %v5946
          %v5981 = vpop.permute.xlu0 %5980
          %5984 = vset.pattern.permute.xlu0 0
          %5985 = vperm.xlu0 %5984, %v5947
          %v5986 = vpop.permute.xlu0 %5985
          %5989 = vset.pattern.permute.xlu0 0
          %5990 = vperm.xlu0 %5989, %v5948
          %v5991 = vpop.permute.xlu0 %5990
          %5994 = vset.pattern.permute.xlu0 0
          %5995 = vperm.xlu0 %5994, %v5949
          %v5996 = vpop.permute.xlu0 %5995
          %5999 = vset.pattern.permute.xlu0 0
          %6000 = vperm.xlu0 %5999, %v5950
          %v6001 = vpop.permute.xlu0 %6000
          %6004 = vset.pattern.permute.xlu0 0
          %6005 = vperm.xlu0 %6004, %v5951
          %v6006 = vpop.permute.xlu0 %6005
          %6009 = vset.pattern.permute.xlu0 0
          %6010 = vperm.xlu0 %6009, %v5952
          %v6011 = vpop.permute.xlu0 %6010
          %6014 = vset.pattern.permute.xlu0 0
          %6015 = vperm.xlu0 %6014, %v5953
          %v6016 = vpop.permute.xlu0 %6015
          %6019 = vset.pattern.permute.xlu0 0
          %6020 = vperm.xlu0 %6019, %v5954
          %v6021 = vpop.permute.xlu0 %6020
          %6024 = vset.pattern.permute.xlu0 0
          %6025 = vperm.xlu0 %6024, %v5955
          %v6026 = vpop.permute.xlu0 %6025
          %6029 = vset.pattern.permute.xlu0 0
          %6030 = vperm.xlu0 %6029, %v5956
          %v6031 = vpop.permute.xlu0 %6030
          %6034 = vset.pattern.permute.xlu0 0
          %6035 = vperm.xlu0 %6034, %v5957
          %v6036 = vpop.permute.xlu0 %6035
          %v6038 = vmul.f32 %v5961, %v5283
          %v6039 = vmul.f32 %v5966, %v5284
          %v6040 = vmul.f32 %v5971, %v5285
          %v6041 = vmul.f32 %v5976, %v5286
          %v6042 = vmul.f32 %v5981, %v5287
          %v6043 = vmul.f32 %v5986, %v5288
          %v6044 = vmul.f32 %v5991, %v5289
          %v6045 = vmul.f32 %v5996, %v5290
          %v6046 = vmul.f32 %v6001, %v5291
          %v6047 = vmul.f32 %v6006, %v5292
          %v6048 = vmul.f32 %v6011, %v5293
          %v6049 = vmul.f32 %v6016, %v5294
          %v6050 = vmul.f32 %v6021, %v5295
          %v6051 = vmul.f32 %v6026, %v5296
          %v6052 = vmul.f32 %v6031, %v5297
          %v6053 = vmul.f32 %v6036, %v5298
          %v6054 = vadd.f32 %v5926, %v6038
          %v6055 = vadd.f32 %v5927, %v6039
          %v6056 = vadd.f32 %v5928, %v6040
          %v6057 = vadd.f32 %v5929, %v6041
          %v6058 = vadd.f32 %v5930, %v6042
          %v6059 = vadd.f32 %v5931, %v6043
          %v6060 = vadd.f32 %v5932, %v6044
          %v6061 = vadd.f32 %v5933, %v6045
          %v6062 = vadd.f32 %v5934, %v6046
          %v6063 = vadd.f32 %v5935, %v6047
          %v6064 = vadd.f32 %v5936, %v6048
          %v6065 = vadd.f32 %v5937, %v6049
          %v6066 = vadd.f32 %v5938, %v6050
          %v6067 = vadd.f32 %v5939, %v6051
          %v6068 = vadd.f32 %v5940, %v6052
          %v6069 = vadd.f32 %v5941, %v6053
          %6070 = vst.msk [vmem:[%s506] sm:$0xff] %vm5315, %v6054
          %6071 = vst.msk [vmem:[%s506 + $0x8] sm:$0xff] %vm5315, %v6055
          %6072 = vst.msk [vmem:[%s506 + $0x10] sm:$0xff] %vm5315, %v6056
          %6073 = vst.msk [vmem:[%s506 + $0x18] sm:$0xff] %vm5315, %v6057
          %6074 = vst.msk [vmem:[%s506 + $0x20] sm:$0xff] %vm5315, %v6058
          %6075 = vst.msk [vmem:[%s506 + $0x28] sm:$0xff] %vm5315, %v6059
          %6076 = vst.msk [vmem:[%s506 + $0x30] sm:$0xff] %vm5315, %v6060
          %6077 = vst.msk [vmem:[%s506 + $0x38] sm:$0xff] %vm5315, %v6061
          %6078 = vst.msk [vmem:[%s506 + $0x40] sm:$0xff] %vm5315, %v6062
          %6079 = vst.msk [vmem:[%s506 + $0x48] sm:$0xff] %vm5315, %v6063
          %6080 = vst.msk [vmem:[%s506 + $0x50] sm:$0xff] %vm5315, %v6064
          %6081 = vst.msk [vmem:[%s506 + $0x58] sm:$0xff] %vm5315, %v6065
          %6082 = vst.msk [vmem:[%s506 + $0x60] sm:$0xff] %vm5315, %v6066
          %6083 = vst.msk [vmem:[%s506 + $0x68] sm:$0xff] %vm5315, %v6067
          %6084 = vst.msk [vmem:[%s506 + $0x70] sm:$0xff] %vm5315, %v6068
          %6085 = vst.msk [vmem:[%s506 + $0x78] sm:$0xff] %vm5315, %v6069
        $region109: #{tpu_custom_call.1} parent=92 // pred_fallthru
          _
        %s6086 = smul.u32 16, %s33
        %p6087 = scmp.lt.s32.totalorder %s6086, 31
        %s6088 = scalar_select %p6087, %s6086, 31
        %s6089 = smul.addr %s6088, 8
        %s6090 = scalar_lea.vmem %s10, %s6089
        // Predicated region
        $region110: #{tpu_custom_call.1} parent=92 // pred_check
          %p6091 = pneg %p265
        $region111: #{tpu_custom_call.1} parent=92 // pred_check_branch
          %6093 = sbr.rel (%p6091) target = $region113
        $region112: #{tpu_custom_call.1} parent=92 // pred_region
          %s6094 = smul.u32 16, %s33
        $region113: #{tpu_custom_call.1} parent=92 // pred_fallthru
          _
      $region93: #{tpu_custom_call.1} parent=5 // pred_fallthru
        _
      %p6095 = scmp.le.s32.totalorder 2, %s24
      // Predicated region
      $region114: #{tpu_custom_call.1} parent=5 // pred_check
        %p6096 = pneg %p6095
      $region115: #{tpu_custom_call.1} parent=5 // pred_check_branch
        %6098 = sbr.rel (%p6096) target = $region117
      $region116: #{tpu_custom_call.1} parent=5 // pred_region
        %s6099 = ssub.s32 %s24, 2
        // Predicated region
        $region118: #{tpu_custom_call.1} parent=116 // pred_check
          %p6100 = pneg %p271
        $region119: #{tpu_custom_call.1} parent=116 // pred_check_branch
          %6102 = sbr.rel (%p6100) target = $region121
        $region120: #{tpu_custom_call.1} parent=116 // pred_region
          %s6103 = smul.u32 16, %s35
          %p6104 = scmp.lt.s32.totalorder %s6103, 31
          %s6105 = scalar_select %p6104, %s6103, 31
          %s6106 = smul.addr %s6105, 8
          %s6107 = scalar_lea.vmem %s10, %s6106
        $region121: #{tpu_custom_call.1} parent=116 // pred_fallthru
          _
      $region117: #{tpu_custom_call.1} parent=5 // pred_fallthru
        _
    $region6: #{tpu_custom_call.1} parent=1 // loop_footer
      %s28 = sadd.s32 1, %s24
    $region7: #{tpu_custom_call.1} parent=1 // loop_footer_branch
      %23 = sbr.rel target = $region3
    $region8: #{tpu_custom_call.1} parent=1 // loop_exit
      _

</llo_original>
